<compile_context>
chip_gen: v6e
topology: v6e:2x2x1
jax: 0.10.0
libtpu: 0.0.40
codegen_flags: <defaults>
</compile_context>

<pallas_src>
import jax
import jax.numpy as jnp
from jax import lax
from jax.experimental import pallas as pl

# ----------------------------- configuration --------------------------------
B = 2             # batch size
S = 8             # question length
L = 6             # kb description length
DW = 16           # dim_word
DH = 32           # dim_hidden
T = 3             # num_steps (hops)
E = 16            # num entities
R = 24            # num kb triples
NW = 50           # num words
ENT_ACT_THRES = 0.7

F32 = jnp.float32


# ------------------------------- Pallas kernel ------------------------------
def transfernet_kernel(q_emb_ref, qwh_ref, qmask_ref, e_s_ref,
                       Wsteps_ref, bsteps_ref, rel_w_ref, rel_b_ref,
                       descT_ref, subT_ref, obj_ref,
                       hop_w_ref, hop_b_ref, qcls_w_ref, qcls_b_ref,
                       e_score_ref, word_attn_ref, ent_prob_ref):
    # shared weights: loaded from VMEM exactly once
    rel_w = rel_w_ref[...]          # (1, DH)
    rel_b = rel_b_ref[...]          # (1, 1)
    descT = descT_ref[...]          # (DH, R)
    sub_T = subT_ref[...]           # (E, R)
    obj   = obj_ref[...]            # (R, E)
    e_s   = e_s_ref[...]            # (B, E)
    W_list = [Wsteps_ref[t] for t in range(T)]   # each (DH, DH)
    b_list = [bsteps_ref[t] for t in range(T)]   # each (1, DH)

    def row_argmax(x, iota):
        mx = jnp.max(x, axis=-1, keepdims=True)
        cand = jnp.where(x >= mx, iota, jnp.int32(1 << 30))
        return jnp.min(cand, axis=-1, keepdims=True)      # (rows, 1) int32

    # one-hot hop-row selectors (constants)
    sel_rows = [(lax.broadcasted_iota(jnp.int32, (1, T), 1) == t).astype(F32)
                for t in range(T)]

    # -------- hop-independent math, hoisted & batched over the T hops --------
    # (step encoder, word attention, context, relation classifier do NOT depend
    #  on last_e; q_word_h differs per example, hence the static loop over B)
    q_rows = []          # per-example (1, DH) sentence embeddings
    d_prob_blocks = []   # per-example (T, R) relation probabilities
    for b in range(B):                                    # static, unrolled
        q_e_b   = q_emb_ref[b]                            # (1, DH)
        wh_b    = qwh_ref[b]                              # (S, DH)
        qmask_b = qmask_ref[b]                            # (1, S)
        q_rows.append(q_e_b)

        # step encoders for all T hops -> (T, DH)
        cq_rows = [jnp.tanh(jnp.dot(q_e_b, W_list[t], preferred_element_type=F32)
                            + b_list[t]) for t in range(T)]
        cq = jnp.concatenate(cq_rows, axis=0)             # (T, DH)

        # word attention over the question, all hops at once
        q_logits = jnp.dot(cq, wh_b.T, preferred_element_type=F32)      # (T, S)
        q_logits = q_logits - jnp.max(q_logits, axis=-1, keepdims=True)
        q_exp = jnp.exp(q_logits)
        q_dist = q_exp / jnp.sum(q_exp, axis=-1, keepdims=True)
        q_dist = q_dist * qmask_b
        q_dist = q_dist / (jnp.sum(q_dist, axis=-1, keepdims=True) + 1e-6)
        word_attn_ref[b] = q_dist                         # one (T, S) store / example

        ctx = jnp.dot(q_dist, wh_b, preferred_element_type=F32) + cq    # (T, DH)

        # relation probability for every triple, all hops at once:
        # d_logit[t, r] = sum_h ctx[t, h] * desc_emb[r, h] * rel_w[h] + rel_b
        d_logit = jnp.dot(ctx * rel_w, descT, preferred_element_type=F32) + rel_b
        d_prob_blocks.append(jax.nn.sigmoid(d_logit))     # (T, R)

    q_e = jnp.concatenate(q_rows, axis=0)                 # (B, DH)
    # re-pack relation probabilities batch-major per hop: (B, R) each
    d_prob_hops = [
        jnp.concatenate(
            [jnp.dot(sel_rows[t], d_prob_blocks[b], preferred_element_type=F32)
             for b in range(B)], axis=0)
        for t in range(T)]

    # -------- sequential follow() loop over hops, batched over B --------
    iota_e = lax.broadcasted_iota(jnp.int32, (B, E), 1)
    last_e = e_s
    ent_list = []
    for t in range(T):                                    # static, unrolled
        # active-entity gating (threshold, drop entity 0, fallback = argmax)
        act = (last_e > ENT_ACT_THRES).astype(F32)
        act = jnp.where(iota_e == 0, 0.0, act)
        has = (jnp.sum(act, axis=-1, keepdims=True) > 0.0).astype(F32)  # (B, 1)
        masked_e = jnp.where(iota_e == 0, -1e30, last_e)
        am = row_argmax(masked_e, iota_e)
        fallback = (iota_e == am).astype(F32)
        ent_act = has * act + (1.0 - has) * fallback                    # (B, E)

        # follow(): out[obj] += e[sub] * p  (gather/scatter as one-hot matmuls)
        e_sub    = jnp.dot(last_e,  sub_T, preferred_element_type=F32)  # (B, R)
        pair_act = jnp.dot(ent_act, sub_T, preferred_element_type=F32)  # (B, R)
        obj_p = e_sub * d_prob_hops[t] * pair_act
        new_e = jnp.dot(obj_p, obj, preferred_element_type=F32)         # (B, E)

        # renormalise scores that exceeded 1
        m = (new_e > 1.0).astype(F32)
        new_e = new_e / (m * new_e + (1.0 - m))
        # TODO(synk): inverse-relation masking (path_infos string logic) has no Pallas equivalent.
        ent_prob_ref[t] = new_e                           # direct per-hop store
        ent_list.append(new_e)
        last_e = new_e

    # -------- hop-attention aggregation + q_classifier gating (batched) --------
    hop_logit = jnp.dot(q_e, hop_w_ref[...], preferred_element_type=F32) + hop_b_ref[...]
    hop_logit = hop_logit - jnp.max(hop_logit, axis=-1, keepdims=True)
    hop_exp = jnp.exp(hop_logit)
    hop_attn = hop_exp / jnp.sum(hop_exp, axis=-1, keepdims=True)       # (B, T)

    iota_t = lax.broadcasted_iota(jnp.int32, (B, T), 1)
    last = jnp.zeros((B, E), F32)
    for t in range(T):
        w_t = jnp.sum(jnp.where(iota_t == t, hop_attn, 0.0),
                      axis=-1, keepdims=True)                           # (B, 1)
        last = last + w_t * ent_list[t]

    hop_am = row_argmax(hop_attn, iota_t)                               # (B, 1)
    m = (hop_am == 1).astype(F32) * e_s                                 # (B, E)
    last = (1.0 - m) * last

    q_mask_cls = jax.nn.sigmoid(
        jnp.dot(q_e, qcls_w_ref[...], preferred_element_type=F32) + qcls_b_ref[...])

    e_score_ref[...] = last * q_mask_cls                                # (B, E)


def run_transfernet_kernel(inp):
    # Single invocation, no grid: every operand fits in VMEM many times over, so
    # the default whole-array blocks avoid all per-grid-step pipeline overhead.
    out_shape = (
        jax.ShapeDtypeStruct((B, E), F32),      # e_score
        jax.ShapeDtypeStruct((B, T, S), F32),   # word attentions
        jax.ShapeDtypeStruct((T, B, E), F32),   # entity probs (hop-major for per-hop stores)
    )
    f = pl.pallas_call(transfernet_kernel, out_shape=out_shape)
    e_score, word_attns, ent_probs = f(
        inp['q_emb'], inp['qwh'], inp['qmask'], inp['e_s'],
        inp['Wsteps'], inp['bsteps'], inp['rel_w'], inp['rel_b'],
        inp['descT'], inp['subT'], inp['obj'],
        inp['hop_w'], inp['hop_b'], inp['qcls_w'], inp['qcls_b'])
    return e_score, word_attns, jnp.swapaxes(ent_probs, 0, 1)


# ------------------------------ plain-JAX glue -------------------------------
def _init(key, shape, scale=0.1):
    return (scale * jax.random.normal(key, shape)).astype(F32)


def init_gru(key, din, dh):
    ks = jax.random.split(key, 6)
    return dict(
        Wz=_init(ks[0], (din, dh)), Uz=_init(ks[1], (dh, dh)), bz=jnp.zeros((dh,), F32),
        Wr=_init(ks[2], (din, dh)), Ur=_init(ks[3], (dh, dh)), br=jnp.zeros((dh,), F32),
        Wn=_init(ks[4], (din, dh)), Un=_init(ks[5], (dh, dh)), bn=jnp.zeros((dh,), F32),
    )


def gru_cell(p, h, x):
    z = jax.nn.sigmoid(x @ p['Wz'] + h @ p['Uz'] + p['bz'])
    r = jax.nn.sigmoid(x @ p['Wr'] + h @ p['Ur'] + p['br'])
    n = jnp.tanh(x @ p['Wn'] + (r * h) @ p['Un'] + p['bn'])
    return (1.0 - z) * h + z * n


def run_gru_dir(p, x, mask):
    # x: (N, S, D), mask: (N, S) -> (states (N, S, dh), final (N, dh))
    def step(h, inp_t):
        xt, mt = inp_t
        hn = gru_cell(p, h, xt)
        h = mt[:, None] * hn + (1.0 - mt[:, None]) * h
        return h, h
    h0 = jnp.zeros((x.shape[0], p['Uz'].shape[0]), F32)
    hT, hs = lax.scan(step, h0, (jnp.swapaxes(x, 0, 1), jnp.swapaxes(mask, 0, 1)))
    return jnp.swapaxes(hs, 0, 1), hT


def bigru(pf, pb, x, mask):
    # TODO(synk): torch packed-sequence BiGRU approximated with masked scan (glue, not Pallas).
    hf, hfT = run_gru_dir(pf, x, mask)
    hb, hbT = run_gru_dir(pb, x[:, ::-1, :], mask[:, ::-1])
    hb = hb[:, ::-1, :]
    return jnp.concatenate([hf, hb], axis=-1), jnp.concatenate([hfT, hbT], axis=-1)


def init_params(key):
    ks = iter(jax.random.split(key, 20))
    p = {}
    p['word_emb'] = _init(next(ks), (NW, DW), scale=0.5)
    p['q_gru_f'] = init_gru(next(ks), DW, DH // 2)
    p['q_gru_b'] = init_gru(next(ks), DW, DH // 2)
    p['d_gru_f'] = init_gru(next(ks), DW, DH // 2)
    p['d_gru_b'] = init_gru(next(ks), DW, DH // 2)
    p['Wsteps'] = _init(next(ks), (T, DH, DH))
    p['bsteps'] = _init(next(ks), (T, 1, DH), scale=0.01)
    p['rel_w'] = _init(next(ks), (1, DH))
    p['rel_b'] = jnp.zeros((1, 1), F32)
    p['hop_w'] = _init(next(ks), (DH, T))
    p['hop_b'] = jnp.zeros((1, T), F32)
    p['qcls_w'] = _init(next(ks), (DH, E))
    p['qcls_b'] = jnp.zeros((1, E), F32)
    return p


def prepare_inputs(params, questions, e_s, kb_pair, kb_desc):
    q_mask = (questions != 0).astype(F32)                      # (B, S)
    q_word_emb = params['word_emb'][questions]                 # (B, S, DW)  (dropout = eval no-op)
    q_word_h, q_emb = bigru(params['q_gru_f'], params['q_gru_b'], q_word_emb, q_mask)

    d_mask = (kb_desc != 0).astype(F32)
    d_word_emb = params['word_emb'][kb_desc]
    _, desc_emb = bigru(params['d_gru_f'], params['d_gru_b'], d_word_emb, d_mask)   # (R, DH)

    sub_oh = jax.nn.one_hot(kb_pair[:, 0], E, dtype=F32)       # (R, E)
    obj_oh = jax.nn.one_hot(kb_pair[:, 1], E, dtype=F32)       # (R, E)
    # TODO(synk): max_active truncation and kb_range bookkeeping skipped (all R triples considered,
    # subject gating is expressed as a mask which is equivalent to range-based selection).
    return dict(
        q_emb=q_emb[:, None, :],                               # (B, 1, DH)
        qwh=q_word_h,                                          # (B, S, DH)
        qmask=q_mask[:, None, :],                              # (B, 1, S)
        e_s=e_s,                                               # (B, E)
        Wsteps=params['Wsteps'], bsteps=params['bsteps'],
        rel_w=params['rel_w'], rel_b=params['rel_b'],
        descT=desc_emb.T, subT=sub_oh.T, obj=obj_oh,
        hop_w=params['hop_w'], hop_b=params['hop_b'],
        qcls_w=params['qcls_w'], qcls_b=params['qcls_b'])


# ----------------------- pure-JAX reference (for checking) -------------------
def reference_forward(inp):
    q_e = inp['q_emb'][:, 0]; wh = inp['qwh']; qmask = inp['qmask'][:, 0]
    e_s = inp['e_s']
    desc_emb = inp['descT'].T; sub_oh = inp['subT'].T; obj_oh = inp['obj']
    last_e = e_s
    wa, ep = [], []
    for t in range(T):
        cq = jnp.tanh(q_e @ inp['Wsteps'][t] + inp['bsteps'][t, 0])
        logits = jnp.sum(cq[:, None, :] * wh, axis=2)
        dist = jax.nn.softmax(logits, axis=1) * qmask
        dist = dist / (jnp.sum(dist, axis=1, keepdims=True) + 1e-6)
        wa.append(dist)
        ctx = jnp.einsum('bs,bsh->bh', dist, wh) + cq
        d_logit = jnp.einsum('bh,rh->br', ctx * inp['rel_w'][0], desc_emb) + inp['rel_b'][0, 0]
        d_prob = jax.nn.sigmoid(d_logit)
        act = (last_e > ENT_ACT_THRES).astype(F32).at[:, 0].set(0.0)
        has = (jnp.sum(act, axis=1, keepdims=True) > 0).astype(F32)
        fb = jax.nn.one_hot(jnp.argmax(last_e.at[:, 0].set(-1e30), axis=1), E, dtype=F32)
        ent_act = has * act + (1.0 - has) * fb
        new_e = ((last_e @ sub_oh.T) * d_prob * (ent_act @ sub_oh.T)) @ obj_oh
        m = (new_e > 1.0).astype(F32)
        new_e = new_e / (m * new_e + (1.0 - m))
        ep.append(new_e)
        last_e = new_e
    hop_attn = jax.nn.softmax(q_e @ inp['hop_w'] + inp['hop_b'][0], axis=1)
    hop_res = jnp.stack(ep, axis=1)
    last = jnp.sum(hop_res * hop_attn[:, :, None], axis=1)
    m = (jnp.argmax(hop_attn, axis=1) == 1).astype(F32)[:, None] * e_s
    last = (1.0 - m) * last
    qcls = jax.nn.sigmoid(q_e @ inp['qcls_w'] + inp['qcls_b'][0])
    return last * qcls, jnp.stack(wa, axis=1), hop_res


# ----------------------------------- main ------------------------------------
if __name__ == "__main__":
    key = jax.random.PRNGKey(0)
    k_param, k_q, k_sub, k_obj, k_desc = jax.random.split(key, 5)
    params = init_params(k_param)

    questions = jax.random.randint(k_q, (B, S), 1, NW, dtype=jnp.int32)
    questions = questions.at[:, S - 2:].set(0)               # trailing padding

    e_s = jnp.zeros((B, E), F32).at[0, 3].set(1.0).at[1, 7].set(1.0)

    sub = jnp.concatenate([jnp.array([3, 3, 3, 7, 7, 7], jnp.int32),
                           jax.random.randint(k_sub, (R - 6,), 1, E, dtype=jnp.int32)])
    sub = jnp.sort(sub)
    obj_ids = jax.random.randint(k_obj, (R,), 1, E, dtype=jnp.int32)
    kb_pair = jnp.stack([sub, obj_ids], axis=1)               # (R, 2)
    kb_desc = jax.random.randint(k_desc, (R, L), 1, NW, dtype=jnp.int32)
    kb_desc = kb_desc.at[:, L - 1:].set(0)                    # trailing padding

    inp = prepare_inputs(params, questions, e_s, kb_pair, kb_desc)

    e_score, word_attns, ent_probs = run_transfernet_kernel(inp)
    jax.block_until_ready(e_score)

    ref_score, ref_wa, ref_ep = reference_forward(inp)
    assert jnp.allclose(e_score, ref_score, atol=1e-4, rtol=1e-4)
    assert jnp.allclose(word_attns, ref_wa, atol=1e-4, rtol=1e-4)
    assert jnp.allclose(ent_probs, ref_ep, atol=1e-4, rtol=1e-4)

    print("KERNEL_OK")
</pallas_src>

<mosaic_0001>
module attributes {stable_mosaic.version = 11 : i64} {
  func.func @transfernet_kernel(%arg0: memref<2x1x32xf32, #tpu.memory_space<vmem>>, %arg1: memref<2x8x32xf32, #tpu.memory_space<vmem>>, %arg2: memref<2x1x8xf32, #tpu.memory_space<vmem>>, %arg3: memref<2x16xf32, #tpu.memory_space<vmem>>, %arg4: memref<3x32x32xf32, #tpu.memory_space<vmem>>, %arg5: memref<3x1x32xf32, #tpu.memory_space<vmem>>, %arg6: memref<1x32xf32, #tpu.memory_space<vmem>>, %arg7: memref<1x1xf32, #tpu.memory_space<vmem>>, %arg8: memref<32x24xf32, #tpu.memory_space<vmem>>, %arg9: memref<16x24xf32, #tpu.memory_space<vmem>>, %arg10: memref<24x16xf32, #tpu.memory_space<vmem>>, %arg11: memref<32x3xf32, #tpu.memory_space<vmem>>, %arg12: memref<1x3xf32, #tpu.memory_space<vmem>>, %arg13: memref<32x16xf32, #tpu.memory_space<vmem>>, %arg14: memref<1x16xf32, #tpu.memory_space<vmem>>, %arg15: memref<2x16xf32, #tpu.memory_space<vmem>>, %arg16: memref<2x3x8xf32, #tpu.memory_space<vmem>>, %arg17: memref<3x2x16xf32, #tpu.memory_space<vmem>>) attributes {dimension_semantics = [], scalar_prefetch = 0 : i64, scratch_operands = 0 : i64, tpu.core_type = #tpu.core_type<tc>} {
    %c0 = arith.constant 0 : index
    %c0_0 = arith.constant 0 : index
    %0 = vector.load %arg6[%c0, %c0_0] : memref<1x32xf32, #tpu.memory_space<vmem>>, vector<1x32xf32>
    %c0_1 = arith.constant 0 : index
    %c0_2 = arith.constant 0 : index
    %1 = vector.load %arg7[%c0_1, %c0_2] : memref<1x1xf32, #tpu.memory_space<vmem>>, vector<1x1xf32>
    %c0_3 = arith.constant 0 : index
    %c0_4 = arith.constant 0 : index
    %2 = vector.load %arg8[%c0_3, %c0_4] : memref<32x24xf32, #tpu.memory_space<vmem>>, vector<32x24xf32>
    %c0_5 = arith.constant 0 : index
    %c0_6 = arith.constant 0 : index
    %3 = vector.load %arg9[%c0_5, %c0_6] : memref<16x24xf32, #tpu.memory_space<vmem>>, vector<16x24xf32>
    %c0_7 = arith.constant 0 : index
    %c0_8 = arith.constant 0 : index
    %4 = vector.load %arg10[%c0_7, %c0_8] : memref<24x16xf32, #tpu.memory_space<vmem>>, vector<24x16xf32>
    %c0_9 = arith.constant 0 : index
    %c0_10 = arith.constant 0 : index
    %5 = vector.load %arg3[%c0_9, %c0_10] : memref<2x16xf32, #tpu.memory_space<vmem>>, vector<2x16xf32>
    %c0_11 = arith.constant 0 : index
    %c0_12 = arith.constant 0 : index
    %c0_13 = arith.constant 0 : index
    %6 = vector.load %arg4[%c0_11, %c0_12, %c0_13] : memref<3x32x32xf32, #tpu.memory_space<vmem>>, vector<1x32x32xf32>
    %7 = vector.shape_cast %6 : vector<1x32x32xf32> to vector<32x32xf32>
    %c1 = arith.constant 1 : index
    %c0_14 = arith.constant 0 : index
    %c0_15 = arith.constant 0 : index
    %8 = vector.load %arg4[%c1, %c0_14, %c0_15] : memref<3x32x32xf32, #tpu.memory_space<vmem>>, vector<1x32x32xf32>
    %9 = vector.shape_cast %8 : vector<1x32x32xf32> to vector<32x32xf32>
    %c2 = arith.constant 2 : index
    %c0_16 = arith.constant 0 : index
    %c0_17 = arith.constant 0 : index
    %10 = vector.load %arg4[%c2, %c0_16, %c0_17] : memref<3x32x32xf32, #tpu.memory_space<vmem>>, vector<1x32x32xf32>
    %11 = vector.shape_cast %10 : vector<1x32x32xf32> to vector<32x32xf32>
    %c0_18 = arith.constant 0 : index
    %c0_19 = arith.constant 0 : index
    %c0_20 = arith.constant 0 : index
    %12 = vector.load %arg5[%c0_18, %c0_19, %c0_20] : memref<3x1x32xf32, #tpu.memory_space<vmem>>, vector<1x1x32xf32>
    %13 = vector.shape_cast %12 : vector<1x1x32xf32> to vector<1x32xf32>
    %c1_21 = arith.constant 1 : index
    %c0_22 = arith.constant 0 : index
    %c0_23 = arith.constant 0 : index
    %14 = vector.load %arg5[%c1_21, %c0_22, %c0_23] : memref<3x1x32xf32, #tpu.memory_space<vmem>>, vector<1x1x32xf32>
    %15 = vector.shape_cast %14 : vector<1x1x32xf32> to vector<1x32xf32>
    %c2_24 = arith.constant 2 : index
    %c0_25 = arith.constant 0 : index
    %c0_26 = arith.constant 0 : index
    %16 = vector.load %arg5[%c2_24, %c0_25, %c0_26] : memref<3x1x32xf32, #tpu.memory_space<vmem>>, vector<1x1x32xf32>
    %17 = vector.shape_cast %16 : vector<1x1x32xf32> to vector<1x32xf32>
    %18 = tpu.iota {dimensions = array<i32: 1>} : vector<1x3xi32>
    %c0_i32 = arith.constant 0 : i32
    %19 = vector.broadcast %c0_i32 : i32 to vector<1x3xi32>
    %20 = arith.cmpi eq, %18, %19 : vector<1x3xi32>
    %21 = arith.extui %20 : vector<1x3xi1> to vector<1x3xi32>
    %22 = arith.sitofp %21 : vector<1x3xi32> to vector<1x3xf32>
    %23 = tpu.iota {dimensions = array<i32: 1>} : vector<1x3xi32>
    %c1_i32 = arith.constant 1 : i32
    %24 = vector.broadcast %c1_i32 : i32 to vector<1x3xi32>
    %25 = arith.cmpi eq, %23, %24 : vector<1x3xi32>
    %26 = arith.extui %25 : vector<1x3xi1> to vector<1x3xi32>
    %27 = arith.sitofp %26 : vector<1x3xi32> to vector<1x3xf32>
    %28 = tpu.iota {dimensions = array<i32: 1>} : vector<1x3xi32>
    %c2_i32 = arith.constant 2 : i32
    %29 = vector.broadcast %c2_i32 : i32 to vector<1x3xi32>
    %30 = arith.cmpi eq, %28, %29 : vector<1x3xi32>
    %31 = arith.extui %30 : vector<1x3xi1> to vector<1x3xi32>
    %32 = arith.sitofp %31 : vector<1x3xi32> to vector<1x3xf32>
    %c0_27 = arith.constant 0 : index
    %c0_28 = arith.constant 0 : index
    %c0_29 = arith.constant 0 : index
    %33 = vector.load %arg0[%c0_27, %c0_28, %c0_29] : memref<2x1x32xf32, #tpu.memory_space<vmem>>, vector<1x1x32xf32>
    %34 = vector.shape_cast %33 : vector<1x1x32xf32> to vector<1x32xf32>
    %c0_30 = arith.constant 0 : index
    %c0_31 = arith.constant 0 : index
    %c0_32 = arith.constant 0 : index
    %35 = vector.load %arg1[%c0_30, %c0_31, %c0_32] : memref<2x8x32xf32, #tpu.memory_space<vmem>>, vector<1x8x32xf32>
    %36 = vector.shape_cast %35 : vector<1x8x32xf32> to vector<8x32xf32>
    %c0_33 = arith.constant 0 : index
    %c0_34 = arith.constant 0 : index
    %c0_35 = arith.constant 0 : index
    %37 = vector.load %arg2[%c0_33, %c0_34, %c0_35] : memref<2x1x8xf32, #tpu.memory_space<vmem>>, vector<1x1x8xf32>
    %38 = vector.shape_cast %37 : vector<1x1x8xf32> to vector<1x8xf32>
    %cst = arith.constant dense<0.000000e+00> : vector<1x32xf32>
    %39 = tpu.matmul %34, %7, %cst {dimension_numbers = #tpu.dot_dimension_numbers<[1], [0], [0], [1], [0, 0, 1, 1], [], []>} : vector<1x32xf32>, vector<32x32xf32>, vector<1x32xf32> -> vector<1x32xf32>
    %40 = arith.addf %39, %13 : vector<1x32xf32>
    %41 = math.tanh %40 : vector<1x32xf32>
    %cst_36 = arith.constant dense<0.000000e+00> : vector<1x32xf32>
    %42 = tpu.matmul %34, %9, %cst_36 {dimension_numbers = #tpu.dot_dimension_numbers<[1], [0], [0], [1], [0, 0, 1, 1], [], []>} : vector<1x32xf32>, vector<32x32xf32>, vector<1x32xf32> -> vector<1x32xf32>
    %43 = arith.addf %42, %15 : vector<1x32xf32>
    %44 = math.tanh %43 : vector<1x32xf32>
    %cst_37 = arith.constant dense<0.000000e+00> : vector<1x32xf32>
    %45 = tpu.matmul %34, %11, %cst_37 {dimension_numbers = #tpu.dot_dimension_numbers<[1], [0], [0], [1], [0, 0, 1, 1], [], []>} : vector<1x32xf32>, vector<32x32xf32>, vector<1x32xf32> -> vector<1x32xf32>
    %46 = arith.addf %45, %17 : vector<1x32xf32>
    %47 = math.tanh %46 : vector<1x32xf32>
    %48 = tpu.concatenate %41, %44, %47 in 0 : vector<1x32xf32>, vector<1x32xf32>, vector<1x32xf32> -> vector<3x32xf32>
    %49 = tpu.transpose %36, [1, 0] : vector<8x32xf32> -> vector<32x8xf32>
    %cst_38 = arith.constant dense<0.000000e+00> : vector<3x8xf32>
    %50 = tpu.matmul %48, %49, %cst_38 {dimension_numbers = #tpu.dot_dimension_numbers<[1], [0], [0], [1], [0, 0, 1, 1], [], []>} : vector<3x32xf32>, vector<32x8xf32>, vector<3x8xf32> -> vector<3x8xf32>
    %cst_39 = arith.constant dense<0xFF800000> : vector<3xf32>
    %51 = vector.multi_reduction <maximumf>, %50, %cst_39 [1] : vector<3x8xf32> to vector<3xf32>
    %52 = vector.shape_cast %51 : vector<3xf32> to vector<3x1xf32>
    %53 = vector.broadcast %52 : vector<3x1xf32> to vector<3x8xf32>
    %54 = arith.subf %50, %53 : vector<3x8xf32>
    %55 = math.exp %54 : vector<3x8xf32>
    %cst_40 = arith.constant dense<0.000000e+00> : vector<3xf32>
    %56 = vector.multi_reduction <add>, %55, %cst_40 [1] : vector<3x8xf32> to vector<3xf32>
    %57 = vector.shape_cast %56 : vector<3xf32> to vector<3x1xf32>
    %58 = vector.broadcast %57 : vector<3x1xf32> to vector<3x8xf32>
    %59 = arith.divf %55, %58 : vector<3x8xf32>
    %60 = vector.broadcast %38 : vector<1x8xf32> to vector<3x8xf32>
    %61 = arith.mulf %59, %60 : vector<3x8xf32>
    %cst_41 = arith.constant dense<0.000000e+00> : vector<3xf32>
    %62 = vector.multi_reduction <add>, %61, %cst_41 [1] : vector<3x8xf32> to vector<3xf32>
    %63 = vector.shape_cast %62 : vector<3xf32> to vector<3x1xf32>
    %cst_42 = arith.constant 9.99999997E-7 : f32
    %64 = vector.broadcast %cst_42 : f32 to vector<3x1xf32>
    %65 = arith.addf %63, %64 : vector<3x1xf32>
    %66 = vector.broadcast %65 : vector<3x1xf32> to vector<3x8xf32>
    %67 = arith.divf %61, %66 : vector<3x8xf32>
    %c0_43 = arith.constant 0 : index
    %c0_44 = arith.constant 0 : index
    %c0_45 = arith.constant 0 : index
    %68 = vector.load %arg16[%c0_43, %c0_44, %c0_45] : memref<2x3x8xf32, #tpu.memory_space<vmem>>, vector<1x3x8xf32>
    %69 = vector.shape_cast %68 : vector<1x3x8xf32> to vector<3x8xf32>
    %70 = vector.shape_cast %67 : vector<3x8xf32> to vector<1x3x8xf32>
    tpu.vector_store %arg16[%c0_43, %c0_44, %c0_45], %70 {strides = array<i32>} : memref<2x3x8xf32, #tpu.memory_space<vmem>>, vector<1x3x8xf32>,
    %cst_46 = arith.constant dense<0.000000e+00> : vector<3x32xf32>
    %71 = tpu.matmul %67, %36, %cst_46 {dimension_numbers = #tpu.dot_dimension_numbers<[1], [0], [0], [1], [0, 0, 1, 1], [], []>} : vector<3x8xf32>, vector<8x32xf32>, vector<3x32xf32> -> vector<3x32xf32>
    %72 = arith.addf %71, %48 : vector<3x32xf32>
    %73 = vector.broadcast %0 : vector<1x32xf32> to vector<3x32xf32>
    %74 = arith.mulf %72, %73 : vector<3x32xf32>
    %cst_47 = arith.constant dense<0.000000e+00> : vector<3x24xf32>
    %75 = tpu.matmul %74, %2, %cst_47 {dimension_numbers = #tpu.dot_dimension_numbers<[1], [0], [0], [1], [0, 0, 1, 1], [], []>} : vector<3x32xf32>, vector<32x24xf32>, vector<3x24xf32> -> vector<3x24xf32>
    %76 = vector.broadcast %1 : vector<1x1xf32> to vector<3x24xf32>
    %77 = arith.addf %75, %76 : vector<3x24xf32>
    %78 = arith.negf %77 : vector<3x24xf32>
    %79 = math.exp %78 : vector<3x24xf32>
    %cst_48 = arith.constant 1.000000e+00 : f32
    %80 = vector.broadcast %cst_48 : f32 to vector<3x24xf32>
    %81 = arith.addf %80, %79 : vector<3x24xf32>
    %82 = arith.divf %80, %81 : vector<3x24xf32>
    %c1_49 = arith.constant 1 : index
    %c0_50 = arith.constant 0 : index
    %c0_51 = arith.constant 0 : index
    %83 = vector.load %arg0[%c1_49, %c0_50, %c0_51] : memref<2x1x32xf32, #tpu.memory_space<vmem>>, vector<1x1x32xf32>
    %84 = vector.shape_cast %83 : vector<1x1x32xf32> to vector<1x32xf32>
    %c1_52 = arith.constant 1 : index
    %c0_53 = arith.constant 0 : index
    %c0_54 = arith.constant 0 : index
    %85 = vector.load %arg1[%c1_52, %c0_53, %c0_54] : memref<2x8x32xf32, #tpu.memory_space<vmem>>, vector<1x8x32xf32>
    %86 = vector.shape_cast %85 : vector<1x8x32xf32> to vector<8x32xf32>
    %c1_55 = arith.constant 1 : index
    %c0_56 = arith.constant 0 : index
    %c0_57 = arith.constant 0 : index
    %87 = vector.load %arg2[%c1_55, %c0_56, %c0_57] : memref<2x1x8xf32, #tpu.memory_space<vmem>>, vector<1x1x8xf32>
    %88 = vector.shape_cast %87 : vector<1x1x8xf32> to vector<1x8xf32>
    %cst_58 = arith.constant dense<0.000000e+00> : vector<1x32xf32>
    %89 = tpu.matmul %84, %7, %cst_58 {dimension_numbers = #tpu.dot_dimension_numbers<[1], [0], [0], [1], [0, 0, 1, 1], [], []>} : vector<1x32xf32>, vector<32x32xf32>, vector<1x32xf32> -> vector<1x32xf32>
    %90 = arith.addf %89, %13 : vector<1x32xf32>
    %91 = math.tanh %90 : vector<1x32xf32>
    %cst_59 = arith.constant dense<0.000000e+00> : vector<1x32xf32>
    %92 = tpu.matmul %84, %9, %cst_59 {dimension_numbers = #tpu.dot_dimension_numbers<[1], [0], [0], [1], [0, 0, 1, 1], [], []>} : vector<1x32xf32>, vector<32x32xf32>, vector<1x32xf32> -> vector<1x32xf32>
    %93 = arith.addf %92, %15 : vector<1x32xf32>
    %94 = math.tanh %93 : vector<1x32xf32>
    %cst_60 = arith.constant dense<0.000000e+00> : vector<1x32xf32>
    %95 = tpu.matmul %84, %11, %cst_60 {dimension_numbers = #tpu.dot_dimension_numbers<[1], [0], [0], [1], [0, 0, 1, 1], [], []>} : vector<1x32xf32>, vector<32x32xf32>, vector<1x32xf32> -> vector<1x32xf32>
    %96 = arith.addf %95, %17 : vector<1x32xf32>
    %97 = math.tanh %96 : vector<1x32xf32>
    %98 = tpu.concatenate %91, %94, %97 in 0 : vector<1x32xf32>, vector<1x32xf32>, vector<1x32xf32> -> vector<3x32xf32>
    %99 = tpu.transpose %86, [1, 0] : vector<8x32xf32> -> vector<32x8xf32>
    %cst_61 = arith.constant dense<0.000000e+00> : vector<3x8xf32>
    %100 = tpu.matmul %98, %99, %cst_61 {dimension_numbers = #tpu.dot_dimension_numbers<[1], [0], [0], [1], [0, 0, 1, 1], [], []>} : vector<3x32xf32>, vector<32x8xf32>, vector<3x8xf32> -> vector<3x8xf32>
    %cst_62 = arith.constant dense<0xFF800000> : vector<3xf32>
    %101 = vector.multi_reduction <maximumf>, %100, %cst_62 [1] : vector<3x8xf32> to vector<3xf32>
    %102 = vector.shape_cast %101 : vector<3xf32> to vector<3x1xf32>
    %103 = vector.broadcast %102 : vector<3x1xf32> to vector<3x8xf32>
    %104 = arith.subf %100, %103 : vector<3x8xf32>
    %105 = math.exp %104 : vector<3x8xf32>
    %cst_63 = arith.constant dense<0.000000e+00> : vector<3xf32>
    %106 = vector.multi_reduction <add>, %105, %cst_63 [1] : vector<3x8xf32> to vector<3xf32>
    %107 = vector.shape_cast %106 : vector<3xf32> to vector<3x1xf32>
    %108 = vector.broadcast %107 : vector<3x1xf32> to vector<3x8xf32>
    %109 = arith.divf %105, %108 : vector<3x8xf32>
    %110 = vector.broadcast %88 : vector<1x8xf32> to vector<3x8xf32>
    %111 = arith.mulf %109, %110 : vector<3x8xf32>
    %cst_64 = arith.constant dense<0.000000e+00> : vector<3xf32>
    %112 = vector.multi_reduction <add>, %111, %cst_64 [1] : vector<3x8xf32> to vector<3xf32>
    %113 = vector.shape_cast %112 : vector<3xf32> to vector<3x1xf32>
    %cst_65 = arith.constant 9.99999997E-7 : f32
    %114 = vector.broadcast %cst_65 : f32 to vector<3x1xf32>
    %115 = arith.addf %113, %114 : vector<3x1xf32>
    %116 = vector.broadcast %115 : vector<3x1xf32> to vector<3x8xf32>
    %117 = arith.divf %111, %116 : vector<3x8xf32>
    %c1_66 = arith.constant 1 : index
    %c0_67 = arith.constant 0 : index
    %c0_68 = arith.constant 0 : index
    %118 = vector.load %arg16[%c1_66, %c0_67, %c0_68] : memref<2x3x8xf32, #tpu.memory_space<vmem>>, vector<1x3x8xf32>
    %119 = vector.shape_cast %118 : vector<1x3x8xf32> to vector<3x8xf32>
    %120 = vector.shape_cast %117 : vector<3x8xf32> to vector<1x3x8xf32>
    tpu.vector_store %arg16[%c1_66, %c0_67, %c0_68], %120 {strides = array<i32>} : memref<2x3x8xf32, #tpu.memory_space<vmem>>, vector<1x3x8xf32>,
    %cst_69 = arith.constant dense<0.000000e+00> : vector<3x32xf32>
    %121 = tpu.matmul %117, %86, %cst_69 {dimension_numbers = #tpu.dot_dimension_numbers<[1], [0], [0], [1], [0, 0, 1, 1], [], []>} : vector<3x8xf32>, vector<8x32xf32>, vector<3x32xf32> -> vector<3x32xf32>
    %122 = arith.addf %121, %98 : vector<3x32xf32>
    %123 = vector.broadcast %0 : vector<1x32xf32> to vector<3x32xf32>
    %124 = arith.mulf %122, %123 : vector<3x32xf32>
    %cst_70 = arith.constant dense<0.000000e+00> : vector<3x24xf32>
    %125 = tpu.matmul %124, %2, %cst_70 {dimension_numbers = #tpu.dot_dimension_numbers<[1], [0], [0], [1], [0, 0, 1, 1], [], []>} : vector<3x32xf32>, vector<32x24xf32>, vector<3x24xf32> -> vector<3x24xf32>
    %126 = vector.broadcast %1 : vector<1x1xf32> to vector<3x24xf32>
    %127 = arith.addf %125, %126 : vector<3x24xf32>
    %128 = arith.negf %127 : vector<3x24xf32>
    %129 = math.exp %128 : vector<3x24xf32>
    %cst_71 = arith.constant 1.000000e+00 : f32
    %130 = vector.broadcast %cst_71 : f32 to vector<3x24xf32>
    %131 = arith.addf %130, %129 : vector<3x24xf32>
    %132 = arith.divf %130, %131 : vector<3x24xf32>
    %133 = tpu.concatenate %34, %84 in 0 : vector<1x32xf32>, vector<1x32xf32> -> vector<2x32xf32>
    %cst_72 = arith.constant dense<0.000000e+00> : vector<1x24xf32>
    %134 = tpu.matmul %22, %82, %cst_72 {dimension_numbers = #tpu.dot_dimension_numbers<[1], [0], [0], [1], [0, 0, 1, 1], [], []>} : vector<1x3xf32>, vector<3x24xf32>, vector<1x24xf32> -> vector<1x24xf32>
    %cst_73 = arith.constant dense<0.000000e+00> : vector<1x24xf32>
    %135 = tpu.matmul %22, %132, %cst_73 {dimension_numbers = #tpu.dot_dimension_numbers<[1], [0], [0], [1], [0, 0, 1, 1], [], []>} : vector<1x3xf32>, vector<3x24xf32>, vector<1x24xf32> -> vector<1x24xf32>
    %136 = tpu.concatenate %134, %135 in 0 : vector<1x24xf32>, vector<1x24xf32> -> vector<2x24xf32>
    %cst_74 = arith.constant dense<0.000000e+00> : vector<1x24xf32>
    %137 = tpu.matmul %27, %82, %cst_74 {dimension_numbers = #tpu.dot_dimension_numbers<[1], [0], [0], [1], [0, 0, 1, 1], [], []>} : vector<1x3xf32>, vector<3x24xf32>, vector<1x24xf32> -> vector<1x24xf32>
    %cst_75 = arith.constant dense<0.000000e+00> : vector<1x24xf32>
    %138 = tpu.matmul %27, %132, %cst_75 {dimension_numbers = #tpu.dot_dimension_numbers<[1], [0], [0], [1], [0, 0, 1, 1], [], []>} : vector<1x3xf32>, vector<3x24xf32>, vector<1x24xf32> -> vector<1x24xf32>
    %139 = tpu.concatenate %137, %138 in 0 : vector<1x24xf32>, vector<1x24xf32> -> vector<2x24xf32>
    %cst_76 = arith.constant dense<0.000000e+00> : vector<1x24xf32>
    %140 = tpu.matmul %32, %82, %cst_76 {dimension_numbers = #tpu.dot_dimension_numbers<[1], [0], [0], [1], [0, 0, 1, 1], [], []>} : vector<1x3xf32>, vector<3x24xf32>, vector<1x24xf32> -> vector<1x24xf32>
    %cst_77 = arith.constant dense<0.000000e+00> : vector<1x24xf32>
    %141 = tpu.matmul %32, %132, %cst_77 {dimension_numbers = #tpu.dot_dimension_numbers<[1], [0], [0], [1], [0, 0, 1, 1], [], []>} : vector<1x3xf32>, vector<3x24xf32>, vector<1x24xf32> -> vector<1x24xf32>
    %142 = tpu.concatenate %140, %141 in 0 : vector<1x24xf32>, vector<1x24xf32> -> vector<2x24xf32>
    %143 = tpu.iota {dimensions = array<i32: 1>} : vector<2x16xi32>
    %cst_78 = arith.constant 0.699999988 : f32
    %144 = vector.broadcast %cst_78 : f32 to vector<2x16xf32>
    %145 = arith.cmpf ogt, %5, %144 : vector<2x16xf32>
    %146 = arith.extui %145 : vector<2x16xi1> to vector<2x16xi32>
    %147 = arith.sitofp %146 : vector<2x16xi32> to vector<2x16xf32>
    %c0_i32_79 = arith.constant 0 : i32
    %148 = vector.broadcast %c0_i32_79 : i32 to vector<2x16xi32>
    %149 = arith.cmpi eq, %143, %148 : vector<2x16xi32>
    %cst_80 = arith.constant 0.000000e+00 : f32
    %150 = vector.broadcast %cst_80 : f32 to vector<2x16xf32>
    %151 = arith.select %149, %150, %147 : vector<2x16xi1>, vector<2x16xf32>
    %cst_81 = arith.constant dense<0.000000e+00> : vector<2xf32>
    %152 = vector.multi_reduction <add>, %151, %cst_81 [1] : vector<2x16xf32> to vector<2xf32>
    %153 = vector.shape_cast %152 : vector<2xf32> to vector<2x1xf32>
    %cst_82 = arith.constant 0.000000e+00 : f32
    %154 = vector.broadcast %cst_82 : f32 to vector<2x1xf32>
    %155 = arith.cmpf ogt, %153, %154 : vector<2x1xf32>
    %156 = arith.extui %155 : vector<2x1xi1> to vector<2x1xi32>
    %157 = arith.sitofp %156 : vector<2x1xi32> to vector<2x1xf32>
    %c0_i32_83 = arith.constant 0 : i32
    %158 = vector.broadcast %c0_i32_83 : i32 to vector<2x16xi32>
    %159 = arith.cmpi eq, %143, %158 : vector<2x16xi32>
    %cst_84 = arith.constant -1.000000e+30 : f32
    %160 = vector.broadcast %cst_84 : f32 to vector<2x16xf32>
    %161 = arith.select %159, %160, %5 : vector<2x16xi1>, vector<2x16xf32>
    %cst_85 = arith.constant dense<0xFF800000> : vector<2xf32>
    %162 = vector.multi_reduction <maximumf>, %161, %cst_85 [1] : vector<2x16xf32> to vector<2xf32>
    %163 = vector.shape_cast %162 : vector<2xf32> to vector<2x1xf32>
    %164 = vector.broadcast %163 : vector<2x1xf32> to vector<2x16xf32>
    %165 = arith.cmpf oge, %161, %164 : vector<2x16xf32>
    %c1073741824_i32 = arith.constant 1073741824 : i32
    %166 = vector.broadcast %c1073741824_i32 : i32 to vector<2x16xi32>
    %167 = arith.select %165, %143, %166 : vector<2x16xi1>, vector<2x16xi32>
    %cst_86 = arith.constant dense<2147483647> : vector<2xi32>
    %168 = vector.multi_reduction <minsi>, %167, %cst_86 [1] : vector<2x16xi32> to vector<2xi32>
    %169 = vector.shape_cast %168 : vector<2xi32> to vector<2x1xi32>
    %170 = vector.broadcast %169 : vector<2x1xi32> to vector<2x16xi32>
    %171 = arith.cmpi eq, %143, %170 : vector<2x16xi32>
    %172 = arith.extui %171 : vector<2x16xi1> to vector<2x16xi32>
    %173 = arith.sitofp %172 : vector<2x16xi32> to vector<2x16xf32>
    %174 = vector.broadcast %157 : vector<2x1xf32> to vector<2x16xf32>
    %175 = arith.mulf %174, %151 : vector<2x16xf32>
    %cst_87 = arith.constant 1.000000e+00 : f32
    %176 = vector.broadcast %cst_87 : f32 to vector<2x1xf32>
    %177 = arith.subf %176, %157 : vector<2x1xf32>
    %178 = vector.broadcast %177 : vector<2x1xf32> to vector<2x16xf32>
    %179 = arith.mulf %178, %173 : vector<2x16xf32>
    %180 = arith.addf %175, %179 : vector<2x16xf32>
    %cst_88 = arith.constant dense<0.000000e+00> : vector<2x24xf32>
    %181 = tpu.matmul %5, %3, %cst_88 {dimension_numbers = #tpu.dot_dimension_numbers<[1], [0], [0], [1], [0, 0, 1, 1], [], []>} : vector<2x16xf32>, vector<16x24xf32>, vector<2x24xf32> -> vector<2x24xf32>
    %cst_89 = arith.constant dense<0.000000e+00> : vector<2x24xf32>
    %182 = tpu.matmul %180, %3, %cst_89 {dimension_numbers = #tpu.dot_dimension_numbers<[1], [0], [0], [1], [0, 0, 1, 1], [], []>} : vector<2x16xf32>, vector<16x24xf32>, vector<2x24xf32> -> vector<2x24xf32>
    %183 = arith.mulf %181, %136 : vector<2x24xf32>
    %184 = arith.mulf %183, %182 : vector<2x24xf32>
    %cst_90 = arith.constant dense<0.000000e+00> : vector<2x16xf32>
    %185 = tpu.matmul %184, %4, %cst_90 {dimension_numbers = #tpu.dot_dimension_numbers<[1], [0], [0], [1], [0, 0, 1, 1], [], []>} : vector<2x24xf32>, vector<24x16xf32>, vector<2x16xf32> -> vector<2x16xf32>
    %cst_91 = arith.constant 1.000000e+00 : f32
    %186 = vector.broadcast %cst_91 : f32 to vector<2x16xf32>
    %187 = arith.cmpf ogt, %185, %186 : vector<2x16xf32>
    %188 = arith.extui %187 : vector<2x16xi1> to vector<2x16xi32>
    %189 = arith.sitofp %188 : vector<2x16xi32> to vector<2x16xf32>
    %190 = arith.mulf %189, %185 : vector<2x16xf32>
    %cst_92 = arith.constant 1.000000e+00 : f32
    %191 = vector.broadcast %cst_92 : f32 to vector<2x16xf32>
    %192 = arith.subf %191, %189 : vector<2x16xf32>
    %193 = arith.addf %190, %192 : vector<2x16xf32>
    %194 = arith.divf %185, %193 : vector<2x16xf32>
    %c0_93 = arith.constant 0 : index
    %c0_94 = arith.constant 0 : index
    %c0_95 = arith.constant 0 : index
    %195 = vector.load %arg17[%c0_93, %c0_94, %c0_95] : memref<3x2x16xf32, #tpu.memory_space<vmem>>, vector<1x2x16xf32>
    %196 = vector.shape_cast %195 : vector<1x2x16xf32> to vector<2x16xf32>
    %197 = vector.shape_cast %194 : vector<2x16xf32> to vector<1x2x16xf32>
    tpu.vector_store %arg17[%c0_93, %c0_94, %c0_95], %197 {strides = array<i32>} : memref<3x2x16xf32, #tpu.memory_space<vmem>>, vector<1x2x16xf32>,
    %cst_96 = arith.constant 0.699999988 : f32
    %198 = vector.broadcast %cst_96 : f32 to vector<2x16xf32>
    %199 = arith.cmpf ogt, %194, %198 : vector<2x16xf32>
    %200 = arith.extui %199 : vector<2x16xi1> to vector<2x16xi32>
    %201 = arith.sitofp %200 : vector<2x16xi32> to vector<2x16xf32>
    %c0_i32_97 = arith.constant 0 : i32
    %202 = vector.broadcast %c0_i32_97 : i32 to vector<2x16xi32>
    %203 = arith.cmpi eq, %143, %202 : vector<2x16xi32>
    %cst_98 = arith.constant 0.000000e+00 : f32
    %204 = vector.broadcast %cst_98 : f32 to vector<2x16xf32>
    %205 = arith.select %203, %204, %201 : vector<2x16xi1>, vector<2x16xf32>
    %cst_99 = arith.constant dense<0.000000e+00> : vector<2xf32>
    %206 = vector.multi_reduction <add>, %205, %cst_99 [1] : vector<2x16xf32> to vector<2xf32>
    %207 = vector.shape_cast %206 : vector<2xf32> to vector<2x1xf32>
    %cst_100 = arith.constant 0.000000e+00 : f32
    %208 = vector.broadcast %cst_100 : f32 to vector<2x1xf32>
    %209 = arith.cmpf ogt, %207, %208 : vector<2x1xf32>
    %210 = arith.extui %209 : vector<2x1xi1> to vector<2x1xi32>
    %211 = arith.sitofp %210 : vector<2x1xi32> to vector<2x1xf32>
    %c0_i32_101 = arith.constant 0 : i32
    %212 = vector.broadcast %c0_i32_101 : i32 to vector<2x16xi32>
    %213 = arith.cmpi eq, %143, %212 : vector<2x16xi32>
    %cst_102 = arith.constant -1.000000e+30 : f32
    %214 = vector.broadcast %cst_102 : f32 to vector<2x16xf32>
    %215 = arith.select %213, %214, %194 : vector<2x16xi1>, vector<2x16xf32>
    %cst_103 = arith.constant dense<0xFF800000> : vector<2xf32>
    %216 = vector.multi_reduction <maximumf>, %215, %cst_103 [1] : vector<2x16xf32> to vector<2xf32>
    %217 = vector.shape_cast %216 : vector<2xf32> to vector<2x1xf32>
    %218 = vector.broadcast %217 : vector<2x1xf32> to vector<2x16xf32>
    %219 = arith.cmpf oge, %215, %218 : vector<2x16xf32>
    %c1073741824_i32_104 = arith.constant 1073741824 : i32
    %220 = vector.broadcast %c1073741824_i32_104 : i32 to vector<2x16xi32>
    %221 = arith.select %219, %143, %220 : vector<2x16xi1>, vector<2x16xi32>
    %cst_105 = arith.constant dense<2147483647> : vector<2xi32>
    %222 = vector.multi_reduction <minsi>, %221, %cst_105 [1] : vector<2x16xi32> to vector<2xi32>
    %223 = vector.shape_cast %222 : vector<2xi32> to vector<2x1xi32>
    %224 = vector.broadcast %223 : vector<2x1xi32> to vector<2x16xi32>
    %225 = arith.cmpi eq, %143, %224 : vector<2x16xi32>
    %226 = arith.extui %225 : vector<2x16xi1> to vector<2x16xi32>
    %227 = arith.sitofp %226 : vector<2x16xi32> to vector<2x16xf32>
    %228 = vector.broadcast %211 : vector<2x1xf32> to vector<2x16xf32>
    %229 = arith.mulf %228, %205 : vector<2x16xf32>
    %cst_106 = arith.constant 1.000000e+00 : f32
    %230 = vector.broadcast %cst_106 : f32 to vector<2x1xf32>
    %231 = arith.subf %230, %211 : vector<2x1xf32>
    %232 = vector.broadcast %231 : vector<2x1xf32> to vector<2x16xf32>
    %233 = arith.mulf %232, %227 : vector<2x16xf32>
    %234 = arith.addf %229, %233 : vector<2x16xf32>
    %cst_107 = arith.constant dense<0.000000e+00> : vector<2x24xf32>
    %235 = tpu.matmul %194, %3, %cst_107 {dimension_numbers = #tpu.dot_dimension_numbers<[1], [0], [0], [1], [0, 0, 1, 1], [], []>} : vector<2x16xf32>, vector<16x24xf32>, vector<2x24xf32> -> vector<2x24xf32>
    %cst_108 = arith.constant dense<0.000000e+00> : vector<2x24xf32>
    %236 = tpu.matmul %234, %3, %cst_108 {dimension_numbers = #tpu.dot_dimension_numbers<[1], [0], [0], [1], [0, 0, 1, 1], [], []>} : vector<2x16xf32>, vector<16x24xf32>, vector<2x24xf32> -> vector<2x24xf32>
    %237 = arith.mulf %235, %139 : vector<2x24xf32>
    %238 = arith.mulf %237, %236 : vector<2x24xf32>
    %cst_109 = arith.constant dense<0.000000e+00> : vector<2x16xf32>
    %239 = tpu.matmul %238, %4, %cst_109 {dimension_numbers = #tpu.dot_dimension_numbers<[1], [0], [0], [1], [0, 0, 1, 1], [], []>} : vector<2x24xf32>, vector<24x16xf32>, vector<2x16xf32> -> vector<2x16xf32>
    %cst_110 = arith.constant 1.000000e+00 : f32
    %240 = vector.broadcast %cst_110 : f32 to vector<2x16xf32>
    %241 = arith.cmpf ogt, %239, %240 : vector<2x16xf32>
    %242 = arith.extui %241 : vector<2x16xi1> to vector<2x16xi32>
    %243 = arith.sitofp %242 : vector<2x16xi32> to vector<2x16xf32>
    %244 = arith.mulf %243, %239 : vector<2x16xf32>
    %cst_111 = arith.constant 1.000000e+00 : f32
    %245 = vector.broadcast %cst_111 : f32 to vector<2x16xf32>
    %246 = arith.subf %245, %243 : vector<2x16xf32>
    %247 = arith.addf %244, %246 : vector<2x16xf32>
    %248 = arith.divf %239, %247 : vector<2x16xf32>
    %c1_112 = arith.constant 1 : index
    %c0_113 = arith.constant 0 : index
    %c0_114 = arith.constant 0 : index
    %249 = vector.load %arg17[%c1_112, %c0_113, %c0_114] : memref<3x2x16xf32, #tpu.memory_space<vmem>>, vector<1x2x16xf32>
    %250 = vector.shape_cast %249 : vector<1x2x16xf32> to vector<2x16xf32>
    %251 = vector.shape_cast %248 : vector<2x16xf32> to vector<1x2x16xf32>
    tpu.vector_store %arg17[%c1_112, %c0_113, %c0_114], %251 {strides = array<i32>} : memref<3x2x16xf32, #tpu.memory_space<vmem>>, vector<1x2x16xf32>,
    %cst_115 = arith.constant 0.699999988 : f32
    %252 = vector.broadcast %cst_115 : f32 to vector<2x16xf32>
    %253 = arith.cmpf ogt, %248, %252 : vector<2x16xf32>
    %254 = arith.extui %253 : vector<2x16xi1> to vector<2x16xi32>
    %255 = arith.sitofp %254 : vector<2x16xi32> to vector<2x16xf32>
    %c0_i32_116 = arith.constant 0 : i32
    %256 = vector.broadcast %c0_i32_116 : i32 to vector<2x16xi32>
    %257 = arith.cmpi eq, %143, %256 : vector<2x16xi32>
    %cst_117 = arith.constant 0.000000e+00 : f32
    %258 = vector.broadcast %cst_117 : f32 to vector<2x16xf32>
    %259 = arith.select %257, %258, %255 : vector<2x16xi1>, vector<2x16xf32>
    %cst_118 = arith.constant dense<0.000000e+00> : vector<2xf32>
    %260 = vector.multi_reduction <add>, %259, %cst_118 [1] : vector<2x16xf32> to vector<2xf32>
    %261 = vector.shape_cast %260 : vector<2xf32> to vector<2x1xf32>
    %cst_119 = arith.constant 0.000000e+00 : f32
    %262 = vector.broadcast %cst_119 : f32 to vector<2x1xf32>
    %263 = arith.cmpf ogt, %261, %262 : vector<2x1xf32>
    %264 = arith.extui %263 : vector<2x1xi1> to vector<2x1xi32>
    %265 = arith.sitofp %264 : vector<2x1xi32> to vector<2x1xf32>
    %c0_i32_120 = arith.constant 0 : i32
    %266 = vector.broadcast %c0_i32_120 : i32 to vector<2x16xi32>
    %267 = arith.cmpi eq, %143, %266 : vector<2x16xi32>
    %cst_121 = arith.constant -1.000000e+30 : f32
    %268 = vector.broadcast %cst_121 : f32 to vector<2x16xf32>
    %269 = arith.select %267, %268, %248 : vector<2x16xi1>, vector<2x16xf32>
    %cst_122 = arith.constant dense<0xFF800000> : vector<2xf32>
    %270 = vector.multi_reduction <maximumf>, %269, %cst_122 [1] : vector<2x16xf32> to vector<2xf32>
    %271 = vector.shape_cast %270 : vector<2xf32> to vector<2x1xf32>
    %272 = vector.broadcast %271 : vector<2x1xf32> to vector<2x16xf32>
    %273 = arith.cmpf oge, %269, %272 : vector<2x16xf32>
    %c1073741824_i32_123 = arith.constant 1073741824 : i32
    %274 = vector.broadcast %c1073741824_i32_123 : i32 to vector<2x16xi32>
    %275 = arith.select %273, %143, %274 : vector<2x16xi1>, vector<2x16xi32>
    %cst_124 = arith.constant dense<2147483647> : vector<2xi32>
    %276 = vector.multi_reduction <minsi>, %275, %cst_124 [1] : vector<2x16xi32> to vector<2xi32>
    %277 = vector.shape_cast %276 : vector<2xi32> to vector<2x1xi32>
    %278 = vector.broadcast %277 : vector<2x1xi32> to vector<2x16xi32>
    %279 = arith.cmpi eq, %143, %278 : vector<2x16xi32>
    %280 = arith.extui %279 : vector<2x16xi1> to vector<2x16xi32>
    %281 = arith.sitofp %280 : vector<2x16xi32> to vector<2x16xf32>
    %282 = vector.broadcast %265 : vector<2x1xf32> to vector<2x16xf32>
    %283 = arith.mulf %282, %259 : vector<2x16xf32>
    %cst_125 = arith.constant 1.000000e+00 : f32
    %284 = vector.broadcast %cst_125 : f32 to vector<2x1xf32>
    %285 = arith.subf %284, %265 : vector<2x1xf32>
    %286 = vector.broadcast %285 : vector<2x1xf32> to vector<2x16xf32>
    %287 = arith.mulf %286, %281 : vector<2x16xf32>
    %288 = arith.addf %283, %287 : vector<2x16xf32>
    %cst_126 = arith.constant dense<0.000000e+00> : vector<2x24xf32>
    %289 = tpu.matmul %248, %3, %cst_126 {dimension_numbers = #tpu.dot_dimension_numbers<[1], [0], [0], [1], [0, 0, 1, 1], [], []>} : vector<2x16xf32>, vector<16x24xf32>, vector<2x24xf32> -> vector<2x24xf32>
    %cst_127 = arith.constant dense<0.000000e+00> : vector<2x24xf32>
    %290 = tpu.matmul %288, %3, %cst_127 {dimension_numbers = #tpu.dot_dimension_numbers<[1], [0], [0], [1], [0, 0, 1, 1], [], []>} : vector<2x16xf32>, vector<16x24xf32>, vector<2x24xf32> -> vector<2x24xf32>
    %291 = arith.mulf %289, %142 : vector<2x24xf32>
    %292 = arith.mulf %291, %290 : vector<2x24xf32>
    %cst_128 = arith.constant dense<0.000000e+00> : vector<2x16xf32>
    %293 = tpu.matmul %292, %4, %cst_128 {dimension_numbers = #tpu.dot_dimension_numbers<[1], [0], [0], [1], [0, 0, 1, 1], [], []>} : vector<2x24xf32>, vector<24x16xf32>, vector<2x16xf32> -> vector<2x16xf32>
    %cst_129 = arith.constant 1.000000e+00 : f32
    %294 = vector.broadcast %cst_129 : f32 to vector<2x16xf32>
    %295 = arith.cmpf ogt, %293, %294 : vector<2x16xf32>
    %296 = arith.extui %295 : vector<2x16xi1> to vector<2x16xi32>
    %297 = arith.sitofp %296 : vector<2x16xi32> to vector<2x16xf32>
    %298 = arith.mulf %297, %293 : vector<2x16xf32>
    %cst_130 = arith.constant 1.000000e+00 : f32
    %299 = vector.broadcast %cst_130 : f32 to vector<2x16xf32>
    %300 = arith.subf %299, %297 : vector<2x16xf32>
    %301 = arith.addf %298, %300 : vector<2x16xf32>
    %302 = arith.divf %293, %301 : vector<2x16xf32>
    %c2_131 = arith.constant 2 : index
    %c0_132 = arith.constant 0 : index
    %c0_133 = arith.constant 0 : index
    %303 = vector.load %arg17[%c2_131, %c0_132, %c0_133] : memref<3x2x16xf32, #tpu.memory_space<vmem>>, vector<1x2x16xf32>
    %304 = vector.shape_cast %303 : vector<1x2x16xf32> to vector<2x16xf32>
    %305 = vector.shape_cast %302 : vector<2x16xf32> to vector<1x2x16xf32>
    tpu.vector_store %arg17[%c2_131, %c0_132, %c0_133], %305 {strides = array<i32>} : memref<3x2x16xf32, #tpu.memory_space<vmem>>, vector<1x2x16xf32>,
    %c0_134 = arith.constant 0 : index
    %c0_135 = arith.constant 0 : index
    %306 = vector.load %arg11[%c0_134, %c0_135] : memref<32x3xf32, #tpu.memory_space<vmem>>, vector<32x3xf32>
    %cst_136 = arith.constant dense<0.000000e+00> : vector<2x3xf32>
    %307 = tpu.matmul %133, %306, %cst_136 {dimension_numbers = #tpu.dot_dimension_numbers<[1], [0], [0], [1], [0, 0, 1, 1], [], []>} : vector<2x32xf32>, vector<32x3xf32>, vector<2x3xf32> -> vector<2x3xf32>
    %c0_137 = arith.constant 0 : index
    %c0_138 = arith.constant 0 : index
    %308 = vector.load %arg12[%c0_137, %c0_138] : memref<1x3xf32, #tpu.memory_space<vmem>>, vector<1x3xf32>
    %309 = vector.broadcast %308 : vector<1x3xf32> to vector<2x3xf32>
    %310 = arith.addf %307, %309 : vector<2x3xf32>
    %cst_139 = arith.constant dense<0xFF800000> : vector<2xf32>
    %311 = vector.multi_reduction <maximumf>, %310, %cst_139 [1] : vector<2x3xf32> to vector<2xf32>
    %312 = vector.shape_cast %311 : vector<2xf32> to vector<2x1xf32>
    %313 = vector.broadcast %312 : vector<2x1xf32> to vector<2x3xf32>
    %314 = arith.subf %310, %313 : vector<2x3xf32>
    %315 = math.exp %314 : vector<2x3xf32>
    %cst_140 = arith.constant dense<0.000000e+00> : vector<2xf32>
    %316 = vector.multi_reduction <add>, %315, %cst_140 [1] : vector<2x3xf32> to vector<2xf32>
    %317 = vector.shape_cast %316 : vector<2xf32> to vector<2x1xf32>
    %318 = vector.broadcast %317 : vector<2x1xf32> to vector<2x3xf32>
    %319 = arith.divf %315, %318 : vector<2x3xf32>
    %320 = tpu.iota {dimensions = array<i32: 1>} : vector<2x3xi32>
    %cst_141 = arith.constant 0.000000e+00 : f32
    %321 = vector.broadcast %cst_141 : f32 to vector<2x16xf32>
    %c0_i32_142 = arith.constant 0 : i32
    %322 = vector.broadcast %c0_i32_142 : i32 to vector<2x3xi32>
    %323 = arith.cmpi eq, %320, %322 : vector<2x3xi32>
    %cst_143 = arith.constant 0.000000e+00 : f32
    %324 = vector.broadcast %cst_143 : f32 to vector<2x3xf32>
    %325 = arith.select %323, %319, %324 : vector<2x3xi1>, vector<2x3xf32>
    %cst_144 = arith.constant dense<0.000000e+00> : vector<2xf32>
    %326 = vector.multi_reduction <add>, %325, %cst_144 [1] : vector<2x3xf32> to vector<2xf32>
    %327 = vector.shape_cast %326 : vector<2xf32> to vector<2x1xf32>
    %328 = vector.broadcast %327 : vector<2x1xf32> to vector<2x16xf32>
    %329 = arith.mulf %328, %194 : vector<2x16xf32>
    %330 = arith.addf %321, %329 : vector<2x16xf32>
    %c1_i32_145 = arith.constant 1 : i32
    %331 = vector.broadcast %c1_i32_145 : i32 to vector<2x3xi32>
    %332 = arith.cmpi eq, %320, %331 : vector<2x3xi32>
    %cst_146 = arith.constant 0.000000e+00 : f32
    %333 = vector.broadcast %cst_146 : f32 to vector<2x3xf32>
    %334 = arith.select %332, %319, %333 : vector<2x3xi1>, vector<2x3xf32>
    %cst_147 = arith.constant dense<0.000000e+00> : vector<2xf32>
    %335 = vector.multi_reduction <add>, %334, %cst_147 [1] : vector<2x3xf32> to vector<2xf32>
    %336 = vector.shape_cast %335 : vector<2xf32> to vector<2x1xf32>
    %337 = vector.broadcast %336 : vector<2x1xf32> to vector<2x16xf32>
    %338 = arith.mulf %337, %248 : vector<2x16xf32>
    %339 = arith.addf %330, %338 : vector<2x16xf32>
    %c2_i32_148 = arith.constant 2 : i32
    %340 = vector.broadcast %c2_i32_148 : i32 to vector<2x3xi32>
    %341 = arith.cmpi eq, %320, %340 : vector<2x3xi32>
    %cst_149 = arith.constant 0.000000e+00 : f32
    %342 = vector.broadcast %cst_149 : f32 to vector<2x3xf32>
    %343 = arith.select %341, %319, %342 : vector<2x3xi1>, vector<2x3xf32>
    %cst_150 = arith.constant dense<0.000000e+00> : vector<2xf32>
    %344 = vector.multi_reduction <add>, %343, %cst_150 [1] : vector<2x3xf32> to vector<2xf32>
    %345 = vector.shape_cast %344 : vector<2xf32> to vector<2x1xf32>
    %346 = vector.broadcast %345 : vector<2x1xf32> to vector<2x16xf32>
    %347 = arith.mulf %346, %302 : vector<2x16xf32>
    %348 = arith.addf %339, %347 : vector<2x16xf32>
    %cst_151 = arith.constant dense<0xFF800000> : vector<2xf32>
    %349 = vector.multi_reduction <maximumf>, %319, %cst_151 [1] : vector<2x3xf32> to vector<2xf32>
    %350 = vector.shape_cast %349 : vector<2xf32> to vector<2x1xf32>
    %351 = vector.broadcast %350 : vector<2x1xf32> to vector<2x3xf32>
    %352 = arith.cmpf oge, %319, %351 : vector<2x3xf32>
    %c1073741824_i32_152 = arith.constant 1073741824 : i32
    %353 = vector.broadcast %c1073741824_i32_152 : i32 to vector<2x3xi32>
    %354 = arith.select %352, %320, %353 : vector<2x3xi1>, vector<2x3xi32>
    %cst_153 = arith.constant dense<2147483647> : vector<2xi32>
    %355 = vector.multi_reduction <minsi>, %354, %cst_153 [1] : vector<2x3xi32> to vector<2xi32>
    %356 = vector.shape_cast %355 : vector<2xi32> to vector<2x1xi32>
    %c1_i32_154 = arith.constant 1 : i32
    %357 = vector.broadcast %c1_i32_154 : i32 to vector<2x1xi32>
    %358 = arith.cmpi eq, %356, %357 : vector<2x1xi32>
    %359 = arith.extui %358 : vector<2x1xi1> to vector<2x1xi32>
    %360 = arith.sitofp %359 : vector<2x1xi32> to vector<2x1xf32>
    %361 = vector.broadcast %360 : vector<2x1xf32> to vector<2x16xf32>
    %362 = arith.mulf %361, %5 : vector<2x16xf32>
    %cst_155 = arith.constant 1.000000e+00 : f32
    %363 = vector.broadcast %cst_155 : f32 to vector<2x16xf32>
    %364 = arith.subf %363, %362 : vector<2x16xf32>
    %365 = arith.mulf %364, %348 : vector<2x16xf32>
    %c0_156 = arith.constant 0 : index
    %c0_157 = arith.constant 0 : index
    %366 = vector.load %arg13[%c0_156, %c0_157] : memref<32x16xf32, #tpu.memory_space<vmem>>, vector<32x16xf32>
    %cst_158 = arith.constant dense<0.000000e+00> : vector<2x16xf32>
    %367 = tpu.matmul %133, %366, %cst_158 {dimension_numbers = #tpu.dot_dimension_numbers<[1], [0], [0], [1], [0, 0, 1, 1], [], []>} : vector<2x32xf32>, vector<32x16xf32>, vector<2x16xf32> -> vector<2x16xf32>
    %c0_159 = arith.constant 0 : index
    %c0_160 = arith.constant 0 : index
    %368 = vector.load %arg14[%c0_159, %c0_160] : memref<1x16xf32, #tpu.memory_space<vmem>>, vector<1x16xf32>
    %369 = vector.broadcast %368 : vector<1x16xf32> to vector<2x16xf32>
    %370 = arith.addf %367, %369 : vector<2x16xf32>
    %371 = arith.negf %370 : vector<2x16xf32>
    %372 = math.exp %371 : vector<2x16xf32>
    %cst_161 = arith.constant 1.000000e+00 : f32
    %373 = vector.broadcast %cst_161 : f32 to vector<2x16xf32>
    %374 = arith.addf %373, %372 : vector<2x16xf32>
    %375 = arith.divf %373, %374 : vector<2x16xf32>
    %376 = arith.mulf %365, %375 : vector<2x16xf32>
    %c0_162 = arith.constant 0 : index
    %c0_163 = arith.constant 0 : index
    %377 = vector.load %arg15[%c0_162, %c0_163] : memref<2x16xf32, #tpu.memory_space<vmem>>, vector<2x16xf32>
    tpu.vector_store %arg15[%c0_162, %c0_163], %376 {strides = array<i32>} : memref<2x16xf32, #tpu.memory_space<vmem>>, vector<2x16xf32>,
    return
  }
}

</mosaic_0001>

<llo_original>
// kernel: tpu_custom_call.1
$region0: #{tpu_custom_call.1}
  #allocation0 [shape = 'u32[]', space=smem, size = 0x4, offset = 0x4, fixed_abs, tag = 'smem constant byte address 0x4 - core index']
  #allocation1 [shape = 'u32[144,128]{1,0:T(1,128)}', space=vmem, size = 0x12000, scoped, tag = 'internal scratch']
  #allocation2 [shape = 'f32[1,1]{1,0:T(1,128)S(1)}', space=vmem, size = 0x200, scoped, tag = 'scoped memory for tpu_custom_call.1']
  %s0 = inlined_call_operand.vmem [shape: f32[2,1,32], index: 0, kind: input, shape index: {}]
  %s1 = inlined_call_operand.vmem [shape: f32[2,8,32], index: 1, kind: input, shape index: {}]
  %s2 = inlined_call_operand.vmem [shape: f32[2,1,8], index: 2, kind: input, shape index: {}]
  %s3 = inlined_call_operand.vmem [shape: f32[2,16], index: 3, kind: input, shape index: {}]
  %s4 = inlined_call_operand.vmem [shape: f32[3,32,32], index: 4, kind: input, shape index: {}]
  %s5 = inlined_call_operand.vmem [shape: f32[3,1,32], index: 5, kind: input, shape index: {}]
  %s6 = inlined_call_operand.vmem [shape: f32[1,32], index: 6, kind: input, shape index: {}]
  %s7 = inlined_call_operand.<no memory space> [shape: f32[1,1], index: 7, kind: input, shape index: {}]
  %s8 = inlined_call_operand.vmem [shape: f32[32,24], index: 8, kind: input, shape index: {}]
  %s9 = inlined_call_operand.vmem [shape: f32[16,24], index: 9, kind: input, shape index: {}]
  %s10 = inlined_call_operand.vmem [shape: f32[24,16], index: 10, kind: input, shape index: {}]
  %s11 = inlined_call_operand.vmem [shape: f32[32,3], index: 11, kind: input, shape index: {}]
  %s12 = inlined_call_operand.vmem [shape: f32[1,3], index: 12, kind: input, shape index: {}]
  %s13 = inlined_call_operand.vmem [shape: f32[32,16], index: 13, kind: input, shape index: {}]
  %s14 = inlined_call_operand.vmem [shape: f32[1,16], index: 14, kind: input, shape index: {}]
  %s15 = inlined_call_operand.hbm [shape: f32[2,16], index: 15, kind: output, shape index: {0}]
  %s16 = inlined_call_operand.vmem [shape: f32[2,3,8], index: 16, kind: output, shape index: {1}]
  %s17 = inlined_call_operand.hbm [shape: f32[3,2,16], index: 17, kind: output, shape index: {2}]
  %18 = xla_tuple %s15, %s16, %s17
  %s19 = sld [smem:[#allocation0]]
  $region86: #{tpu_custom_call.1} parent=0
    _
  %s21 = ssub.s32 1, %s19
  %s22 = scalar_select 0, %s21, %s19
  %v23 = vstv %s7
  %24 = vst [vmem:[#allocation2] sm:$0x1] %v23
  $region1: #{tpu_custom_call.1} parent=0
    #allocation3 [shape = 'u8[1024]{0}', space=vmem, size = 0x400, scoped, tag = 'output window, operand 0, single buffered']
    #allocation4 [shape = 's32[1]{0}', space=sflag, size = 0x4, scoped, tag = 'scoped memory for tpu_custom_call.1']
    #allocation5 [shape = 'u8[3072]{0}', space=vmem, size = 0xc00, scoped, tag = 'output window, operand 2, single buffered']
    #allocation6 [shape = 's32[1]{0}', space=sflag, size = 0x4, scoped, tag = 'scoped memory for tpu_custom_call.1']
    %25 = vsyncpa [#allocation4], 0
    %26 = vsyncpa [#allocation6], 0
    // Predicated region
    $region2: #{tpu_custom_call.1} parent=1 // pred_check
      _
    $region3: #{tpu_custom_call.1} parent=1 // pred_check_branch
      %28 = sbr.rel (0) target = $region5
    $region4: #{tpu_custom_call.1} parent=1 // pred_region
      _
    $region5: #{tpu_custom_call.1} parent=1 // pred_fallthru
      _
    // Predicated region
    $region6: #{tpu_custom_call.1} parent=1 // pred_check
      _
    $region7: #{tpu_custom_call.1} parent=1 // pred_check_branch
      %30 = sbr.rel (0) target = $region9
    $region8: #{tpu_custom_call.1} parent=1 // pred_region
      _
    $region9: #{tpu_custom_call.1} parent=1 // pred_fallthru
      _
    // Predicated region
    $region10: #{tpu_custom_call.1} parent=1 // pred_check
      _
    $region11: #{tpu_custom_call.1} parent=1 // pred_check_branch
      %32 = sbr.rel (0) target = $region13
    $region12: #{tpu_custom_call.1} parent=1 // pred_region
      _
    $region13: #{tpu_custom_call.1} parent=1 // pred_fallthru
      _
    // Predicated region
    $region14: #{tpu_custom_call.1} parent=1 // pred_check
      _
    $region15: #{tpu_custom_call.1} parent=1 // pred_check_branch
      %34 = sbr.rel (0) target = $region17
    $region16: #{tpu_custom_call.1} parent=1 // pred_region
      _
    $region17: #{tpu_custom_call.1} parent=1 // pred_fallthru
      _
    // Predicated region
    $region18: #{tpu_custom_call.1} parent=1 // pred_check
      _
    $region19: #{tpu_custom_call.1} parent=1 // pred_check_branch
      %36 = sbr.rel (0) target = $region21
    $region20: #{tpu_custom_call.1} parent=1 // pred_region
      _
    $region21: #{tpu_custom_call.1} parent=1 // pred_fallthru
      _
    // Predicated region
    $region22: #{tpu_custom_call.1} parent=1 // pred_check
      _
    $region23: #{tpu_custom_call.1} parent=1 // pred_check_branch
      %38 = sbr.rel (0) target = $region25
    $region24: #{tpu_custom_call.1} parent=1 // pred_region
      _
    $region25: #{tpu_custom_call.1} parent=1 // pred_fallthru
      _
    // Predicated region
    $region26: #{tpu_custom_call.1} parent=1 // pred_check
      _
    $region27: #{tpu_custom_call.1} parent=1 // pred_check_branch
      %40 = sbr.rel (0) target = $region29
    $region28: #{tpu_custom_call.1} parent=1 // pred_region
      _
    $region29: #{tpu_custom_call.1} parent=1 // pred_fallthru
      _
    // Predicated region
    $region30: #{tpu_custom_call.1} parent=1 // pred_check
      _
    $region31: #{tpu_custom_call.1} parent=1 // pred_check_branch
      %42 = sbr.rel (0) target = $region33
    $region32: #{tpu_custom_call.1} parent=1 // pred_region
      _
    $region33: #{tpu_custom_call.1} parent=1 // pred_fallthru
      _
    // Predicated region
    $region34: #{tpu_custom_call.1} parent=1 // pred_check
      _
    $region35: #{tpu_custom_call.1} parent=1 // pred_check_branch
      %44 = sbr.rel (0) target = $region37
    $region36: #{tpu_custom_call.1} parent=1 // pred_region
      _
    $region37: #{tpu_custom_call.1} parent=1 // pred_fallthru
      _
    // Predicated region
    $region38: #{tpu_custom_call.1} parent=1 // pred_check
      _
    $region39: #{tpu_custom_call.1} parent=1 // pred_check_branch
      %46 = sbr.rel (0) target = $region41
    $region40: #{tpu_custom_call.1} parent=1 // pred_region
      _
    $region41: #{tpu_custom_call.1} parent=1 // pred_fallthru
      _
    // Predicated region
    $region42: #{tpu_custom_call.1} parent=1 // pred_check
      _
    $region43: #{tpu_custom_call.1} parent=1 // pred_check_branch
      %48 = sbr.rel (0) target = $region45
    $region44: #{tpu_custom_call.1} parent=1 // pred_region
      _
    $region45: #{tpu_custom_call.1} parent=1 // pred_fallthru
      _
    // Predicated region
    $region46: #{tpu_custom_call.1} parent=1 // pred_check
      _
    $region47: #{tpu_custom_call.1} parent=1 // pred_check_branch
      %50 = sbr.rel (0) target = $region49
    $region48: #{tpu_custom_call.1} parent=1 // pred_region
      _
    $region49: #{tpu_custom_call.1} parent=1 // pred_fallthru
      _
    // Predicated region
    $region50: #{tpu_custom_call.1} parent=1 // pred_check
      _
    $region51: #{tpu_custom_call.1} parent=1 // pred_check_branch
      %52 = sbr.rel (0) target = $region53
    $region52: #{tpu_custom_call.1} parent=1 // pred_region
      _
    $region53: #{tpu_custom_call.1} parent=1 // pred_fallthru
      _
    // Predicated region
    $region54: #{tpu_custom_call.1} parent=1 // pred_check
      _
    $region55: #{tpu_custom_call.1} parent=1 // pred_check_branch
      %54 = sbr.rel (0) target = $region57
    $region56: #{tpu_custom_call.1} parent=1 // pred_region
      _
    $region57: #{tpu_custom_call.1} parent=1 // pred_fallthru
      _
    // Predicated region
    $region58: #{tpu_custom_call.1} parent=1 // pred_check
      _
    $region59: #{tpu_custom_call.1} parent=1 // pred_check_branch
      %56 = sbr.rel (0) target = $region61
    $region60: #{tpu_custom_call.1} parent=1 // pred_region
      _
    $region61: #{tpu_custom_call.1} parent=1 // pred_fallthru
      _
    %v57 = vld [vmem:[%s6] sm:$0x1]
    %v58 = vld [vmem:[#allocation2] sm:$0x1]
    %v59 = vld [vmem:[%s8] sm:$0xff]
    %v60 = vld [vmem:[%s8 + $0x8] sm:$0xff]
    %v61 = vld [vmem:[%s8 + $0x10] sm:$0xff]
    %v62 = vld [vmem:[%s8 + $0x18] sm:$0xff]
    %v63 = vld [vmem:[%s9] sm:$0xff]
    %v64 = vld [vmem:[%s9 + $0x8] sm:$0xff]
    %v65 = vld [vmem:[%s10] sm:$0xff]
    %v66 = vld [vmem:[%s10 + $0x8] sm:$0xff]
    %v67 = vld [vmem:[%s10 + $0x10] sm:$0xff]
    %v68 = vld [vmem:[%s3] sm:$0x3]
    %v69 = vld [vmem:[%s4] sm:$0xff]
    %v70 = vld [vmem:[%s4 + $0x8] sm:$0xff]
    %v71 = vld [vmem:[%s4 + $0x10] sm:$0xff]
    %v72 = vld [vmem:[%s4 + $0x18] sm:$0xff]
    %s73 = scalar_lea.vmem %s4, 32
    %v74 = vld [vmem:[%s73] sm:$0xff]
    %v75 = vld [vmem:[%s73 + $0x8] sm:$0xff]
    %v76 = vld [vmem:[%s73 + $0x10] sm:$0xff]
    %v77 = vld [vmem:[%s73 + $0x18] sm:$0xff]
    %s78 = scalar_lea.vmem %s4, 64
    %v79 = vld [vmem:[%s78] sm:$0xff]
    %v80 = vld [vmem:[%s78 + $0x8] sm:$0xff]
    %v81 = vld [vmem:[%s78 + $0x10] sm:$0xff]
    %v82 = vld [vmem:[%s78 + $0x18] sm:$0xff]
    %v83 = vld [vmem:[%s5] sm:$0x1]
    %s84 = scalar_lea.vmem %s5, 1
    %v85 = vld [vmem:[%s84] sm:$0x1]
    %s86 = scalar_lea.vmem %s5, 2
    %v87 = vld [vmem:[%s86] sm:$0x1]
    %v88 = vlaneseq
    %v89 = vand.u32 %v88, 127
    %vm90 = vcmp.eq.s32.totalorder %v89, 0
    %v91 = vsel %vm90, 1, 0
    %v92 = vcvt.s32.f32 %v91
    %vm93 = vcmp.eq.s32.totalorder %v89, 1
    %v94 = vsel %vm93, 1, 0
    %v95 = vcvt.s32.f32 %v94
    %vm96 = vcmp.eq.s32.totalorder %v89, 2
    %v97 = vsel %vm96, 1, 0
    %v98 = vcvt.s32.f32 %v97
    %v99 = vld [vmem:[%s0] sm:$0x1]
    %v100 = vld [vmem:[%s1] sm:$0xff]
    %v101 = vld [vmem:[%s2] sm:$0x1]
    %vm102 = vcmask 261120
    %v104 = vsel %vm102, %v99, 0
    %106 = vmatprep.subr.mxu0 0.0
    %107 = vmatpush1.msra.mxu0 0.0
    %108 = vmatprep.subr.mxu0 0.0
    %109 = vmatpush1.msra.mxu0 0.0
    %110 = vmatprep.subr.mxu0 0.0
    %111 = vmatpush1.msra.mxu0 0.0
    %112 = vmatprep.subr.mxu0 0.0
    %113 = vmatpush1.msra.mxu0 0.0
    %114 = vmatprep.subr.mxu0 0.0
    %115 = vmatpush1.msra.mxu0 0.0
    %116 = vmatprep.subr.mxu0 0.0
    %117 = vmatpush1.msra.mxu0 0.0
    %118 = vmatprep.subr.mxu0 0.0
    %119 = vmatpush1.msra.mxu0 0.0
    %120 = vmatprep.subr.mxu0 0.0
    %121 = vmatpush1.msra.mxu0 0.0
    %122 = vmatprep.subr.mxu0 0.0
    %123 = vmatpush1.msra.mxu0 0.0
    %124 = vmatprep.subr.mxu0 0.0
    %125 = vmatpush1.msra.mxu0 0.0
    %126 = vmatprep.subr.mxu0 0.0
    %127 = vmatpush1.msra.mxu0 0.0
    %128 = vmatprep.subr.mxu0 0.0
    %129 = vmatpush1.msra.mxu0 0.0
    %130 = vmatprep.subr.mxu0 0.0
    %131 = vmatpush1.msra.mxu0 %v72
    %132 = vmatprep.subr.mxu0 0.0
    %133 = vmatpush1.msra.mxu0 %v71
    %134 = vmatprep.subr.mxu0 0.0
    %135 = vmatpush1.msra.mxu0 %v70
    %136 = vmatprep.subr.mxu0 0.0
    %137 = vmatpush1.msra.mxu0 %v69
    %138 = vmatprep.subr.mxu0 0.0
    %139 = vmatpush2.msra.mxu0 0.0
    %140 = vmatprep.subr.mxu0 0.0
    %141 = vmatpush2.msra.mxu0 0.0
    %142 = vmatprep.subr.mxu0 0.0
    %143 = vmatpush2.msra.mxu0 0.0
    %144 = vmatprep.subr.mxu0 0.0
    %145 = vmatpush2.msra.mxu0 0.0
    %146 = vmatprep.subr.mxu0 0.0
    %147 = vmatpush2.msra.mxu0 0.0
    %148 = vmatprep.subr.mxu0 0.0
    %149 = vmatpush2.msra.mxu0 0.0
    %150 = vmatprep.subr.mxu0 0.0
    %151 = vmatpush2.msra.mxu0 0.0
    %152 = vmatprep.subr.mxu0 0.0
    %153 = vmatpush2.msra.mxu0 0.0
    %154 = vmatprep.subr.mxu0 0.0
    %155 = vmatpush2.msra.mxu0 0.0
    %156 = vmatprep.subr.mxu0 0.0
    %157 = vmatpush2.msra.mxu0 0.0
    %158 = vmatprep.subr.mxu0 0.0
    %159 = vmatpush2.msra.mxu0 0.0
    %160 = vmatprep.subr.mxu0 0.0
    %161 = vmatpush2.msra.mxu0 0.0
    %162 = vmatprep.subr.mxu0 0.0
    %163 = vmatpush2.msra.mxu0 0.0
    %164 = vmatprep.subr.mxu0 0.0
    %165 = vmatpush2.msra.mxu0 0.0
    %166 = vmatprep.subr.mxu0 0.0
    %167 = vmatpush2.msra.mxu0 0.0
    %168 = vmatprep.subr.mxu0 0.0
    %169 = vmatpush2.msra.mxu0 0.0
    %170 = vmatprep.mubr.f32.mxu0 0.0
    %171 = vmatmul.mubr.f32.gmra.mxu0 %v104
    %v172 = vpop.f32.mrf.mxu0
    %v173 = vadd.f32 %v83, %v172
    %v174 = vpop.f32.mrf.mxu0
    %175 = vdwg.mxu0
    %v176 = vtanh.pop %v173
    %177 = vmatprep.subr.mxu0 0.0
    %178 = vmatpush1.msra.mxu0 0.0
    %179 = vmatprep.subr.mxu0 0.0
    %180 = vmatpush1.msra.mxu0 0.0
    %181 = vmatprep.subr.mxu0 0.0
    %182 = vmatpush1.msra.mxu0 0.0
    %183 = vmatprep.subr.mxu0 0.0
    %184 = vmatpush1.msra.mxu0 0.0
    %185 = vmatprep.subr.mxu0 0.0
    %186 = vmatpush1.msra.mxu0 0.0
    %187 = vmatprep.subr.mxu0 0.0
    %188 = vmatpush1.msra.mxu0 0.0
    %189 = vmatprep.subr.mxu0 0.0
    %190 = vmatpush1.msra.mxu0 0.0
    %191 = vmatprep.subr.mxu0 0.0
    %192 = vmatpush1.msra.mxu0 0.0
    %193 = vmatprep.subr.mxu0 0.0
    %194 = vmatpush1.msra.mxu0 0.0
    %195 = vmatprep.subr.mxu0 0.0
    %196 = vmatpush1.msra.mxu0 0.0
    %197 = vmatprep.subr.mxu0 0.0
    %198 = vmatpush1.msra.mxu0 0.0
    %199 = vmatprep.subr.mxu0 0.0
    %200 = vmatpush1.msra.mxu0 0.0
    %201 = vmatprep.subr.mxu0 0.0
    %202 = vmatpush1.msra.mxu0 %v77
    %203 = vmatprep.subr.mxu0 0.0
    %204 = vmatpush1.msra.mxu0 %v76
    %205 = vmatprep.subr.mxu0 0.0
    %206 = vmatpush1.msra.mxu0 %v75
    %207 = vmatprep.subr.mxu0 0.0
    %208 = vmatpush1.msra.mxu0 %v74
    %209 = vmatprep.subr.mxu0 0.0
    %210 = vmatpush2.msra.mxu0 0.0
    %211 = vmatprep.subr.mxu0 0.0
    %212 = vmatpush2.msra.mxu0 0.0
    %213 = vmatprep.subr.mxu0 0.0
    %214 = vmatpush2.msra.mxu0 0.0
    %215 = vmatprep.subr.mxu0 0.0
    %216 = vmatpush2.msra.mxu0 0.0
    %217 = vmatprep.subr.mxu0 0.0
    %218 = vmatpush2.msra.mxu0 0.0
    %219 = vmatprep.subr.mxu0 0.0
    %220 = vmatpush2.msra.mxu0 0.0
    %221 = vmatprep.subr.mxu0 0.0
    %222 = vmatpush2.msra.mxu0 0.0
    %223 = vmatprep.subr.mxu0 0.0
    %224 = vmatpush2.msra.mxu0 0.0
    %225 = vmatprep.subr.mxu0 0.0
    %226 = vmatpush2.msra.mxu0 0.0
    %227 = vmatprep.subr.mxu0 0.0
    %228 = vmatpush2.msra.mxu0 0.0
    %229 = vmatprep.subr.mxu0 0.0
    %230 = vmatpush2.msra.mxu0 0.0
    %231 = vmatprep.subr.mxu0 0.0
    %232 = vmatpush2.msra.mxu0 0.0
    %233 = vmatprep.subr.mxu0 0.0
    %234 = vmatpush2.msra.mxu0 0.0
    %235 = vmatprep.subr.mxu0 0.0
    %236 = vmatpush2.msra.mxu0 0.0
    %237 = vmatprep.subr.mxu0 0.0
    %238 = vmatpush2.msra.mxu0 0.0
    %239 = vmatprep.subr.mxu0 0.0
    %240 = vmatpush2.msra.mxu0 0.0
    %241 = vmatprep.mubr.f32.mxu0 0.0
    %242 = vmatmul.mubr.f32.gmra.mxu0 %v104
    %v243 = vpop.f32.mrf.mxu0
    %v244 = vadd.f32 %v85, %v243
    %v245 = vpop.f32.mrf.mxu0
    %246 = vdwg.mxu0
    %v247 = vtanh.pop %v244
    %248 = vmatprep.subr.mxu0 0.0
    %249 = vmatpush1.msra.mxu0 0.0
    %250 = vmatprep.subr.mxu0 0.0
    %251 = vmatpush1.msra.mxu0 0.0
    %252 = vmatprep.subr.mxu0 0.0
    %253 = vmatpush1.msra.mxu0 0.0
    %254 = vmatprep.subr.mxu0 0.0
    %255 = vmatpush1.msra.mxu0 0.0
    %256 = vmatprep.subr.mxu0 0.0
    %257 = vmatpush1.msra.mxu0 0.0
    %258 = vmatprep.subr.mxu0 0.0
    %259 = vmatpush1.msra.mxu0 0.0
    %260 = vmatprep.subr.mxu0 0.0
    %261 = vmatpush1.msra.mxu0 0.0
    %262 = vmatprep.subr.mxu0 0.0
    %263 = vmatpush1.msra.mxu0 0.0
    %264 = vmatprep.subr.mxu0 0.0
    %265 = vmatpush1.msra.mxu0 0.0
    %266 = vmatprep.subr.mxu0 0.0
    %267 = vmatpush1.msra.mxu0 0.0
    %268 = vmatprep.subr.mxu0 0.0
    %269 = vmatpush1.msra.mxu0 0.0
    %270 = vmatprep.subr.mxu0 0.0
    %271 = vmatpush1.msra.mxu0 0.0
    %272 = vmatprep.subr.mxu0 0.0
    %273 = vmatpush1.msra.mxu0 %v82
    %274 = vmatprep.subr.mxu0 0.0
    %275 = vmatpush1.msra.mxu0 %v81
    %276 = vmatprep.subr.mxu0 0.0
    %277 = vmatpush1.msra.mxu0 %v80
    %278 = vmatprep.subr.mxu0 0.0
    %279 = vmatpush1.msra.mxu0 %v79
    %280 = vmatprep.subr.mxu0 0.0
    %281 = vmatpush2.msra.mxu0 0.0
    %282 = vmatprep.subr.mxu0 0.0
    %283 = vmatpush2.msra.mxu0 0.0
    %284 = vmatprep.subr.mxu0 0.0
    %285 = vmatpush2.msra.mxu0 0.0
    %286 = vmatprep.subr.mxu0 0.0
    %287 = vmatpush2.msra.mxu0 0.0
    %288 = vmatprep.subr.mxu0 0.0
    %289 = vmatpush2.msra.mxu0 0.0
    %290 = vmatprep.subr.mxu0 0.0
    %291 = vmatpush2.msra.mxu0 0.0
    %292 = vmatprep.subr.mxu0 0.0
    %293 = vmatpush2.msra.mxu0 0.0
    %294 = vmatprep.subr.mxu0 0.0
    %295 = vmatpush2.msra.mxu0 0.0
    %296 = vmatprep.subr.mxu0 0.0
    %297 = vmatpush2.msra.mxu0 0.0
    %298 = vmatprep.subr.mxu0 0.0
    %299 = vmatpush2.msra.mxu0 0.0
    %300 = vmatprep.subr.mxu0 0.0
    %301 = vmatpush2.msra.mxu0 0.0
    %302 = vmatprep.subr.mxu0 0.0
    %303 = vmatpush2.msra.mxu0 0.0
    %304 = vmatprep.subr.mxu0 0.0
    %305 = vmatpush2.msra.mxu0 0.0
    %306 = vmatprep.subr.mxu0 0.0
    %307 = vmatpush2.msra.mxu0 0.0
    %308 = vmatprep.subr.mxu0 0.0
    %309 = vmatpush2.msra.mxu0 0.0
    %310 = vmatprep.subr.mxu0 0.0
    %311 = vmatpush2.msra.mxu0 0.0
    %312 = vmatprep.mubr.f32.mxu0 0.0
    %313 = vmatmul.mubr.f32.gmra.mxu0 %v104
    %v314 = vpop.f32.mrf.mxu0
    %v315 = vadd.f32 %v87, %v314
    %v316 = vpop.f32.mrf.mxu0
    %317 = vdwg.mxu0
    %v318 = vtanh.pop %v315
    %v320 = vrot.slane %v247, 7
    %v323 = vrot.slane %v318, 6
    %vm325 = vcmask 1040384
    %v326 = vsel %vm325, %v176, %v320
    %vm327 = vcmask 1041408
    %v328 = vsel %vm327, %v326, %v323
    %v330 = vsel %vm102, %v328, 0
    %v333 = vsel %vm102, %v100, 0
    %335 = vmatprep.subr.mxu0 0.0
    %336 = vmatpush1.xpose.msra.mxu0 0.0
    %337 = vmatprep.subr.mxu0 0.0
    %338 = vmatpush1.xpose.msra.mxu0 0.0
    %339 = vmatprep.subr.mxu0 0.0
    %340 = vmatpush1.xpose.msra.mxu0 0.0
    %341 = vmatprep.subr.mxu0 0.0
    %342 = vmatpush1.xpose.msra.mxu0 0.0
    %343 = vmatprep.subr.mxu0 0.0
    %344 = vmatpush1.xpose.msra.mxu0 0.0
    %345 = vmatprep.subr.mxu0 0.0
    %346 = vmatpush1.xpose.msra.mxu0 0.0
    %347 = vmatprep.subr.mxu0 0.0
    %348 = vmatpush1.xpose.msra.mxu0 0.0
    %349 = vmatprep.subr.mxu0 0.0
    %350 = vmatpush1.xpose.msra.mxu0 0.0
    %351 = vmatprep.subr.mxu0 0.0
    %352 = vmatpush1.xpose.msra.mxu0 0.0
    %353 = vmatprep.subr.mxu0 0.0
    %354 = vmatpush1.xpose.msra.mxu0 0.0
    %355 = vmatprep.subr.mxu0 0.0
    %356 = vmatpush1.xpose.msra.mxu0 0.0
    %357 = vmatprep.subr.mxu0 0.0
    %358 = vmatpush1.xpose.msra.mxu0 0.0
    %359 = vmatprep.subr.mxu0 0.0
    %360 = vmatpush1.xpose.msra.mxu0 0.0
    %361 = vmatprep.subr.mxu0 0.0
    %362 = vmatpush1.xpose.msra.mxu0 0.0
    %363 = vmatprep.subr.mxu0 0.0
    %364 = vmatpush1.xpose.msra.mxu0 0.0
    %365 = vmatprep.subr.mxu0 0.0
    %366 = vmatpush1.xpose.msra.mxu0 %v333
    %367 = vmatprep.subr.mxu0 0.0
    %368 = vmatpush2.xpose.msra.mxu0 0.0
    %369 = vmatprep.subr.mxu0 0.0
    %370 = vmatpush2.xpose.msra.mxu0 0.0
    %371 = vmatprep.subr.mxu0 0.0
    %372 = vmatpush2.xpose.msra.mxu0 0.0
    %373 = vmatprep.subr.mxu0 0.0
    %374 = vmatpush2.xpose.msra.mxu0 0.0
    %375 = vmatprep.subr.mxu0 0.0
    %376 = vmatpush2.xpose.msra.mxu0 0.0
    %377 = vmatprep.subr.mxu0 0.0
    %378 = vmatpush2.xpose.msra.mxu0 0.0
    %379 = vmatprep.subr.mxu0 0.0
    %380 = vmatpush2.xpose.msra.mxu0 0.0
    %381 = vmatprep.subr.mxu0 0.0
    %382 = vmatpush2.xpose.msra.mxu0 0.0
    %383 = vmatprep.subr.mxu0 0.0
    %384 = vmatpush2.xpose.msra.mxu0 0.0
    %385 = vmatprep.subr.mxu0 0.0
    %386 = vmatpush2.xpose.msra.mxu0 0.0
    %387 = vmatprep.subr.mxu0 0.0
    %388 = vmatpush2.xpose.msra.mxu0 0.0
    %389 = vmatprep.subr.mxu0 0.0
    %390 = vmatpush2.xpose.msra.mxu0 0.0
    %391 = vmatprep.subr.mxu0 0.0
    %392 = vmatpush2.xpose.msra.mxu0 0.0
    %393 = vmatprep.subr.mxu0 0.0
    %394 = vmatpush2.xpose.msra.mxu0 0.0
    %395 = vmatprep.subr.mxu0 0.0
    %396 = vmatpush2.xpose.msra.mxu0 0.0
    %397 = vmatprep.subr.mxu0 0.0
    %398 = vmatpush2.xpose.msra.mxu0 0.0
    %399 = vmatprep.mubr.f32.mxu0 0.0
    %400 = vmatmul.mubr.f32.gmra.mxu0 %v330
    %v401 = vpop.f32.mrf.mxu0
    %v402 = vadd.f32 0.0, %v401
    %v403 = vpop.f32.mrf.mxu0
    %404 = vdwg.mxu0
    %vm405 = vcmask 59392
    %v406 = vsel %vm405, %v402, -inf
    %407 = vmax.xlane.f32.xlu0 %v406
    %v408 = vpop.xlane.xlu0 %407
    %v409 = vsub.f32 %v402, %v408
    %v410 = vmul.f32 %v409, 1.442695
    %v411 = vpow.pop %v410
    %v412 = vsel %vm405, %v411, 0.0
    %413 = vadd.xlane.f32.xlu0 %v412
    %v414 = vpop.xlane.xlu0 %413
    %v415 = vrcp.pop %v414
    %v416 = vmul.f32 %v411, %v415
    %v418 = vlaneseq
    %v419 = vshrl.u32 %v418, 7
    %v420 = vsub.s32 0, %v419
    %v421 = vrot.slane %v101, %v420
    %v423 = vmul.f32 %v416, %v421
    %v424 = vsel %vm405, %v423, 0.0
    %425 = vadd.xlane.f32.xlu0 %v424
    %v426 = vpop.xlane.xlu0 %425
    %v427 = vadd.f32 %v426, 1e-06
    %v428 = vrcp.pop %v427
    %v429 = vmul.f32 %v423, %v428
    %430 = vst.msk [vmem:[%s16] sm:$0x7] %vm405, %v429
    %vm431 = vcmask 64512
    %v433 = vsel %vm431, %v429, 0
    %435 = vmatprep.subr.mxu0 0.0
    %436 = vmatpush1.msra.mxu0 0.0
    %437 = vmatprep.subr.mxu0 0.0
    %438 = vmatpush1.msra.mxu0 0.0
    %439 = vmatprep.subr.mxu0 0.0
    %440 = vmatpush1.msra.mxu0 0.0
    %441 = vmatprep.subr.mxu0 0.0
    %442 = vmatpush1.msra.mxu0 0.0
    %443 = vmatprep.subr.mxu0 0.0
    %444 = vmatpush1.msra.mxu0 0.0
    %445 = vmatprep.subr.mxu0 0.0
    %446 = vmatpush1.msra.mxu0 0.0
    %447 = vmatprep.subr.mxu0 0.0
    %448 = vmatpush1.msra.mxu0 0.0
    %449 = vmatprep.subr.mxu0 0.0
    %450 = vmatpush1.msra.mxu0 0.0
    %451 = vmatprep.subr.mxu0 0.0
    %452 = vmatpush1.msra.mxu0 0.0
    %453 = vmatprep.subr.mxu0 0.0
    %454 = vmatpush1.msra.mxu0 0.0
    %455 = vmatprep.subr.mxu0 0.0
    %456 = vmatpush1.msra.mxu0 0.0
    %457 = vmatprep.subr.mxu0 0.0
    %458 = vmatpush1.msra.mxu0 0.0
    %459 = vmatprep.subr.mxu0 0.0
    %460 = vmatpush1.msra.mxu0 0.0
    %461 = vmatprep.subr.mxu0 0.0
    %462 = vmatpush1.msra.mxu0 0.0
    %463 = vmatprep.subr.mxu0 0.0
    %464 = vmatpush1.msra.mxu0 0.0
    %465 = vmatprep.subr.mxu0 0.0
    %466 = vmatpush1.msra.mxu0 %v100
    %467 = vmatprep.subr.mxu0 0.0
    %468 = vmatpush2.msra.mxu0 0.0
    %469 = vmatprep.subr.mxu0 0.0
    %470 = vmatpush2.msra.mxu0 0.0
    %471 = vmatprep.subr.mxu0 0.0
    %472 = vmatpush2.msra.mxu0 0.0
    %473 = vmatprep.subr.mxu0 0.0
    %474 = vmatpush2.msra.mxu0 0.0
    %475 = vmatprep.subr.mxu0 0.0
    %476 = vmatpush2.msra.mxu0 0.0
    %477 = vmatprep.subr.mxu0 0.0
    %478 = vmatpush2.msra.mxu0 0.0
    %479 = vmatprep.subr.mxu0 0.0
    %480 = vmatpush2.msra.mxu0 0.0
    %481 = vmatprep.subr.mxu0 0.0
    %482 = vmatpush2.msra.mxu0 0.0
    %483 = vmatprep.subr.mxu0 0.0
    %484 = vmatpush2.msra.mxu0 0.0
    %485 = vmatprep.subr.mxu0 0.0
    %486 = vmatpush2.msra.mxu0 0.0
    %487 = vmatprep.subr.mxu0 0.0
    %488 = vmatpush2.msra.mxu0 0.0
    %489 = vmatprep.subr.mxu0 0.0
    %490 = vmatpush2.msra.mxu0 0.0
    %491 = vmatprep.subr.mxu0 0.0
    %492 = vmatpush2.msra.mxu0 0.0
    %493 = vmatprep.subr.mxu0 0.0
    %494 = vmatpush2.msra.mxu0 0.0
    %495 = vmatprep.subr.mxu0 0.0
    %496 = vmatpush2.msra.mxu0 0.0
    %497 = vmatprep.subr.mxu0 0.0
    %498 = vmatpush2.msra.mxu0 0.0
    %499 = vmatprep.mubr.f32.mxu0 0.0
    %500 = vmatmul.mubr.f32.gmra.mxu0 %v433
    %v501 = vpop.f32.mrf.mxu0
    %v502 = vadd.f32 %v328, %v501
    %v503 = vpop.f32.mrf.mxu0
    %504 = vdwg.mxu0
    %v506 = vlaneseq
    %v507 = vshrl.u32 %v506, 7
    %v508 = vsub.s32 0, %v507
    %v509 = vrot.slane %v57, %v508
    %v511 = vmul.f32 %v502, %v509
    %v513 = vlaneseq
    %v514 = vshrl.u32 %v513, 7
    %v515 = vsub.s32 0, %v514
    %v516 = vrot.slane %v58, %v515
    %517 = vset.pattern.permute.xlu0 0
    %518 = vperm.xlu0 %517, %v516
    %v519 = vpop.permute.xlu0 %518
    %v522 = vsel %vm102, %v511, 0
    %524 = vmatprep.subr.mxu0 0.0
    %525 = vmatpush1.msra.mxu0 0.0
    %526 = vmatprep.subr.mxu0 0.0
    %527 = vmatpush1.msra.mxu0 0.0
    %528 = vmatprep.subr.mxu0 0.0
    %529 = vmatpush1.msra.mxu0 0.0
    %530 = vmatprep.subr.mxu0 0.0
    %531 = vmatpush1.msra.mxu0 0.0
    %532 = vmatprep.subr.mxu0 0.0
    %533 = vmatpush1.msra.mxu0 0.0
    %534 = vmatprep.subr.mxu0 0.0
    %535 = vmatpush1.msra.mxu0 0.0
    %536 = vmatprep.subr.mxu0 0.0
    %537 = vmatpush1.msra.mxu0 0.0
    %538 = vmatprep.subr.mxu0 0.0
    %539 = vmatpush1.msra.mxu0 0.0
    %540 = vmatprep.subr.mxu0 0.0
    %541 = vmatpush1.msra.mxu0 0.0
    %542 = vmatprep.subr.mxu0 0.0
    %543 = vmatpush1.msra.mxu0 0.0
    %544 = vmatprep.subr.mxu0 0.0
    %545 = vmatpush1.msra.mxu0 0.0
    %546 = vmatprep.subr.mxu0 0.0
    %547 = vmatpush1.msra.mxu0 0.0
    %548 = vmatprep.subr.mxu0 0.0
    %549 = vmatpush1.msra.mxu0 %v62
    %550 = vmatprep.subr.mxu0 0.0
    %551 = vmatpush1.msra.mxu0 %v61
    %552 = vmatprep.subr.mxu0 0.0
    %553 = vmatpush1.msra.mxu0 %v60
    %554 = vmatprep.subr.mxu0 0.0
    %555 = vmatpush1.msra.mxu0 %v59
    %556 = vmatprep.subr.mxu0 0.0
    %557 = vmatpush2.msra.mxu0 0.0
    %558 = vmatprep.subr.mxu0 0.0
    %559 = vmatpush2.msra.mxu0 0.0
    %560 = vmatprep.subr.mxu0 0.0
    %561 = vmatpush2.msra.mxu0 0.0
    %562 = vmatprep.subr.mxu0 0.0
    %563 = vmatpush2.msra.mxu0 0.0
    %564 = vmatprep.subr.mxu0 0.0
    %565 = vmatpush2.msra.mxu0 0.0
    %566 = vmatprep.subr.mxu0 0.0
    %567 = vmatpush2.msra.mxu0 0.0
    %568 = vmatprep.subr.mxu0 0.0
    %569 = vmatpush2.msra.mxu0 0.0
    %570 = vmatprep.subr.mxu0 0.0
    %571 = vmatpush2.msra.mxu0 0.0
    %572 = vmatprep.subr.mxu0 0.0
    %573 = vmatpush2.msra.mxu0 0.0
    %574 = vmatprep.subr.mxu0 0.0
    %575 = vmatpush2.msra.mxu0 0.0
    %576 = vmatprep.subr.mxu0 0.0
    %577 = vmatpush2.msra.mxu0 0.0
    %578 = vmatprep.subr.mxu0 0.0
    %579 = vmatpush2.msra.mxu0 0.0
    %580 = vmatprep.subr.mxu0 0.0
    %581 = vmatpush2.msra.mxu0 0.0
    %582 = vmatprep.subr.mxu0 0.0
    %583 = vmatpush2.msra.mxu0 0.0
    %584 = vmatprep.subr.mxu0 0.0
    %585 = vmatpush2.msra.mxu0 0.0
    %586 = vmatprep.subr.mxu0 0.0
    %587 = vmatpush2.msra.mxu0 0.0
    %588 = vmatprep.mubr.f32.mxu0 0.0
    %589 = vmatmul.mubr.f32.gmra.mxu0 %v522
    %v590 = vpop.f32.mrf.mxu0
    %v591 = vadd.f32 %v519, %v590
    %v592 = vpop.f32.mrf.mxu0
    %593 = vdwg.mxu0
    %v594 = vxor.u32 %v591, 2147483648
    %v595 = vmul.f32 %v594, 1.442695
    %v596 = vpow.pop %v595
    %v597 = vadd.f32 %v596, 1.0
    %v598 = vrcp.pop %v597
    %v599 = vmul.f32 1.0, %v598
    %s600 = scalar_lea.vmem %s0, 1
    %v601 = vld [vmem:[%s600] sm:$0x1]
    %s602 = scalar_lea.vmem %s1, 8
    %v603 = vld [vmem:[%s602] sm:$0xff]
    %s604 = scalar_lea.vmem %s2, 1
    %v605 = vld [vmem:[%s604] sm:$0x1]
    %v607 = vsel %vm102, %v601, 0
    %609 = vmatprep.subr.mxu0 0.0
    %610 = vmatpush1.msra.mxu0 0.0
    %611 = vmatprep.subr.mxu0 0.0
    %612 = vmatpush1.msra.mxu0 0.0
    %613 = vmatprep.subr.mxu0 0.0
    %614 = vmatpush1.msra.mxu0 0.0
    %615 = vmatprep.subr.mxu0 0.0
    %616 = vmatpush1.msra.mxu0 0.0
    %617 = vmatprep.subr.mxu0 0.0
    %618 = vmatpush1.msra.mxu0 0.0
    %619 = vmatprep.subr.mxu0 0.0
    %620 = vmatpush1.msra.mxu0 0.0
    %621 = vmatprep.subr.mxu0 0.0
    %622 = vmatpush1.msra.mxu0 0.0
    %623 = vmatprep.subr.mxu0 0.0
    %624 = vmatpush1.msra.mxu0 0.0
    %625 = vmatprep.subr.mxu0 0.0
    %626 = vmatpush1.msra.mxu0 0.0
    %627 = vmatprep.subr.mxu0 0.0
    %628 = vmatpush1.msra.mxu0 0.0
    %629 = vmatprep.subr.mxu0 0.0
    %630 = vmatpush1.msra.mxu0 0.0
    %631 = vmatprep.subr.mxu0 0.0
    %632 = vmatpush1.msra.mxu0 0.0
    %633 = vmatprep.subr.mxu0 0.0
    %634 = vmatpush1.msra.mxu0 %v72
    %635 = vmatprep.subr.mxu0 0.0
    %636 = vmatpush1.msra.mxu0 %v71
    %637 = vmatprep.subr.mxu0 0.0
    %638 = vmatpush1.msra.mxu0 %v70
    %639 = vmatprep.subr.mxu0 0.0
    %640 = vmatpush1.msra.mxu0 %v69
    %641 = vmatprep.subr.mxu0 0.0
    %642 = vmatpush2.msra.mxu0 0.0
    %643 = vmatprep.subr.mxu0 0.0
    %644 = vmatpush2.msra.mxu0 0.0
    %645 = vmatprep.subr.mxu0 0.0
    %646 = vmatpush2.msra.mxu0 0.0
    %647 = vmatprep.subr.mxu0 0.0
    %648 = vmatpush2.msra.mxu0 0.0
    %649 = vmatprep.subr.mxu0 0.0
    %650 = vmatpush2.msra.mxu0 0.0
    %651 = vmatprep.subr.mxu0 0.0
    %652 = vmatpush2.msra.mxu0 0.0
    %653 = vmatprep.subr.mxu0 0.0
    %654 = vmatpush2.msra.mxu0 0.0
    %655 = vmatprep.subr.mxu0 0.0
    %656 = vmatpush2.msra.mxu0 0.0
    %657 = vmatprep.subr.mxu0 0.0
    %658 = vmatpush2.msra.mxu0 0.0
    %659 = vmatprep.subr.mxu0 0.0
    %660 = vmatpush2.msra.mxu0 0.0
    %661 = vmatprep.subr.mxu0 0.0
    %662 = vmatpush2.msra.mxu0 0.0
    %663 = vmatprep.subr.mxu0 0.0
    %664 = vmatpush2.msra.mxu0 0.0
    %665 = vmatprep.subr.mxu0 0.0
    %666 = vmatpush2.msra.mxu0 0.0
    %667 = vmatprep.subr.mxu0 0.0
    %668 = vmatpush2.msra.mxu0 0.0
    %669 = vmatprep.subr.mxu0 0.0
    %670 = vmatpush2.msra.mxu0 0.0
    %671 = vmatprep.subr.mxu0 0.0
    %672 = vmatpush2.msra.mxu0 0.0
    %673 = vmatprep.mubr.f32.mxu0 0.0
    %674 = vmatmul.mubr.f32.gmra.mxu0 %v607
    %v675 = vpop.f32.mrf.mxu0
    %v676 = vadd.f32 %v83, %v675
    %v677 = vpop.f32.mrf.mxu0
    %678 = vdwg.mxu0
    %v679 = vtanh.pop %v676
    %680 = vmatprep.subr.mxu0 0.0
    %681 = vmatpush1.msra.mxu0 0.0
    %682 = vmatprep.subr.mxu0 0.0
    %683 = vmatpush1.msra.mxu0 0.0
    %684 = vmatprep.subr.mxu0 0.0
    %685 = vmatpush1.msra.mxu0 0.0
    %686 = vmatprep.subr.mxu0 0.0
    %687 = vmatpush1.msra.mxu0 0.0
    %688 = vmatprep.subr.mxu0 0.0
    %689 = vmatpush1.msra.mxu0 0.0
    %690 = vmatprep.subr.mxu0 0.0
    %691 = vmatpush1.msra.mxu0 0.0
    %692 = vmatprep.subr.mxu0 0.0
    %693 = vmatpush1.msra.mxu0 0.0
    %694 = vmatprep.subr.mxu0 0.0
    %695 = vmatpush1.msra.mxu0 0.0
    %696 = vmatprep.subr.mxu0 0.0
    %697 = vmatpush1.msra.mxu0 0.0
    %698 = vmatprep.subr.mxu0 0.0
    %699 = vmatpush1.msra.mxu0 0.0
    %700 = vmatprep.subr.mxu0 0.0
    %701 = vmatpush1.msra.mxu0 0.0
    %702 = vmatprep.subr.mxu0 0.0
    %703 = vmatpush1.msra.mxu0 0.0
    %704 = vmatprep.subr.mxu0 0.0
    %705 = vmatpush1.msra.mxu0 %v77
    %706 = vmatprep.subr.mxu0 0.0
    %707 = vmatpush1.msra.mxu0 %v76
    %708 = vmatprep.subr.mxu0 0.0
    %709 = vmatpush1.msra.mxu0 %v75
    %710 = vmatprep.subr.mxu0 0.0
    %711 = vmatpush1.msra.mxu0 %v74
    %712 = vmatprep.subr.mxu0 0.0
    %713 = vmatpush2.msra.mxu0 0.0
    %714 = vmatprep.subr.mxu0 0.0
    %715 = vmatpush2.msra.mxu0 0.0
    %716 = vmatprep.subr.mxu0 0.0
    %717 = vmatpush2.msra.mxu0 0.0
    %718 = vmatprep.subr.mxu0 0.0
    %719 = vmatpush2.msra.mxu0 0.0
    %720 = vmatprep.subr.mxu0 0.0
    %721 = vmatpush2.msra.mxu0 0.0
    %722 = vmatprep.subr.mxu0 0.0
    %723 = vmatpush2.msra.mxu0 0.0
    %724 = vmatprep.subr.mxu0 0.0
    %725 = vmatpush2.msra.mxu0 0.0
    %726 = vmatprep.subr.mxu0 0.0
    %727 = vmatpush2.msra.mxu0 0.0
    %728 = vmatprep.subr.mxu0 0.0
    %729 = vmatpush2.msra.mxu0 0.0
    %730 = vmatprep.subr.mxu0 0.0
    %731 = vmatpush2.msra.mxu0 0.0
    %732 = vmatprep.subr.mxu0 0.0
    %733 = vmatpush2.msra.mxu0 0.0
    %734 = vmatprep.subr.mxu0 0.0
    %735 = vmatpush2.msra.mxu0 0.0
    %736 = vmatprep.subr.mxu0 0.0
    %737 = vmatpush2.msra.mxu0 0.0
    %738 = vmatprep.subr.mxu0 0.0
    %739 = vmatpush2.msra.mxu0 0.0
    %740 = vmatprep.subr.mxu0 0.0
    %741 = vmatpush2.msra.mxu0 0.0
    %742 = vmatprep.subr.mxu0 0.0
    %743 = vmatpush2.msra.mxu0 0.0
    %744 = vmatprep.mubr.f32.mxu0 0.0
    %745 = vmatmul.mubr.f32.gmra.mxu0 %v607
    %v746 = vpop.f32.mrf.mxu0
    %v747 = vadd.f32 %v85, %v746
    %v748 = vpop.f32.mrf.mxu0
    %749 = vdwg.mxu0
    %v750 = vtanh.pop %v747
    %751 = vmatprep.subr.mxu0 0.0
    %752 = vmatpush1.msra.mxu0 0.0
    %753 = vmatprep.subr.mxu0 0.0
    %754 = vmatpush1.msra.mxu0 0.0
    %755 = vmatprep.subr.mxu0 0.0
    %756 = vmatpush1.msra.mxu0 0.0
    %757 = vmatprep.subr.mxu0 0.0
    %758 = vmatpush1.msra.mxu0 0.0
    %759 = vmatprep.subr.mxu0 0.0
    %760 = vmatpush1.msra.mxu0 0.0
    %761 = vmatprep.subr.mxu0 0.0
    %762 = vmatpush1.msra.mxu0 0.0
    %763 = vmatprep.subr.mxu0 0.0
    %764 = vmatpush1.msra.mxu0 0.0
    %765 = vmatprep.subr.mxu0 0.0
    %766 = vmatpush1.msra.mxu0 0.0
    %767 = vmatprep.subr.mxu0 0.0
    %768 = vmatpush1.msra.mxu0 0.0
    %769 = vmatprep.subr.mxu0 0.0
    %770 = vmatpush1.msra.mxu0 0.0
    %771 = vmatprep.subr.mxu0 0.0
    %772 = vmatpush1.msra.mxu0 0.0
    %773 = vmatprep.subr.mxu0 0.0
    %774 = vmatpush1.msra.mxu0 0.0
    %775 = vmatprep.subr.mxu0 0.0
    %776 = vmatpush1.msra.mxu0 %v82
    %777 = vmatprep.subr.mxu0 0.0
    %778 = vmatpush1.msra.mxu0 %v81
    %779 = vmatprep.subr.mxu0 0.0
    %780 = vmatpush1.msra.mxu0 %v80
    %781 = vmatprep.subr.mxu0 0.0
    %782 = vmatpush1.msra.mxu0 %v79
    %783 = vmatprep.subr.mxu0 0.0
    %784 = vmatpush2.msra.mxu0 0.0
    %785 = vmatprep.subr.mxu0 0.0
    %786 = vmatpush2.msra.mxu0 0.0
    %787 = vmatprep.subr.mxu0 0.0
    %788 = vmatpush2.msra.mxu0 0.0
    %789 = vmatprep.subr.mxu0 0.0
    %790 = vmatpush2.msra.mxu0 0.0
    %791 = vmatprep.subr.mxu0 0.0
    %792 = vmatpush2.msra.mxu0 0.0
    %793 = vmatprep.subr.mxu0 0.0
    %794 = vmatpush2.msra.mxu0 0.0
    %795 = vmatprep.subr.mxu0 0.0
    %796 = vmatpush2.msra.mxu0 0.0
    %797 = vmatprep.subr.mxu0 0.0
    %798 = vmatpush2.msra.mxu0 0.0
    %799 = vmatprep.subr.mxu0 0.0
    %800 = vmatpush2.msra.mxu0 0.0
    %801 = vmatprep.subr.mxu0 0.0
    %802 = vmatpush2.msra.mxu0 0.0
    %803 = vmatprep.subr.mxu0 0.0
    %804 = vmatpush2.msra.mxu0 0.0
    %805 = vmatprep.subr.mxu0 0.0
    %806 = vmatpush2.msra.mxu0 0.0
    %807 = vmatprep.subr.mxu0 0.0
    %808 = vmatpush2.msra.mxu0 0.0
    %809 = vmatprep.subr.mxu0 0.0
    %810 = vmatpush2.msra.mxu0 0.0
    %811 = vmatprep.subr.mxu0 0.0
    %812 = vmatpush2.msra.mxu0 0.0
    %813 = vmatprep.subr.mxu0 0.0
    %814 = vmatpush2.msra.mxu0 0.0
    %815 = vmatprep.mubr.f32.mxu0 0.0
    %816 = vmatmul.mubr.f32.gmra.mxu0 %v607
    %v817 = vpop.f32.mrf.mxu0
    %v818 = vadd.f32 %v87, %v817
    %v819 = vpop.f32.mrf.mxu0
    %820 = vdwg.mxu0
    %v821 = vtanh.pop %v818
    %v823 = vrot.slane %v750, 7
    %v826 = vrot.slane %v821, 6
    %v828 = vsel %vm325, %v679, %v823
    %v829 = vsel %vm327, %v828, %v826
    %v831 = vsel %vm102, %v829, 0
    %v834 = vsel %vm102, %v603, 0
    %836 = vmatprep.subr.mxu0 0.0
    %837 = vmatpush1.xpose.msra.mxu0 0.0
    %838 = vmatprep.subr.mxu0 0.0
    %839 = vmatpush1.xpose.msra.mxu0 0.0
    %840 = vmatprep.subr.mxu0 0.0
    %841 = vmatpush1.xpose.msra.mxu0 0.0
    %842 = vmatprep.subr.mxu0 0.0
    %843 = vmatpush1.xpose.msra.mxu0 0.0
    %844 = vmatprep.subr.mxu0 0.0
    %845 = vmatpush1.xpose.msra.mxu0 0.0
    %846 = vmatprep.subr.mxu0 0.0
    %847 = vmatpush1.xpose.msra.mxu0 0.0
    %848 = vmatprep.subr.mxu0 0.0
    %849 = vmatpush1.xpose.msra.mxu0 0.0
    %850 = vmatprep.subr.mxu0 0.0
    %851 = vmatpush1.xpose.msra.mxu0 0.0
    %852 = vmatprep.subr.mxu0 0.0
    %853 = vmatpush1.xpose.msra.mxu0 0.0
    %854 = vmatprep.subr.mxu0 0.0
    %855 = vmatpush1.xpose.msra.mxu0 0.0
    %856 = vmatprep.subr.mxu0 0.0
    %857 = vmatpush1.xpose.msra.mxu0 0.0
    %858 = vmatprep.subr.mxu0 0.0
    %859 = vmatpush1.xpose.msra.mxu0 0.0
    %860 = vmatprep.subr.mxu0 0.0
    %861 = vmatpush1.xpose.msra.mxu0 0.0
    %862 = vmatprep.subr.mxu0 0.0
    %863 = vmatpush1.xpose.msra.mxu0 0.0
    %864 = vmatprep.subr.mxu0 0.0
    %865 = vmatpush1.xpose.msra.mxu0 0.0
    %866 = vmatprep.subr.mxu0 0.0
    %867 = vmatpush1.xpose.msra.mxu0 %v834
    %868 = vmatprep.subr.mxu0 0.0
    %869 = vmatpush2.xpose.msra.mxu0 0.0
    %870 = vmatprep.subr.mxu0 0.0
    %871 = vmatpush2.xpose.msra.mxu0 0.0
    %872 = vmatprep.subr.mxu0 0.0
    %873 = vmatpush2.xpose.msra.mxu0 0.0
    %874 = vmatprep.subr.mxu0 0.0
    %875 = vmatpush2.xpose.msra.mxu0 0.0
    %876 = vmatprep.subr.mxu0 0.0
    %877 = vmatpush2.xpose.msra.mxu0 0.0
    %878 = vmatprep.subr.mxu0 0.0
    %879 = vmatpush2.xpose.msra.mxu0 0.0
    %880 = vmatprep.subr.mxu0 0.0
    %881 = vmatpush2.xpose.msra.mxu0 0.0
    %882 = vmatprep.subr.mxu0 0.0
    %883 = vmatpush2.xpose.msra.mxu0 0.0
    %884 = vmatprep.subr.mxu0 0.0
    %885 = vmatpush2.xpose.msra.mxu0 0.0
    %886 = vmatprep.subr.mxu0 0.0
    %887 = vmatpush2.xpose.msra.mxu0 0.0
    %888 = vmatprep.subr.mxu0 0.0
    %889 = vmatpush2.xpose.msra.mxu0 0.0
    %890 = vmatprep.subr.mxu0 0.0
    %891 = vmatpush2.xpose.msra.mxu0 0.0
    %892 = vmatprep.subr.mxu0 0.0
    %893 = vmatpush2.xpose.msra.mxu0 0.0
    %894 = vmatprep.subr.mxu0 0.0
    %895 = vmatpush2.xpose.msra.mxu0 0.0
    %896 = vmatprep.subr.mxu0 0.0
    %897 = vmatpush2.xpose.msra.mxu0 0.0
    %898 = vmatprep.subr.mxu0 0.0
    %899 = vmatpush2.xpose.msra.mxu0 0.0
    %900 = vmatprep.mubr.f32.mxu0 0.0
    %901 = vmatmul.mubr.f32.gmra.mxu0 %v831
    %v902 = vpop.f32.mrf.mxu0
    %v903 = vadd.f32 0.0, %v902
    %v904 = vpop.f32.mrf.mxu0
    %905 = vdwg.mxu0
    %v906 = vsel %vm405, %v903, -inf
    %907 = vmax.xlane.f32.xlu0 %v906
    %v908 = vpop.xlane.xlu0 %907
    %v909 = vsub.f32 %v903, %v908
    %v910 = vmul.f32 %v909, 1.442695
    %v911 = vpow.pop %v910
    %v912 = vsel %vm405, %v911, 0.0
    %913 = vadd.xlane.f32.xlu0 %v912
    %v914 = vpop.xlane.xlu0 %913
    %v915 = vrcp.pop %v914
    %v916 = vmul.f32 %v911, %v915
    %v918 = vlaneseq
    %v919 = vshrl.u32 %v918, 7
    %v920 = vsub.s32 0, %v919
    %v921 = vrot.slane %v605, %v920
    %v923 = vmul.f32 %v916, %v921
    %v924 = vsel %vm405, %v923, 0.0
    %925 = vadd.xlane.f32.xlu0 %v924
    %v926 = vpop.xlane.xlu0 %925
    %v927 = vadd.f32 %v926, 1e-06
    %v928 = vrcp.pop %v927
    %v929 = vmul.f32 %v923, %v928
    %s930 = scalar_lea.vmem %s16, 4
    %931 = vst.msk [vmem:[%s930] sm:$0x7] %vm405, %v929
    %v933 = vsel %vm431, %v929, 0
    %935 = vmatprep.subr.mxu0 0.0
    %936 = vmatpush1.msra.mxu0 0.0
    %937 = vmatprep.subr.mxu0 0.0
    %938 = vmatpush1.msra.mxu0 0.0
    %939 = vmatprep.subr.mxu0 0.0
    %940 = vmatpush1.msra.mxu0 0.0
    %941 = vmatprep.subr.mxu0 0.0
    %942 = vmatpush1.msra.mxu0 0.0
    %943 = vmatprep.subr.mxu0 0.0
    %944 = vmatpush1.msra.mxu0 0.0
    %945 = vmatprep.subr.mxu0 0.0
    %946 = vmatpush1.msra.mxu0 0.0
    %947 = vmatprep.subr.mxu0 0.0
    %948 = vmatpush1.msra.mxu0 0.0
    %949 = vmatprep.subr.mxu0 0.0
    %950 = vmatpush1.msra.mxu0 0.0
    %951 = vmatprep.subr.mxu0 0.0
    %952 = vmatpush1.msra.mxu0 0.0
    %953 = vmatprep.subr.mxu0 0.0
    %954 = vmatpush1.msra.mxu0 0.0
    %955 = vmatprep.subr.mxu0 0.0
    %956 = vmatpush1.msra.mxu0 0.0
    %957 = vmatprep.subr.mxu0 0.0
    %958 = vmatpush1.msra.mxu0 0.0
    %959 = vmatprep.subr.mxu0 0.0
    %960 = vmatpush1.msra.mxu0 0.0
    %961 = vmatprep.subr.mxu0 0.0
    %962 = vmatpush1.msra.mxu0 0.0
    %963 = vmatprep.subr.mxu0 0.0
    %964 = vmatpush1.msra.mxu0 0.0
    %965 = vmatprep.subr.mxu0 0.0
    %966 = vmatpush1.msra.mxu0 %v603
    %967 = vmatprep.subr.mxu0 0.0
    %968 = vmatpush2.msra.mxu0 0.0
    %969 = vmatprep.subr.mxu0 0.0
    %970 = vmatpush2.msra.mxu0 0.0
    %971 = vmatprep.subr.mxu0 0.0
    %972 = vmatpush2.msra.mxu0 0.0
    %973 = vmatprep.subr.mxu0 0.0
    %974 = vmatpush2.msra.mxu0 0.0
    %975 = vmatprep.subr.mxu0 0.0
    %976 = vmatpush2.msra.mxu0 0.0
    %977 = vmatprep.subr.mxu0 0.0
    %978 = vmatpush2.msra.mxu0 0.0
    %979 = vmatprep.subr.mxu0 0.0
    %980 = vmatpush2.msra.mxu0 0.0
    %981 = vmatprep.subr.mxu0 0.0
    %982 = vmatpush2.msra.mxu0 0.0
    %983 = vmatprep.subr.mxu0 0.0
    %984 = vmatpush2.msra.mxu0 0.0
    %985 = vmatprep.subr.mxu0 0.0
    %986 = vmatpush2.msra.mxu0 0.0
    %987 = vmatprep.subr.mxu0 0.0
    %988 = vmatpush2.msra.mxu0 0.0
    %989 = vmatprep.subr.mxu0 0.0
    %990 = vmatpush2.msra.mxu0 0.0
    %991 = vmatprep.subr.mxu0 0.0
    %992 = vmatpush2.msra.mxu0 0.0
    %993 = vmatprep.subr.mxu0 0.0
    %994 = vmatpush2.msra.mxu0 0.0
    %995 = vmatprep.subr.mxu0 0.0
    %996 = vmatpush2.msra.mxu0 0.0
    %997 = vmatprep.subr.mxu0 0.0
    %998 = vmatpush2.msra.mxu0 0.0
    %999 = vmatprep.mubr.f32.mxu0 0.0
    %1000 = vmatmul.mubr.f32.gmra.mxu0 %v933
    %v1001 = vpop.f32.mrf.mxu0
    %v1002 = vadd.f32 %v829, %v1001
    %v1003 = vpop.f32.mrf.mxu0
    %1004 = vdwg.mxu0
    %v1005 = vmul.f32 %v1002, %v509
    %v1007 = vsel %vm102, %v1005, 0
    %1009 = vmatprep.subr.mxu0 0.0
    %1010 = vmatpush1.msra.mxu0 0.0
    %1011 = vmatprep.subr.mxu0 0.0
    %1012 = vmatpush1.msra.mxu0 0.0
    %1013 = vmatprep.subr.mxu0 0.0
    %1014 = vmatpush1.msra.mxu0 0.0
    %1015 = vmatprep.subr.mxu0 0.0
    %1016 = vmatpush1.msra.mxu0 0.0
    %1017 = vmatprep.subr.mxu0 0.0
    %1018 = vmatpush1.msra.mxu0 0.0
    %1019 = vmatprep.subr.mxu0 0.0
    %1020 = vmatpush1.msra.mxu0 0.0
    %1021 = vmatprep.subr.mxu0 0.0
    %1022 = vmatpush1.msra.mxu0 0.0
    %1023 = vmatprep.subr.mxu0 0.0
    %1024 = vmatpush1.msra.mxu0 0.0
    %1025 = vmatprep.subr.mxu0 0.0
    %1026 = vmatpush1.msra.mxu0 0.0
    %1027 = vmatprep.subr.mxu0 0.0
    %1028 = vmatpush1.msra.mxu0 0.0
    %1029 = vmatprep.subr.mxu0 0.0
    %1030 = vmatpush1.msra.mxu0 0.0
    %1031 = vmatprep.subr.mxu0 0.0
    %1032 = vmatpush1.msra.mxu0 0.0
    %1033 = vmatprep.subr.mxu0 0.0
    %1034 = vmatpush1.msra.mxu0 %v62
    %1035 = vmatprep.subr.mxu0 0.0
    %1036 = vmatpush1.msra.mxu0 %v61
    %1037 = vmatprep.subr.mxu0 0.0
    %1038 = vmatpush1.msra.mxu0 %v60
    %1039 = vmatprep.subr.mxu0 0.0
    %1040 = vmatpush1.msra.mxu0 %v59
    %1041 = vmatprep.subr.mxu0 0.0
    %1042 = vmatpush2.msra.mxu0 0.0
    %1043 = vmatprep.subr.mxu0 0.0
    %1044 = vmatpush2.msra.mxu0 0.0
    %1045 = vmatprep.subr.mxu0 0.0
    %1046 = vmatpush2.msra.mxu0 0.0
    %1047 = vmatprep.subr.mxu0 0.0
    %1048 = vmatpush2.msra.mxu0 0.0
    %1049 = vmatprep.subr.mxu0 0.0
    %1050 = vmatpush2.msra.mxu0 0.0
    %1051 = vmatprep.subr.mxu0 0.0
    %1052 = vmatpush2.msra.mxu0 0.0
    %1053 = vmatprep.subr.mxu0 0.0
    %1054 = vmatpush2.msra.mxu0 0.0
    %1055 = vmatprep.subr.mxu0 0.0
    %1056 = vmatpush2.msra.mxu0 0.0
    %1057 = vmatprep.subr.mxu0 0.0
    %1058 = vmatpush2.msra.mxu0 0.0
    %1059 = vmatprep.subr.mxu0 0.0
    %1060 = vmatpush2.msra.mxu0 0.0
    %1061 = vmatprep.subr.mxu0 0.0
    %1062 = vmatpush2.msra.mxu0 0.0
    %1063 = vmatprep.subr.mxu0 0.0
    %1064 = vmatpush2.msra.mxu0 0.0
    %1065 = vmatprep.subr.mxu0 0.0
    %1066 = vmatpush2.msra.mxu0 0.0
    %1067 = vmatprep.subr.mxu0 0.0
    %1068 = vmatpush2.msra.mxu0 0.0
    %1069 = vmatprep.subr.mxu0 0.0
    %1070 = vmatpush2.msra.mxu0 0.0
    %1071 = vmatprep.subr.mxu0 0.0
    %1072 = vmatpush2.msra.mxu0 0.0
    %1073 = vmatprep.mubr.f32.mxu0 0.0
    %1074 = vmatmul.mubr.f32.gmra.mxu0 %v1007
    %v1075 = vpop.f32.mrf.mxu0
    %v1076 = vadd.f32 %v519, %v1075
    %v1077 = vpop.f32.mrf.mxu0
    %1078 = vdwg.mxu0
    %v1079 = vxor.u32 %v1076, 2147483648
    %v1080 = vmul.f32 %v1079, 1.442695
    %v1081 = vpow.pop %v1080
    %v1082 = vadd.f32 %v1081, 1.0
    %v1083 = vrcp.pop %v1082
    %v1084 = vmul.f32 1.0, %v1083
    %v1085 = vlaneseq
    %v1086 = vshrl.u32 %v1085, 7
    %v1087 = vsub.s32 0, %v1086
    %v1088 = vrot.slane %v601, %v1087
    %v1090 = vsel %vm325, %v99, %v1088
    %vm1091 = vcmask 23552
    %v1093 = vsel %vm1091, %v92, 0
    %vm1095 = vcmask 1042432
    %v1097 = vsel %vm1095, %v599, 0
    %1099 = vmatprep.subr.mxu0 0.0
    %1100 = vmatpush1.msra.mxu0 0.0
    %1101 = vmatprep.subr.mxu0 0.0
    %1102 = vmatpush1.msra.mxu0 0.0
    %1103 = vmatprep.subr.mxu0 0.0
    %1104 = vmatpush1.msra.mxu0 0.0
    %1105 = vmatprep.subr.mxu0 0.0
    %1106 = vmatpush1.msra.mxu0 0.0
    %1107 = vmatprep.subr.mxu0 0.0
    %1108 = vmatpush1.msra.mxu0 0.0
    %1109 = vmatprep.subr.mxu0 0.0
    %1110 = vmatpush1.msra.mxu0 0.0
    %1111 = vmatprep.subr.mxu0 0.0
    %1112 = vmatpush1.msra.mxu0 0.0
    %1113 = vmatprep.subr.mxu0 0.0
    %1114 = vmatpush1.msra.mxu0 0.0
    %1115 = vmatprep.subr.mxu0 0.0
    %1116 = vmatpush1.msra.mxu0 0.0
    %1117 = vmatprep.subr.mxu0 0.0
    %1118 = vmatpush1.msra.mxu0 0.0
    %1119 = vmatprep.subr.mxu0 0.0
    %1120 = vmatpush1.msra.mxu0 0.0
    %1121 = vmatprep.subr.mxu0 0.0
    %1122 = vmatpush1.msra.mxu0 0.0
    %1123 = vmatprep.subr.mxu0 0.0
    %1124 = vmatpush1.msra.mxu0 0.0
    %1125 = vmatprep.subr.mxu0 0.0
    %1126 = vmatpush1.msra.mxu0 0.0
    %1127 = vmatprep.subr.mxu0 0.0
    %1128 = vmatpush1.msra.mxu0 0.0
    %1129 = vmatprep.subr.mxu0 0.0
    %1130 = vmatpush1.msra.mxu0 %v1097
    %1131 = vmatprep.subr.mxu0 0.0
    %1132 = vmatpush2.msra.mxu0 0.0
    %1133 = vmatprep.subr.mxu0 0.0
    %1134 = vmatpush2.msra.mxu0 0.0
    %1135 = vmatprep.subr.mxu0 0.0
    %1136 = vmatpush2.msra.mxu0 0.0
    %1137 = vmatprep.subr.mxu0 0.0
    %1138 = vmatpush2.msra.mxu0 0.0
    %1139 = vmatprep.subr.mxu0 0.0
    %1140 = vmatpush2.msra.mxu0 0.0
    %1141 = vmatprep.subr.mxu0 0.0
    %1142 = vmatpush2.msra.mxu0 0.0
    %1143 = vmatprep.subr.mxu0 0.0
    %1144 = vmatpush2.msra.mxu0 0.0
    %1145 = vmatprep.subr.mxu0 0.0
    %1146 = vmatpush2.msra.mxu0 0.0
    %1147 = vmatprep.subr.mxu0 0.0
    %1148 = vmatpush2.msra.mxu0 0.0
    %1149 = vmatprep.subr.mxu0 0.0
    %1150 = vmatpush2.msra.mxu0 0.0
    %1151 = vmatprep.subr.mxu0 0.0
    %1152 = vmatpush2.msra.mxu0 0.0
    %1153 = vmatprep.subr.mxu0 0.0
    %1154 = vmatpush2.msra.mxu0 0.0
    %1155 = vmatprep.subr.mxu0 0.0
    %1156 = vmatpush2.msra.mxu0 0.0
    %1157 = vmatprep.subr.mxu0 0.0
    %1158 = vmatpush2.msra.mxu0 0.0
    %1159 = vmatprep.subr.mxu0 0.0
    %1160 = vmatpush2.msra.mxu0 0.0
    %1161 = vmatprep.subr.mxu0 0.0
    %1162 = vmatpush2.msra.mxu0 0.0
    %1163 = vmatprep.mubr.f32.mxu0 0.0
    %1164 = vmatmul.mubr.f32.gmra.mxu0 %v1093
    %v1165 = vpop.f32.mrf.mxu0
    %v1166 = vadd.f32 0.0, %v1165
    %v1167 = vpop.f32.mrf.mxu0
    %1168 = vdwg.mxu0
    %v1170 = vsel %vm1095, %v1084, 0
    %1172 = vmatprep.subr.mxu0 0.0
    %1173 = vmatpush1.msra.mxu0 0.0
    %1174 = vmatprep.subr.mxu0 0.0
    %1175 = vmatpush1.msra.mxu0 0.0
    %1176 = vmatprep.subr.mxu0 0.0
    %1177 = vmatpush1.msra.mxu0 0.0
    %1178 = vmatprep.subr.mxu0 0.0
    %1179 = vmatpush1.msra.mxu0 0.0
    %1180 = vmatprep.subr.mxu0 0.0
    %1181 = vmatpush1.msra.mxu0 0.0
    %1182 = vmatprep.subr.mxu0 0.0
    %1183 = vmatpush1.msra.mxu0 0.0
    %1184 = vmatprep.subr.mxu0 0.0
    %1185 = vmatpush1.msra.mxu0 0.0
    %1186 = vmatprep.subr.mxu0 0.0
    %1187 = vmatpush1.msra.mxu0 0.0
    %1188 = vmatprep.subr.mxu0 0.0
    %1189 = vmatpush1.msra.mxu0 0.0
    %1190 = vmatprep.subr.mxu0 0.0
    %1191 = vmatpush1.msra.mxu0 0.0
    %1192 = vmatprep.subr.mxu0 0.0
    %1193 = vmatpush1.msra.mxu0 0.0
    %1194 = vmatprep.subr.mxu0 0.0
    %1195 = vmatpush1.msra.mxu0 0.0
    %1196 = vmatprep.subr.mxu0 0.0
    %1197 = vmatpush1.msra.mxu0 0.0
    %1198 = vmatprep.subr.mxu0 0.0
    %1199 = vmatpush1.msra.mxu0 0.0
    %1200 = vmatprep.subr.mxu0 0.0
    %1201 = vmatpush1.msra.mxu0 0.0
    %1202 = vmatprep.subr.mxu0 0.0
    %1203 = vmatpush1.msra.mxu0 %v1170
    %1204 = vmatprep.subr.mxu0 0.0
    %1205 = vmatpush2.msra.mxu0 0.0
    %1206 = vmatprep.subr.mxu0 0.0
    %1207 = vmatpush2.msra.mxu0 0.0
    %1208 = vmatprep.subr.mxu0 0.0
    %1209 = vmatpush2.msra.mxu0 0.0
    %1210 = vmatprep.subr.mxu0 0.0
    %1211 = vmatpush2.msra.mxu0 0.0
    %1212 = vmatprep.subr.mxu0 0.0
    %1213 = vmatpush2.msra.mxu0 0.0
    %1214 = vmatprep.subr.mxu0 0.0
    %1215 = vmatpush2.msra.mxu0 0.0
    %1216 = vmatprep.subr.mxu0 0.0
    %1217 = vmatpush2.msra.mxu0 0.0
    %1218 = vmatprep.subr.mxu0 0.0
    %1219 = vmatpush2.msra.mxu0 0.0
    %1220 = vmatprep.subr.mxu0 0.0
    %1221 = vmatpush2.msra.mxu0 0.0
    %1222 = vmatprep.subr.mxu0 0.0
    %1223 = vmatpush2.msra.mxu0 0.0
    %1224 = vmatprep.subr.mxu0 0.0
    %1225 = vmatpush2.msra.mxu0 0.0
    %1226 = vmatprep.subr.mxu0 0.0
    %1227 = vmatpush2.msra.mxu0 0.0
    %1228 = vmatprep.subr.mxu0 0.0
    %1229 = vmatpush2.msra.mxu0 0.0
    %1230 = vmatprep.subr.mxu0 0.0
    %1231 = vmatpush2.msra.mxu0 0.0
    %1232 = vmatprep.subr.mxu0 0.0
    %1233 = vmatpush2.msra.mxu0 0.0
    %1234 = vmatprep.subr.mxu0 0.0
    %1235 = vmatpush2.msra.mxu0 0.0
    %1236 = vmatprep.mubr.f32.mxu0 0.0
    %1237 = vmatmul.mubr.f32.gmra.mxu0 %v1093
    %v1238 = vpop.f32.mrf.mxu0
    %v1239 = vadd.f32 0.0, %v1238
    %v1240 = vpop.f32.mrf.mxu0
    %1241 = vdwg.mxu0
    %v1243 = vrot.slane %v1239, 7
    %v1245 = vsel %vm325, %v1166, %v1243
    %v1247 = vsel %vm1091, %v95, 0
    %1249 = vmatprep.subr.mxu0 0.0
    %1250 = vmatpush1.msra.mxu0 0.0
    %1251 = vmatprep.subr.mxu0 0.0
    %1252 = vmatpush1.msra.mxu0 0.0
    %1253 = vmatprep.subr.mxu0 0.0
    %1254 = vmatpush1.msra.mxu0 0.0
    %1255 = vmatprep.subr.mxu0 0.0
    %1256 = vmatpush1.msra.mxu0 0.0
    %1257 = vmatprep.subr.mxu0 0.0
    %1258 = vmatpush1.msra.mxu0 0.0
    %1259 = vmatprep.subr.mxu0 0.0
    %1260 = vmatpush1.msra.mxu0 0.0
    %1261 = vmatprep.subr.mxu0 0.0
    %1262 = vmatpush1.msra.mxu0 0.0
    %1263 = vmatprep.subr.mxu0 0.0
    %1264 = vmatpush1.msra.mxu0 0.0
    %1265 = vmatprep.subr.mxu0 0.0
    %1266 = vmatpush1.msra.mxu0 0.0
    %1267 = vmatprep.subr.mxu0 0.0
    %1268 = vmatpush1.msra.mxu0 0.0
    %1269 = vmatprep.subr.mxu0 0.0
    %1270 = vmatpush1.msra.mxu0 0.0
    %1271 = vmatprep.subr.mxu0 0.0
    %1272 = vmatpush1.msra.mxu0 0.0
    %1273 = vmatprep.subr.mxu0 0.0
    %1274 = vmatpush1.msra.mxu0 0.0
    %1275 = vmatprep.subr.mxu0 0.0
    %1276 = vmatpush1.msra.mxu0 0.0
    %1277 = vmatprep.subr.mxu0 0.0
    %1278 = vmatpush1.msra.mxu0 0.0
    %1279 = vmatprep.subr.mxu0 0.0
    %1280 = vmatpush1.msra.mxu0 %v1097
    %1281 = vmatprep.subr.mxu0 0.0
    %1282 = vmatpush2.msra.mxu0 0.0
    %1283 = vmatprep.subr.mxu0 0.0
    %1284 = vmatpush2.msra.mxu0 0.0
    %1285 = vmatprep.subr.mxu0 0.0
    %1286 = vmatpush2.msra.mxu0 0.0
    %1287 = vmatprep.subr.mxu0 0.0
    %1288 = vmatpush2.msra.mxu0 0.0
    %1289 = vmatprep.subr.mxu0 0.0
    %1290 = vmatpush2.msra.mxu0 0.0
    %1291 = vmatprep.subr.mxu0 0.0
    %1292 = vmatpush2.msra.mxu0 0.0
    %1293 = vmatprep.subr.mxu0 0.0
    %1294 = vmatpush2.msra.mxu0 0.0
    %1295 = vmatprep.subr.mxu0 0.0
    %1296 = vmatpush2.msra.mxu0 0.0
    %1297 = vmatprep.subr.mxu0 0.0
    %1298 = vmatpush2.msra.mxu0 0.0
    %1299 = vmatprep.subr.mxu0 0.0
    %1300 = vmatpush2.msra.mxu0 0.0
    %1301 = vmatprep.subr.mxu0 0.0
    %1302 = vmatpush2.msra.mxu0 0.0
    %1303 = vmatprep.subr.mxu0 0.0
    %1304 = vmatpush2.msra.mxu0 0.0
    %1305 = vmatprep.subr.mxu0 0.0
    %1306 = vmatpush2.msra.mxu0 0.0
    %1307 = vmatprep.subr.mxu0 0.0
    %1308 = vmatpush2.msra.mxu0 0.0
    %1309 = vmatprep.subr.mxu0 0.0
    %1310 = vmatpush2.msra.mxu0 0.0
    %1311 = vmatprep.subr.mxu0 0.0
    %1312 = vmatpush2.msra.mxu0 0.0
    %1313 = vmatprep.mubr.f32.mxu0 0.0
    %1314 = vmatmul.mubr.f32.gmra.mxu0 %v1247
    %v1315 = vpop.f32.mrf.mxu0
    %v1316 = vadd.f32 0.0, %v1315
    %v1317 = vpop.f32.mrf.mxu0
    %1318 = vdwg.mxu0
    %1319 = vmatprep.subr.mxu0 0.0
    %1320 = vmatpush1.msra.mxu0 0.0
    %1321 = vmatprep.subr.mxu0 0.0
    %1322 = vmatpush1.msra.mxu0 0.0
    %1323 = vmatprep.subr.mxu0 0.0
    %1324 = vmatpush1.msra.mxu0 0.0
    %1325 = vmatprep.subr.mxu0 0.0
    %1326 = vmatpush1.msra.mxu0 0.0
    %1327 = vmatprep.subr.mxu0 0.0
    %1328 = vmatpush1.msra.mxu0 0.0
    %1329 = vmatprep.subr.mxu0 0.0
    %1330 = vmatpush1.msra.mxu0 0.0
    %1331 = vmatprep.subr.mxu0 0.0
    %1332 = vmatpush1.msra.mxu0 0.0
    %1333 = vmatprep.subr.mxu0 0.0
    %1334 = vmatpush1.msra.mxu0 0.0
    %1335 = vmatprep.subr.mxu0 0.0
    %1336 = vmatpush1.msra.mxu0 0.0
    %1337 = vmatprep.subr.mxu0 0.0
    %1338 = vmatpush1.msra.mxu0 0.0
    %1339 = vmatprep.subr.mxu0 0.0
    %1340 = vmatpush1.msra.mxu0 0.0
    %1341 = vmatprep.subr.mxu0 0.0
    %1342 = vmatpush1.msra.mxu0 0.0
    %1343 = vmatprep.subr.mxu0 0.0
    %1344 = vmatpush1.msra.mxu0 0.0
    %1345 = vmatprep.subr.mxu0 0.0
    %1346 = vmatpush1.msra.mxu0 0.0
    %1347 = vmatprep.subr.mxu0 0.0
    %1348 = vmatpush1.msra.mxu0 0.0
    %1349 = vmatprep.subr.mxu0 0.0
    %1350 = vmatpush1.msra.mxu0 %v1170
    %1351 = vmatprep.subr.mxu0 0.0
    %1352 = vmatpush2.msra.mxu0 0.0
    %1353 = vmatprep.subr.mxu0 0.0
    %1354 = vmatpush2.msra.mxu0 0.0
    %1355 = vmatprep.subr.mxu0 0.0
    %1356 = vmatpush2.msra.mxu0 0.0
    %1357 = vmatprep.subr.mxu0 0.0
    %1358 = vmatpush2.msra.mxu0 0.0
    %1359 = vmatprep.subr.mxu0 0.0
    %1360 = vmatpush2.msra.mxu0 0.0
    %1361 = vmatprep.subr.mxu0 0.0
    %1362 = vmatpush2.msra.mxu0 0.0
    %1363 = vmatprep.subr.mxu0 0.0
    %1364 = vmatpush2.msra.mxu0 0.0
    %1365 = vmatprep.subr.mxu0 0.0
    %1366 = vmatpush2.msra.mxu0 0.0
    %1367 = vmatprep.subr.mxu0 0.0
    %1368 = vmatpush2.msra.mxu0 0.0
    %1369 = vmatprep.subr.mxu0 0.0
    %1370 = vmatpush2.msra.mxu0 0.0
    %1371 = vmatprep.subr.mxu0 0.0
    %1372 = vmatpush2.msra.mxu0 0.0
    %1373 = vmatprep.subr.mxu0 0.0
    %1374 = vmatpush2.msra.mxu0 0.0
    %1375 = vmatprep.subr.mxu0 0.0
    %1376 = vmatpush2.msra.mxu0 0.0
    %1377 = vmatprep.subr.mxu0 0.0
    %1378 = vmatpush2.msra.mxu0 0.0
    %1379 = vmatprep.subr.mxu0 0.0
    %1380 = vmatpush2.msra.mxu0 0.0
    %1381 = vmatprep.subr.mxu0 0.0
    %1382 = vmatpush2.msra.mxu0 0.0
    %1383 = vmatprep.mubr.f32.mxu0 0.0
    %1384 = vmatmul.mubr.f32.gmra.mxu0 %v1247
    %v1385 = vpop.f32.mrf.mxu0
    %v1386 = vadd.f32 0.0, %v1385
    %v1387 = vpop.f32.mrf.mxu0
    %1388 = vdwg.mxu0
    %v1390 = vrot.slane %v1386, 7
    %v1392 = vsel %vm325, %v1316, %v1390
    %v1394 = vsel %vm1091, %v98, 0
    %1396 = vmatprep.subr.mxu0 0.0
    %1397 = vmatpush1.msra.mxu0 0.0
    %1398 = vmatprep.subr.mxu0 0.0
    %1399 = vmatpush1.msra.mxu0 0.0
    %1400 = vmatprep.subr.mxu0 0.0
    %1401 = vmatpush1.msra.mxu0 0.0
    %1402 = vmatprep.subr.mxu0 0.0
    %1403 = vmatpush1.msra.mxu0 0.0
    %1404 = vmatprep.subr.mxu0 0.0
    %1405 = vmatpush1.msra.mxu0 0.0
    %1406 = vmatprep.subr.mxu0 0.0
    %1407 = vmatpush1.msra.mxu0 0.0
    %1408 = vmatprep.subr.mxu0 0.0
    %1409 = vmatpush1.msra.mxu0 0.0
    %1410 = vmatprep.subr.mxu0 0.0
    %1411 = vmatpush1.msra.mxu0 0.0
    %1412 = vmatprep.subr.mxu0 0.0
    %1413 = vmatpush1.msra.mxu0 0.0
    %1414 = vmatprep.subr.mxu0 0.0
    %1415 = vmatpush1.msra.mxu0 0.0
    %1416 = vmatprep.subr.mxu0 0.0
    %1417 = vmatpush1.msra.mxu0 0.0
    %1418 = vmatprep.subr.mxu0 0.0
    %1419 = vmatpush1.msra.mxu0 0.0
    %1420 = vmatprep.subr.mxu0 0.0
    %1421 = vmatpush1.msra.mxu0 0.0
    %1422 = vmatprep.subr.mxu0 0.0
    %1423 = vmatpush1.msra.mxu0 0.0
    %1424 = vmatprep.subr.mxu0 0.0
    %1425 = vmatpush1.msra.mxu0 0.0
    %1426 = vmatprep.subr.mxu0 0.0
    %1427 = vmatpush1.msra.mxu0 %v1097
    %1428 = vmatprep.subr.mxu0 0.0
    %1429 = vmatpush2.msra.mxu0 0.0
    %1430 = vmatprep.subr.mxu0 0.0
    %1431 = vmatpush2.msra.mxu0 0.0
    %1432 = vmatprep.subr.mxu0 0.0
    %1433 = vmatpush2.msra.mxu0 0.0
    %1434 = vmatprep.subr.mxu0 0.0
    %1435 = vmatpush2.msra.mxu0 0.0
    %1436 = vmatprep.subr.mxu0 0.0
    %1437 = vmatpush2.msra.mxu0 0.0
    %1438 = vmatprep.subr.mxu0 0.0
    %1439 = vmatpush2.msra.mxu0 0.0
    %1440 = vmatprep.subr.mxu0 0.0
    %1441 = vmatpush2.msra.mxu0 0.0
    %1442 = vmatprep.subr.mxu0 0.0
    %1443 = vmatpush2.msra.mxu0 0.0
    %1444 = vmatprep.subr.mxu0 0.0
    %1445 = vmatpush2.msra.mxu0 0.0
    %1446 = vmatprep.subr.mxu0 0.0
    %1447 = vmatpush2.msra.mxu0 0.0
    %1448 = vmatprep.subr.mxu0 0.0
    %1449 = vmatpush2.msra.mxu0 0.0
    %1450 = vmatprep.subr.mxu0 0.0
    %1451 = vmatpush2.msra.mxu0 0.0
    %1452 = vmatprep.subr.mxu0 0.0
    %1453 = vmatpush2.msra.mxu0 0.0
    %1454 = vmatprep.subr.mxu0 0.0
    %1455 = vmatpush2.msra.mxu0 0.0
    %1456 = vmatprep.subr.mxu0 0.0
    %1457 = vmatpush2.msra.mxu0 0.0
    %1458 = vmatprep.subr.mxu0 0.0
    %1459 = vmatpush2.msra.mxu0 0.0
    %1460 = vmatprep.mubr.f32.mxu0 0.0
    %1461 = vmatmul.mubr.f32.gmra.mxu0 %v1394
    %v1462 = vpop.f32.mrf.mxu0
    %v1463 = vadd.f32 0.0, %v1462
    %v1464 = vpop.f32.mrf.mxu0
    %1465 = vdwg.mxu0
    %1466 = vmatprep.subr.mxu0 0.0
    %1467 = vmatpush1.msra.mxu0 0.0
    %1468 = vmatprep.subr.mxu0 0.0
    %1469 = vmatpush1.msra.mxu0 0.0
    %1470 = vmatprep.subr.mxu0 0.0
    %1471 = vmatpush1.msra.mxu0 0.0
    %1472 = vmatprep.subr.mxu0 0.0
    %1473 = vmatpush1.msra.mxu0 0.0
    %1474 = vmatprep.subr.mxu0 0.0
    %1475 = vmatpush1.msra.mxu0 0.0
    %1476 = vmatprep.subr.mxu0 0.0
    %1477 = vmatpush1.msra.mxu0 0.0
    %1478 = vmatprep.subr.mxu0 0.0
    %1479 = vmatpush1.msra.mxu0 0.0
    %1480 = vmatprep.subr.mxu0 0.0
    %1481 = vmatpush1.msra.mxu0 0.0
    %1482 = vmatprep.subr.mxu0 0.0
    %1483 = vmatpush1.msra.mxu0 0.0
    %1484 = vmatprep.subr.mxu0 0.0
    %1485 = vmatpush1.msra.mxu0 0.0
    %1486 = vmatprep.subr.mxu0 0.0
    %1487 = vmatpush1.msra.mxu0 0.0
    %1488 = vmatprep.subr.mxu0 0.0
    %1489 = vmatpush1.msra.mxu0 0.0
    %1490 = vmatprep.subr.mxu0 0.0
    %1491 = vmatpush1.msra.mxu0 0.0
    %1492 = vmatprep.subr.mxu0 0.0
    %1493 = vmatpush1.msra.mxu0 0.0
    %1494 = vmatprep.subr.mxu0 0.0
    %1495 = vmatpush1.msra.mxu0 0.0
    %1496 = vmatprep.subr.mxu0 0.0
    %1497 = vmatpush1.msra.mxu0 %v1170
    %1498 = vmatprep.subr.mxu0 0.0
    %1499 = vmatpush2.msra.mxu0 0.0
    %1500 = vmatprep.subr.mxu0 0.0
    %1501 = vmatpush2.msra.mxu0 0.0
    %1502 = vmatprep.subr.mxu0 0.0
    %1503 = vmatpush2.msra.mxu0 0.0
    %1504 = vmatprep.subr.mxu0 0.0
    %1505 = vmatpush2.msra.mxu0 0.0
    %1506 = vmatprep.subr.mxu0 0.0
    %1507 = vmatpush2.msra.mxu0 0.0
    %1508 = vmatprep.subr.mxu0 0.0
    %1509 = vmatpush2.msra.mxu0 0.0
    %1510 = vmatprep.subr.mxu0 0.0
    %1511 = vmatpush2.msra.mxu0 0.0
    %1512 = vmatprep.subr.mxu0 0.0
    %1513 = vmatpush2.msra.mxu0 0.0
    %1514 = vmatprep.subr.mxu0 0.0
    %1515 = vmatpush2.msra.mxu0 0.0
    %1516 = vmatprep.subr.mxu0 0.0
    %1517 = vmatpush2.msra.mxu0 0.0
    %1518 = vmatprep.subr.mxu0 0.0
    %1519 = vmatpush2.msra.mxu0 0.0
    %1520 = vmatprep.subr.mxu0 0.0
    %1521 = vmatpush2.msra.mxu0 0.0
    %1522 = vmatprep.subr.mxu0 0.0
    %1523 = vmatpush2.msra.mxu0 0.0
    %1524 = vmatprep.subr.mxu0 0.0
    %1525 = vmatpush2.msra.mxu0 0.0
    %1526 = vmatprep.subr.mxu0 0.0
    %1527 = vmatpush2.msra.mxu0 0.0
    %1528 = vmatprep.subr.mxu0 0.0
    %1529 = vmatpush2.msra.mxu0 0.0
    %1530 = vmatprep.mubr.f32.mxu0 0.0
    %1531 = vmatmul.mubr.f32.gmra.mxu0 %v1394
    %v1532 = vpop.f32.mrf.mxu0
    %v1533 = vadd.f32 0.0, %v1532
    %v1534 = vpop.f32.mrf.mxu0
    %1535 = vdwg.mxu0
    %v1537 = vrot.slane %v1533, 7
    %v1539 = vsel %vm325, %v1463, %v1537
    %vm1540 = vcmp.gt.f32.partialorder %v68, 0.7
    %v1541 = vsel %vm1540, 1, 0
    %v1542 = vcvt.s32.f32 %v1541
    %v1543 = vsel %vm90, 0.0, %v1542
    %vm1544 = vcmask 123904
    %v1545 = vsel %vm1544, %v1543, 0.0
    %1546 = vadd.xlane.f32.xlu0 %v1545
    %v1547 = vpop.xlane.xlu0 %1546
    %vm1548 = vcmp.gt.f32.partialorder %v1547, 0.0
    %v1549 = vsel %vm1548, 1, 0
    %v1550 = vcvt.s32.f32 %v1549
    %v1551 = vsel %vm90, -1e+30, %v68
    %v1552 = vsel %vm1544, %v1551, -inf
    %1553 = vmax.xlane.f32.xlu0 %v1552
    %v1554 = vpop.xlane.xlu0 %1553
    %vm1555 = vcmp.ge.f32.partialorder %v1551, %v1554
    %v1556 = vsel %vm1555, %v89, 1073741824
    %v1557 = vsel %vm1544, %v1556, 2147483647
    %v1558 = vand.u32 %v1557, 65535
    %v1559 = vshra.s32 %v1557, 16
    %v1560 = vcvt.s32.f32 %v1558
    %v1561 = vcvt.s32.f32 %v1559
    %1562 = vmin.xlane.f32.xlu0 %v1561
    %v1563 = vpop.xlane.xlu0 %1562
    %vm1564 = vcmp.eq.f32.partialorder %v1561, %v1563
    %v1565 = vsel %vm1564, %v1560, inf
    %1566 = vmin.xlane.f32.xlu0 %v1565
    %v1567 = vpop.xlane.xlu0 %1566
    %v1568 = vcvt.f32.s32 %v1567
    %v1569 = vcvt.f32.s32 %v1563
    %v1570 = vshll.u32 %v1569, 16
    %v1571 = vadd.s32 %v1570, %v1568
    %vm1572 = vcmp.eq.s32.totalorder %v89, %v1571
    %v1573 = vsel %vm1572, 1, 0
    %v1574 = vcvt.s32.f32 %v1573
    %v1575 = vmul.f32 %v1550, %v1543
    %v1576 = vsub.f32 1.0, %v1550
    %v1577 = vmul.f32 %v1576, %v1574
    %v1578 = vadd.f32 %v1575, %v1577
    %vm1579 = vcmask 130048
    %v1581 = vsel %vm1579, %v68, 0
    %1583 = vmatprep.subr.mxu0 0.0
    %1584 = vmatpush1.msra.mxu0 0.0
    %1585 = vmatprep.subr.mxu0 0.0
    %1586 = vmatpush1.msra.mxu0 0.0
    %1587 = vmatprep.subr.mxu0 0.0
    %1588 = vmatpush1.msra.mxu0 0.0
    %1589 = vmatprep.subr.mxu0 0.0
    %1590 = vmatpush1.msra.mxu0 0.0
    %1591 = vmatprep.subr.mxu0 0.0
    %1592 = vmatpush1.msra.mxu0 0.0
    %1593 = vmatprep.subr.mxu0 0.0
    %1594 = vmatpush1.msra.mxu0 0.0
    %1595 = vmatprep.subr.mxu0 0.0
    %1596 = vmatpush1.msra.mxu0 0.0
    %1597 = vmatprep.subr.mxu0 0.0
    %1598 = vmatpush1.msra.mxu0 0.0
    %1599 = vmatprep.subr.mxu0 0.0
    %1600 = vmatpush1.msra.mxu0 0.0
    %1601 = vmatprep.subr.mxu0 0.0
    %1602 = vmatpush1.msra.mxu0 0.0
    %1603 = vmatprep.subr.mxu0 0.0
    %1604 = vmatpush1.msra.mxu0 0.0
    %1605 = vmatprep.subr.mxu0 0.0
    %1606 = vmatpush1.msra.mxu0 0.0
    %1607 = vmatprep.subr.mxu0 0.0
    %1608 = vmatpush1.msra.mxu0 0.0
    %1609 = vmatprep.subr.mxu0 0.0
    %1610 = vmatpush1.msra.mxu0 0.0
    %1611 = vmatprep.subr.mxu0 0.0
    %1612 = vmatpush1.msra.mxu0 %v64
    %1613 = vmatprep.subr.mxu0 0.0
    %1614 = vmatpush1.msra.mxu0 %v63
    %1615 = vmatprep.subr.mxu0 0.0
    %1616 = vmatpush2.msra.mxu0 0.0
    %1617 = vmatprep.subr.mxu0 0.0
    %1618 = vmatpush2.msra.mxu0 0.0
    %1619 = vmatprep.subr.mxu0 0.0
    %1620 = vmatpush2.msra.mxu0 0.0
    %1621 = vmatprep.subr.mxu0 0.0
    %1622 = vmatpush2.msra.mxu0 0.0
    %1623 = vmatprep.subr.mxu0 0.0
    %1624 = vmatpush2.msra.mxu0 0.0
    %1625 = vmatprep.subr.mxu0 0.0
    %1626 = vmatpush2.msra.mxu0 0.0
    %1627 = vmatprep.subr.mxu0 0.0
    %1628 = vmatpush2.msra.mxu0 0.0
    %1629 = vmatprep.subr.mxu0 0.0
    %1630 = vmatpush2.msra.mxu0 0.0
    %1631 = vmatprep.subr.mxu0 0.0
    %1632 = vmatpush2.msra.mxu0 0.0
    %1633 = vmatprep.subr.mxu0 0.0
    %1634 = vmatpush2.msra.mxu0 0.0
    %1635 = vmatprep.subr.mxu0 0.0
    %1636 = vmatpush2.msra.mxu0 0.0
    %1637 = vmatprep.subr.mxu0 0.0
    %1638 = vmatpush2.msra.mxu0 0.0
    %1639 = vmatprep.subr.mxu0 0.0
    %1640 = vmatpush2.msra.mxu0 0.0
    %1641 = vmatprep.subr.mxu0 0.0
    %1642 = vmatpush2.msra.mxu0 0.0
    %1643 = vmatprep.subr.mxu0 0.0
    %1644 = vmatpush2.msra.mxu0 0.0
    %1645 = vmatprep.subr.mxu0 0.0
    %1646 = vmatpush2.msra.mxu0 0.0
    %1647 = vmatprep.mubr.f32.mxu0 0.0
    %1648 = vmatmul.mubr.f32.gmra.mxu0 %v1581
    %v1649 = vpop.f32.mrf.mxu0
    %v1650 = vadd.f32 0.0, %v1649
    %v1651 = vpop.f32.mrf.mxu0
    %1652 = vdwg.mxu0
    %v1654 = vsel %vm1579, %v1578, 0
    %1656 = vmatprep.subr.mxu0 0.0
    %1657 = vmatpush1.msra.mxu0 0.0
    %1658 = vmatprep.subr.mxu0 0.0
    %1659 = vmatpush1.msra.mxu0 0.0
    %1660 = vmatprep.subr.mxu0 0.0
    %1661 = vmatpush1.msra.mxu0 0.0
    %1662 = vmatprep.subr.mxu0 0.0
    %1663 = vmatpush1.msra.mxu0 0.0
    %1664 = vmatprep.subr.mxu0 0.0
    %1665 = vmatpush1.msra.mxu0 0.0
    %1666 = vmatprep.subr.mxu0 0.0
    %1667 = vmatpush1.msra.mxu0 0.0
    %1668 = vmatprep.subr.mxu0 0.0
    %1669 = vmatpush1.msra.mxu0 0.0
    %1670 = vmatprep.subr.mxu0 0.0
    %1671 = vmatpush1.msra.mxu0 0.0
    %1672 = vmatprep.subr.mxu0 0.0
    %1673 = vmatpush1.msra.mxu0 0.0
    %1674 = vmatprep.subr.mxu0 0.0
    %1675 = vmatpush1.msra.mxu0 0.0
    %1676 = vmatprep.subr.mxu0 0.0
    %1677 = vmatpush1.msra.mxu0 0.0
    %1678 = vmatprep.subr.mxu0 0.0
    %1679 = vmatpush1.msra.mxu0 0.0
    %1680 = vmatprep.subr.mxu0 0.0
    %1681 = vmatpush1.msra.mxu0 0.0
    %1682 = vmatprep.subr.mxu0 0.0
    %1683 = vmatpush1.msra.mxu0 0.0
    %1684 = vmatprep.subr.mxu0 0.0
    %1685 = vmatpush1.msra.mxu0 %v64
    %1686 = vmatprep.subr.mxu0 0.0
    %1687 = vmatpush1.msra.mxu0 %v63
    %1688 = vmatprep.subr.mxu0 0.0
    %1689 = vmatpush2.msra.mxu0 0.0
    %1690 = vmatprep.subr.mxu0 0.0
    %1691 = vmatpush2.msra.mxu0 0.0
    %1692 = vmatprep.subr.mxu0 0.0
    %1693 = vmatpush2.msra.mxu0 0.0
    %1694 = vmatprep.subr.mxu0 0.0
    %1695 = vmatpush2.msra.mxu0 0.0
    %1696 = vmatprep.subr.mxu0 0.0
    %1697 = vmatpush2.msra.mxu0 0.0
    %1698 = vmatprep.subr.mxu0 0.0
    %1699 = vmatpush2.msra.mxu0 0.0
    %1700 = vmatprep.subr.mxu0 0.0
    %1701 = vmatpush2.msra.mxu0 0.0
    %1702 = vmatprep.subr.mxu0 0.0
    %1703 = vmatpush2.msra.mxu0 0.0
    %1704 = vmatprep.subr.mxu0 0.0
    %1705 = vmatpush2.msra.mxu0 0.0
    %1706 = vmatprep.subr.mxu0 0.0
    %1707 = vmatpush2.msra.mxu0 0.0
    %1708 = vmatprep.subr.mxu0 0.0
    %1709 = vmatpush2.msra.mxu0 0.0
    %1710 = vmatprep.subr.mxu0 0.0
    %1711 = vmatpush2.msra.mxu0 0.0
    %1712 = vmatprep.subr.mxu0 0.0
    %1713 = vmatpush2.msra.mxu0 0.0
    %1714 = vmatprep.subr.mxu0 0.0
    %1715 = vmatpush2.msra.mxu0 0.0
    %1716 = vmatprep.subr.mxu0 0.0
    %1717 = vmatpush2.msra.mxu0 0.0
    %1718 = vmatprep.subr.mxu0 0.0
    %1719 = vmatpush2.msra.mxu0 0.0
    %1720 = vmatprep.mubr.f32.mxu0 0.0
    %1721 = vmatmul.mubr.f32.gmra.mxu0 %v1654
    %v1722 = vpop.f32.mrf.mxu0
    %v1723 = vadd.f32 0.0, %v1722
    %v1724 = vpop.f32.mrf.mxu0
    %1725 = vdwg.mxu0
    %v1726 = vmul.f32 %v1650, %v1245
    %v1727 = vmul.f32 %v1726, %v1723
    %vm1728 = vcmask 195584
    %v1730 = vsel %vm1728, %v1727, 0
    %1732 = vmatprep.subr.mxu0 0.0
    %1733 = vmatpush1.msra.mxu0 0.0
    %1734 = vmatprep.subr.mxu0 0.0
    %1735 = vmatpush1.msra.mxu0 0.0
    %1736 = vmatprep.subr.mxu0 0.0
    %1737 = vmatpush1.msra.mxu0 0.0
    %1738 = vmatprep.subr.mxu0 0.0
    %1739 = vmatpush1.msra.mxu0 0.0
    %1740 = vmatprep.subr.mxu0 0.0
    %1741 = vmatpush1.msra.mxu0 0.0
    %1742 = vmatprep.subr.mxu0 0.0
    %1743 = vmatpush1.msra.mxu0 0.0
    %1744 = vmatprep.subr.mxu0 0.0
    %1745 = vmatpush1.msra.mxu0 0.0
    %1746 = vmatprep.subr.mxu0 0.0
    %1747 = vmatpush1.msra.mxu0 0.0
    %1748 = vmatprep.subr.mxu0 0.0
    %1749 = vmatpush1.msra.mxu0 0.0
    %1750 = vmatprep.subr.mxu0 0.0
    %1751 = vmatpush1.msra.mxu0 0.0
    %1752 = vmatprep.subr.mxu0 0.0
    %1753 = vmatpush1.msra.mxu0 0.0
    %1754 = vmatprep.subr.mxu0 0.0
    %1755 = vmatpush1.msra.mxu0 0.0
    %1756 = vmatprep.subr.mxu0 0.0
    %1757 = vmatpush1.msra.mxu0 0.0
    %1758 = vmatprep.subr.mxu0 0.0
    %1759 = vmatpush1.msra.mxu0 %v67
    %1760 = vmatprep.subr.mxu0 0.0
    %1761 = vmatpush1.msra.mxu0 %v66
    %1762 = vmatprep.subr.mxu0 0.0
    %1763 = vmatpush1.msra.mxu0 %v65
    %1764 = vmatprep.subr.mxu0 0.0
    %1765 = vmatpush2.msra.mxu0 0.0
    %1766 = vmatprep.subr.mxu0 0.0
    %1767 = vmatpush2.msra.mxu0 0.0
    %1768 = vmatprep.subr.mxu0 0.0
    %1769 = vmatpush2.msra.mxu0 0.0
    %1770 = vmatprep.subr.mxu0 0.0
    %1771 = vmatpush2.msra.mxu0 0.0
    %1772 = vmatprep.subr.mxu0 0.0
    %1773 = vmatpush2.msra.mxu0 0.0
    %1774 = vmatprep.subr.mxu0 0.0
    %1775 = vmatpush2.msra.mxu0 0.0
    %1776 = vmatprep.subr.mxu0 0.0
    %1777 = vmatpush2.msra.mxu0 0.0
    %1778 = vmatprep.subr.mxu0 0.0
    %1779 = vmatpush2.msra.mxu0 0.0
    %1780 = vmatprep.subr.mxu0 0.0
    %1781 = vmatpush2.msra.mxu0 0.0
    %1782 = vmatprep.subr.mxu0 0.0
    %1783 = vmatpush2.msra.mxu0 0.0
    %1784 = vmatprep.subr.mxu0 0.0
    %1785 = vmatpush2.msra.mxu0 0.0
    %1786 = vmatprep.subr.mxu0 0.0
    %1787 = vmatpush2.msra.mxu0 0.0
    %1788 = vmatprep.subr.mxu0 0.0
    %1789 = vmatpush2.msra.mxu0 0.0
    %1790 = vmatprep.subr.mxu0 0.0
    %1791 = vmatpush2.msra.mxu0 0.0
    %1792 = vmatprep.subr.mxu0 0.0
    %1793 = vmatpush2.msra.mxu0 0.0
    %1794 = vmatprep.subr.mxu0 0.0
    %1795 = vmatpush2.msra.mxu0 0.0
    %1796 = vmatprep.mubr.f32.mxu0 0.0
    %1797 = vmatmul.mubr.f32.gmra.mxu0 %v1730
    %v1798 = vpop.f32.mrf.mxu0
    %v1799 = vadd.f32 0.0, %v1798
    %v1800 = vpop.f32.mrf.mxu0
    %1801 = vdwg.mxu0
    %vm1802 = vcmp.gt.f32.partialorder %v1799, 1.0
    %v1803 = vsel %vm1802, 1, 0
    %v1804 = vcvt.s32.f32 %v1803
    %v1805 = vmul.f32 %v1804, %v1799
    %v1806 = vsub.f32 1.0, %v1804
    %v1807 = vadd.f32 %v1805, %v1806
    %v1808 = vrcp.pop %v1807
    %v1809 = vmul.f32 %v1799, %v1808
    %1810 = vst.msk [vmem:[#allocation5] sm:$0x3] %vm1544, %v1809
    %vm1811 = vcmp.gt.f32.partialorder %v1809, 0.7
    %v1812 = vsel %vm1811, 1, 0
    %v1813 = vcvt.s32.f32 %v1812
    %v1814 = vsel %vm90, 0.0, %v1813
    %v1815 = vsel %vm1544, %v1814, 0.0
    %1816 = vadd.xlane.f32.xlu0 %v1815
    %v1817 = vpop.xlane.xlu0 %1816
    %vm1818 = vcmp.gt.f32.partialorder %v1817, 0.0
    %v1819 = vsel %vm1818, 1, 0
    %v1820 = vcvt.s32.f32 %v1819
    %v1821 = vsel %vm90, -1e+30, %v1809
    %v1822 = vsel %vm1544, %v1821, -inf
    %1823 = vmax.xlane.f32.xlu0 %v1822
    %v1824 = vpop.xlane.xlu0 %1823
    %vm1825 = vcmp.ge.f32.partialorder %v1821, %v1824
    %v1826 = vsel %vm1825, %v89, 1073741824
    %v1827 = vsel %vm1544, %v1826, 2147483647
    %v1828 = vand.u32 %v1827, 65535
    %v1829 = vshra.s32 %v1827, 16
    %v1830 = vcvt.s32.f32 %v1828
    %v1831 = vcvt.s32.f32 %v1829
    %1832 = vmin.xlane.f32.xlu0 %v1831
    %v1833 = vpop.xlane.xlu0 %1832
    %vm1834 = vcmp.eq.f32.partialorder %v1831, %v1833
    %v1835 = vsel %vm1834, %v1830, inf
    %1836 = vmin.xlane.f32.xlu0 %v1835
    %v1837 = vpop.xlane.xlu0 %1836
    %v1838 = vcvt.f32.s32 %v1837
    %v1839 = vcvt.f32.s32 %v1833
    %v1840 = vshll.u32 %v1839, 16
    %v1841 = vadd.s32 %v1840, %v1838
    %vm1842 = vcmp.eq.s32.totalorder %v89, %v1841
    %v1843 = vsel %vm1842, 1, 0
    %v1844 = vcvt.s32.f32 %v1843
    %v1845 = vmul.f32 %v1820, %v1814
    %v1846 = vsub.f32 1.0, %v1820
    %v1847 = vmul.f32 %v1846, %v1844
    %v1848 = vadd.f32 %v1845, %v1847
    %v1850 = vsel %vm1579, %v1809, 0
    %1852 = vmatprep.subr.mxu0 0.0
    %1853 = vmatpush1.msra.mxu0 0.0
    %1854 = vmatprep.subr.mxu0 0.0
    %1855 = vmatpush1.msra.mxu0 0.0
    %1856 = vmatprep.subr.mxu0 0.0
    %1857 = vmatpush1.msra.mxu0 0.0
    %1858 = vmatprep.subr.mxu0 0.0
    %1859 = vmatpush1.msra.mxu0 0.0
    %1860 = vmatprep.subr.mxu0 0.0
    %1861 = vmatpush1.msra.mxu0 0.0
    %1862 = vmatprep.subr.mxu0 0.0
    %1863 = vmatpush1.msra.mxu0 0.0
    %1864 = vmatprep.subr.mxu0 0.0
    %1865 = vmatpush1.msra.mxu0 0.0
    %1866 = vmatprep.subr.mxu0 0.0
    %1867 = vmatpush1.msra.mxu0 0.0
    %1868 = vmatprep.subr.mxu0 0.0
    %1869 = vmatpush1.msra.mxu0 0.0
    %1870 = vmatprep.subr.mxu0 0.0
    %1871 = vmatpush1.msra.mxu0 0.0
    %1872 = vmatprep.subr.mxu0 0.0
    %1873 = vmatpush1.msra.mxu0 0.0
    %1874 = vmatprep.subr.mxu0 0.0
    %1875 = vmatpush1.msra.mxu0 0.0
    %1876 = vmatprep.subr.mxu0 0.0
    %1877 = vmatpush1.msra.mxu0 0.0
    %1878 = vmatprep.subr.mxu0 0.0
    %1879 = vmatpush1.msra.mxu0 0.0
    %1880 = vmatprep.subr.mxu0 0.0
    %1881 = vmatpush1.msra.mxu0 %v64
    %1882 = vmatprep.subr.mxu0 0.0
    %1883 = vmatpush1.msra.mxu0 %v63
    %1884 = vmatprep.subr.mxu0 0.0
    %1885 = vmatpush2.msra.mxu0 0.0
    %1886 = vmatprep.subr.mxu0 0.0
    %1887 = vmatpush2.msra.mxu0 0.0
    %1888 = vmatprep.subr.mxu0 0.0
    %1889 = vmatpush2.msra.mxu0 0.0
    %1890 = vmatprep.subr.mxu0 0.0
    %1891 = vmatpush2.msra.mxu0 0.0
    %1892 = vmatprep.subr.mxu0 0.0
    %1893 = vmatpush2.msra.mxu0 0.0
    %1894 = vmatprep.subr.mxu0 0.0
    %1895 = vmatpush2.msra.mxu0 0.0
    %1896 = vmatprep.subr.mxu0 0.0
    %1897 = vmatpush2.msra.mxu0 0.0
    %1898 = vmatprep.subr.mxu0 0.0
    %1899 = vmatpush2.msra.mxu0 0.0
    %1900 = vmatprep.subr.mxu0 0.0
    %1901 = vmatpush2.msra.mxu0 0.0
    %1902 = vmatprep.subr.mxu0 0.0
    %1903 = vmatpush2.msra.mxu0 0.0
    %1904 = vmatprep.subr.mxu0 0.0
    %1905 = vmatpush2.msra.mxu0 0.0
    %1906 = vmatprep.subr.mxu0 0.0
    %1907 = vmatpush2.msra.mxu0 0.0
    %1908 = vmatprep.subr.mxu0 0.0
    %1909 = vmatpush2.msra.mxu0 0.0
    %1910 = vmatprep.subr.mxu0 0.0
    %1911 = vmatpush2.msra.mxu0 0.0
    %1912 = vmatprep.subr.mxu0 0.0
    %1913 = vmatpush2.msra.mxu0 0.0
    %1914 = vmatprep.subr.mxu0 0.0
    %1915 = vmatpush2.msra.mxu0 0.0
    %1916 = vmatprep.mubr.f32.mxu0 0.0
    %1917 = vmatmul.mubr.f32.gmra.mxu0 %v1850
    %v1918 = vpop.f32.mrf.mxu0
    %v1919 = vadd.f32 0.0, %v1918
    %v1920 = vpop.f32.mrf.mxu0
    %1921 = vdwg.mxu0
    %v1923 = vsel %vm1579, %v1848, 0
    %1925 = vmatprep.subr.mxu0 0.0
    %1926 = vmatpush1.msra.mxu0 0.0
    %1927 = vmatprep.subr.mxu0 0.0
    %1928 = vmatpush1.msra.mxu0 0.0
    %1929 = vmatprep.subr.mxu0 0.0
    %1930 = vmatpush1.msra.mxu0 0.0
    %1931 = vmatprep.subr.mxu0 0.0
    %1932 = vmatpush1.msra.mxu0 0.0
    %1933 = vmatprep.subr.mxu0 0.0
    %1934 = vmatpush1.msra.mxu0 0.0
    %1935 = vmatprep.subr.mxu0 0.0
    %1936 = vmatpush1.msra.mxu0 0.0
    %1937 = vmatprep.subr.mxu0 0.0
    %1938 = vmatpush1.msra.mxu0 0.0
    %1939 = vmatprep.subr.mxu0 0.0
    %1940 = vmatpush1.msra.mxu0 0.0
    %1941 = vmatprep.subr.mxu0 0.0
    %1942 = vmatpush1.msra.mxu0 0.0
    %1943 = vmatprep.subr.mxu0 0.0
    %1944 = vmatpush1.msra.mxu0 0.0
    %1945 = vmatprep.subr.mxu0 0.0
    %1946 = vmatpush1.msra.mxu0 0.0
    %1947 = vmatprep.subr.mxu0 0.0
    %1948 = vmatpush1.msra.mxu0 0.0
    %1949 = vmatprep.subr.mxu0 0.0
    %1950 = vmatpush1.msra.mxu0 0.0
    %1951 = vmatprep.subr.mxu0 0.0
    %1952 = vmatpush1.msra.mxu0 0.0
    %1953 = vmatprep.subr.mxu0 0.0
    %1954 = vmatpush1.msra.mxu0 %v64
    %1955 = vmatprep.subr.mxu0 0.0
    %1956 = vmatpush1.msra.mxu0 %v63
    %1957 = vmatprep.subr.mxu0 0.0
    %1958 = vmatpush2.msra.mxu0 0.0
    %1959 = vmatprep.subr.mxu0 0.0
    %1960 = vmatpush2.msra.mxu0 0.0
    %1961 = vmatprep.subr.mxu0 0.0
    %1962 = vmatpush2.msra.mxu0 0.0
    %1963 = vmatprep.subr.mxu0 0.0
    %1964 = vmatpush2.msra.mxu0 0.0
    %1965 = vmatprep.subr.mxu0 0.0
    %1966 = vmatpush2.msra.mxu0 0.0
    %1967 = vmatprep.subr.mxu0 0.0
    %1968 = vmatpush2.msra.mxu0 0.0
    %1969 = vmatprep.subr.mxu0 0.0
    %1970 = vmatpush2.msra.mxu0 0.0
    %1971 = vmatprep.subr.mxu0 0.0
    %1972 = vmatpush2.msra.mxu0 0.0
    %1973 = vmatprep.subr.mxu0 0.0
    %1974 = vmatpush2.msra.mxu0 0.0
    %1975 = vmatprep.subr.mxu0 0.0
    %1976 = vmatpush2.msra.mxu0 0.0
    %1977 = vmatprep.subr.mxu0 0.0
    %1978 = vmatpush2.msra.mxu0 0.0
    %1979 = vmatprep.subr.mxu0 0.0
    %1980 = vmatpush2.msra.mxu0 0.0
    %1981 = vmatprep.subr.mxu0 0.0
    %1982 = vmatpush2.msra.mxu0 0.0
    %1983 = vmatprep.subr.mxu0 0.0
    %1984 = vmatpush2.msra.mxu0 0.0
    %1985 = vmatprep.subr.mxu0 0.0
    %1986 = vmatpush2.msra.mxu0 0.0
    %1987 = vmatprep.subr.mxu0 0.0
    %1988 = vmatpush2.msra.mxu0 0.0
    %1989 = vmatprep.mubr.f32.mxu0 0.0
    %1990 = vmatmul.mubr.f32.gmra.mxu0 %v1923
    %v1991 = vpop.f32.mrf.mxu0
    %v1992 = vadd.f32 0.0, %v1991
    %v1993 = vpop.f32.mrf.mxu0
    %1994 = vdwg.mxu0
    %v1995 = vmul.f32 %v1919, %v1392
    %v1996 = vmul.f32 %v1995, %v1992
    %v1998 = vsel %vm1728, %v1996, 0
    %2000 = vmatprep.subr.mxu0 0.0
    %2001 = vmatpush1.msra.mxu0 0.0
    %2002 = vmatprep.subr.mxu0 0.0
    %2003 = vmatpush1.msra.mxu0 0.0
    %2004 = vmatprep.subr.mxu0 0.0
    %2005 = vmatpush1.msra.mxu0 0.0
    %2006 = vmatprep.subr.mxu0 0.0
    %2007 = vmatpush1.msra.mxu0 0.0
    %2008 = vmatprep.subr.mxu0 0.0
    %2009 = vmatpush1.msra.mxu0 0.0
    %2010 = vmatprep.subr.mxu0 0.0
    %2011 = vmatpush1.msra.mxu0 0.0
    %2012 = vmatprep.subr.mxu0 0.0
    %2013 = vmatpush1.msra.mxu0 0.0
    %2014 = vmatprep.subr.mxu0 0.0
    %2015 = vmatpush1.msra.mxu0 0.0
    %2016 = vmatprep.subr.mxu0 0.0
    %2017 = vmatpush1.msra.mxu0 0.0
    %2018 = vmatprep.subr.mxu0 0.0
    %2019 = vmatpush1.msra.mxu0 0.0
    %2020 = vmatprep.subr.mxu0 0.0
    %2021 = vmatpush1.msra.mxu0 0.0
    %2022 = vmatprep.subr.mxu0 0.0
    %2023 = vmatpush1.msra.mxu0 0.0
    %2024 = vmatprep.subr.mxu0 0.0
    %2025 = vmatpush1.msra.mxu0 0.0
    %2026 = vmatprep.subr.mxu0 0.0
    %2027 = vmatpush1.msra.mxu0 %v67
    %2028 = vmatprep.subr.mxu0 0.0
    %2029 = vmatpush1.msra.mxu0 %v66
    %2030 = vmatprep.subr.mxu0 0.0
    %2031 = vmatpush1.msra.mxu0 %v65
    %2032 = vmatprep.subr.mxu0 0.0
    %2033 = vmatpush2.msra.mxu0 0.0
    %2034 = vmatprep.subr.mxu0 0.0
    %2035 = vmatpush2.msra.mxu0 0.0
    %2036 = vmatprep.subr.mxu0 0.0
    %2037 = vmatpush2.msra.mxu0 0.0
    %2038 = vmatprep.subr.mxu0 0.0
    %2039 = vmatpush2.msra.mxu0 0.0
    %2040 = vmatprep.subr.mxu0 0.0
    %2041 = vmatpush2.msra.mxu0 0.0
    %2042 = vmatprep.subr.mxu0 0.0
    %2043 = vmatpush2.msra.mxu0 0.0
    %2044 = vmatprep.subr.mxu0 0.0
    %2045 = vmatpush2.msra.mxu0 0.0
    %2046 = vmatprep.subr.mxu0 0.0
    %2047 = vmatpush2.msra.mxu0 0.0
    %2048 = vmatprep.subr.mxu0 0.0
    %2049 = vmatpush2.msra.mxu0 0.0
    %2050 = vmatprep.subr.mxu0 0.0
    %2051 = vmatpush2.msra.mxu0 0.0
    %2052 = vmatprep.subr.mxu0 0.0
    %2053 = vmatpush2.msra.mxu0 0.0
    %2054 = vmatprep.subr.mxu0 0.0
    %2055 = vmatpush2.msra.mxu0 0.0
    %2056 = vmatprep.subr.mxu0 0.0
    %2057 = vmatpush2.msra.mxu0 0.0
    %2058 = vmatprep.subr.mxu0 0.0
    %2059 = vmatpush2.msra.mxu0 0.0
    %2060 = vmatprep.subr.mxu0 0.0
    %2061 = vmatpush2.msra.mxu0 0.0
    %2062 = vmatprep.subr.mxu0 0.0
    %2063 = vmatpush2.msra.mxu0 0.0
    %2064 = vmatprep.mubr.f32.mxu0 0.0
    %2065 = vmatmul.mubr.f32.gmra.mxu0 %v1998
    %v2066 = vpop.f32.mrf.mxu0
    %v2067 = vadd.f32 0.0, %v2066
    %v2068 = vpop.f32.mrf.mxu0
    %2069 = vdwg.mxu0
    %vm2070 = vcmp.gt.f32.partialorder %v2067, 1.0
    %v2071 = vsel %vm2070, 1, 0
    %v2072 = vcvt.s32.f32 %v2071
    %v2073 = vmul.f32 %v2072, %v2067
    %v2074 = vsub.f32 1.0, %v2072
    %v2075 = vadd.f32 %v2073, %v2074
    %v2076 = vrcp.pop %v2075
    %v2077 = vmul.f32 %v2067, %v2076
    %s2078 = scalar_lea.vmem [#allocation5], 2
    %2079 = vst.msk [vmem:[%s2078] sm:$0x3] %vm1544, %v2077
    %vm2080 = vcmp.gt.f32.partialorder %v2077, 0.7
    %v2081 = vsel %vm2080, 1, 0
    %v2082 = vcvt.s32.f32 %v2081
    %v2083 = vsel %vm90, 0.0, %v2082
    %v2084 = vsel %vm1544, %v2083, 0.0
    %2085 = vadd.xlane.f32.xlu0 %v2084
    %v2086 = vpop.xlane.xlu0 %2085
    %vm2087 = vcmp.gt.f32.partialorder %v2086, 0.0
    %v2088 = vsel %vm2087, 1, 0
    %v2089 = vcvt.s32.f32 %v2088
    %v2090 = vsel %vm90, -1e+30, %v2077
    %v2091 = vsel %vm1544, %v2090, -inf
    %2092 = vmax.xlane.f32.xlu0 %v2091
    %v2093 = vpop.xlane.xlu0 %2092
    %vm2094 = vcmp.ge.f32.partialorder %v2090, %v2093
    %v2095 = vsel %vm2094, %v89, 1073741824
    %v2096 = vsel %vm1544, %v2095, 2147483647
    %v2097 = vand.u32 %v2096, 65535
    %v2098 = vshra.s32 %v2096, 16
    %v2099 = vcvt.s32.f32 %v2097
    %v2100 = vcvt.s32.f32 %v2098
    %2101 = vmin.xlane.f32.xlu0 %v2100
    %v2102 = vpop.xlane.xlu0 %2101
    %vm2103 = vcmp.eq.f32.partialorder %v2100, %v2102
    %v2104 = vsel %vm2103, %v2099, inf
    %2105 = vmin.xlane.f32.xlu0 %v2104
    %v2106 = vpop.xlane.xlu0 %2105
    %v2107 = vcvt.f32.s32 %v2106
    %v2108 = vcvt.f32.s32 %v2102
    %v2109 = vshll.u32 %v2108, 16
    %v2110 = vadd.s32 %v2109, %v2107
    %vm2111 = vcmp.eq.s32.totalorder %v89, %v2110
    %v2112 = vsel %vm2111, 1, 0
    %v2113 = vcvt.s32.f32 %v2112
    %v2114 = vmul.f32 %v2089, %v2083
    %v2115 = vsub.f32 1.0, %v2089
    %v2116 = vmul.f32 %v2115, %v2113
    %v2117 = vadd.f32 %v2114, %v2116
    %v2119 = vsel %vm1579, %v2077, 0
    %2121 = vmatprep.subr.mxu0 0.0
    %2122 = vmatpush1.msra.mxu0 0.0
    %2123 = vmatprep.subr.mxu0 0.0
    %2124 = vmatpush1.msra.mxu0 0.0
    %2125 = vmatprep.subr.mxu0 0.0
    %2126 = vmatpush1.msra.mxu0 0.0
    %2127 = vmatprep.subr.mxu0 0.0
    %2128 = vmatpush1.msra.mxu0 0.0
    %2129 = vmatprep.subr.mxu0 0.0
    %2130 = vmatpush1.msra.mxu0 0.0
    %2131 = vmatprep.subr.mxu0 0.0
    %2132 = vmatpush1.msra.mxu0 0.0
    %2133 = vmatprep.subr.mxu0 0.0
    %2134 = vmatpush1.msra.mxu0 0.0
    %2135 = vmatprep.subr.mxu0 0.0
    %2136 = vmatpush1.msra.mxu0 0.0
    %2137 = vmatprep.subr.mxu0 0.0
    %2138 = vmatpush1.msra.mxu0 0.0
    %2139 = vmatprep.subr.mxu0 0.0
    %2140 = vmatpush1.msra.mxu0 0.0
    %2141 = vmatprep.subr.mxu0 0.0
    %2142 = vmatpush1.msra.mxu0 0.0
    %2143 = vmatprep.subr.mxu0 0.0
    %2144 = vmatpush1.msra.mxu0 0.0
    %2145 = vmatprep.subr.mxu0 0.0
    %2146 = vmatpush1.msra.mxu0 0.0
    %2147 = vmatprep.subr.mxu0 0.0
    %2148 = vmatpush1.msra.mxu0 0.0
    %2149 = vmatprep.subr.mxu0 0.0
    %2150 = vmatpush1.msra.mxu0 %v64
    %2151 = vmatprep.subr.mxu0 0.0
    %2152 = vmatpush1.msra.mxu0 %v63
    %2153 = vmatprep.subr.mxu0 0.0
    %2154 = vmatpush2.msra.mxu0 0.0
    %2155 = vmatprep.subr.mxu0 0.0
    %2156 = vmatpush2.msra.mxu0 0.0
    %2157 = vmatprep.subr.mxu0 0.0
    %2158 = vmatpush2.msra.mxu0 0.0
    %2159 = vmatprep.subr.mxu0 0.0
    %2160 = vmatpush2.msra.mxu0 0.0
    %2161 = vmatprep.subr.mxu0 0.0
    %2162 = vmatpush2.msra.mxu0 0.0
    %2163 = vmatprep.subr.mxu0 0.0
    %2164 = vmatpush2.msra.mxu0 0.0
    %2165 = vmatprep.subr.mxu0 0.0
    %2166 = vmatpush2.msra.mxu0 0.0
    %2167 = vmatprep.subr.mxu0 0.0
    %2168 = vmatpush2.msra.mxu0 0.0
    %2169 = vmatprep.subr.mxu0 0.0
    %2170 = vmatpush2.msra.mxu0 0.0
    %2171 = vmatprep.subr.mxu0 0.0
    %2172 = vmatpush2.msra.mxu0 0.0
    %2173 = vmatprep.subr.mxu0 0.0
    %2174 = vmatpush2.msra.mxu0 0.0
    %2175 = vmatprep.subr.mxu0 0.0
    %2176 = vmatpush2.msra.mxu0 0.0
    %2177 = vmatprep.subr.mxu0 0.0
    %2178 = vmatpush2.msra.mxu0 0.0
    %2179 = vmatprep.subr.mxu0 0.0
    %2180 = vmatpush2.msra.mxu0 0.0
    %2181 = vmatprep.subr.mxu0 0.0
    %2182 = vmatpush2.msra.mxu0 0.0
    %2183 = vmatprep.subr.mxu0 0.0
    %2184 = vmatpush2.msra.mxu0 0.0
    %2185 = vmatprep.mubr.f32.mxu0 0.0
    %2186 = vmatmul.mubr.f32.gmra.mxu0 %v2119
    %v2187 = vpop.f32.mrf.mxu0
    %v2188 = vadd.f32 0.0, %v2187
    %v2189 = vpop.f32.mrf.mxu0
    %2190 = vdwg.mxu0
    %v2192 = vsel %vm1579, %v2117, 0
    %2194 = vmatprep.subr.mxu0 0.0
    %2195 = vmatpush1.msra.mxu0 0.0
    %2196 = vmatprep.subr.mxu0 0.0
    %2197 = vmatpush1.msra.mxu0 0.0
    %2198 = vmatprep.subr.mxu0 0.0
    %2199 = vmatpush1.msra.mxu0 0.0
    %2200 = vmatprep.subr.mxu0 0.0
    %2201 = vmatpush1.msra.mxu0 0.0
    %2202 = vmatprep.subr.mxu0 0.0
    %2203 = vmatpush1.msra.mxu0 0.0
    %2204 = vmatprep.subr.mxu0 0.0
    %2205 = vmatpush1.msra.mxu0 0.0
    %2206 = vmatprep.subr.mxu0 0.0
    %2207 = vmatpush1.msra.mxu0 0.0
    %2208 = vmatprep.subr.mxu0 0.0
    %2209 = vmatpush1.msra.mxu0 0.0
    %2210 = vmatprep.subr.mxu0 0.0
    %2211 = vmatpush1.msra.mxu0 0.0
    %2212 = vmatprep.subr.mxu0 0.0
    %2213 = vmatpush1.msra.mxu0 0.0
    %2214 = vmatprep.subr.mxu0 0.0
    %2215 = vmatpush1.msra.mxu0 0.0
    %2216 = vmatprep.subr.mxu0 0.0
    %2217 = vmatpush1.msra.mxu0 0.0
    %2218 = vmatprep.subr.mxu0 0.0
    %2219 = vmatpush1.msra.mxu0 0.0
    %2220 = vmatprep.subr.mxu0 0.0
    %2221 = vmatpush1.msra.mxu0 0.0
    %2222 = vmatprep.subr.mxu0 0.0
    %2223 = vmatpush1.msra.mxu0 %v64
    %2224 = vmatprep.subr.mxu0 0.0
    %2225 = vmatpush1.msra.mxu0 %v63
    %2226 = vmatprep.subr.mxu0 0.0
    %2227 = vmatpush2.msra.mxu0 0.0
    %2228 = vmatprep.subr.mxu0 0.0
    %2229 = vmatpush2.msra.mxu0 0.0
    %2230 = vmatprep.subr.mxu0 0.0
    %2231 = vmatpush2.msra.mxu0 0.0
    %2232 = vmatprep.subr.mxu0 0.0
    %2233 = vmatpush2.msra.mxu0 0.0
    %2234 = vmatprep.subr.mxu0 0.0
    %2235 = vmatpush2.msra.mxu0 0.0
    %2236 = vmatprep.subr.mxu0 0.0
    %2237 = vmatpush2.msra.mxu0 0.0
    %2238 = vmatprep.subr.mxu0 0.0
    %2239 = vmatpush2.msra.mxu0 0.0
    %2240 = vmatprep.subr.mxu0 0.0
    %2241 = vmatpush2.msra.mxu0 0.0
    %2242 = vmatprep.subr.mxu0 0.0
    %2243 = vmatpush2.msra.mxu0 0.0
    %2244 = vmatprep.subr.mxu0 0.0
    %2245 = vmatpush2.msra.mxu0 0.0
    %2246 = vmatprep.subr.mxu0 0.0
    %2247 = vmatpush2.msra.mxu0 0.0
    %2248 = vmatprep.subr.mxu0 0.0
    %2249 = vmatpush2.msra.mxu0 0.0
    %2250 = vmatprep.subr.mxu0 0.0
    %2251 = vmatpush2.msra.mxu0 0.0
    %2252 = vmatprep.subr.mxu0 0.0
    %2253 = vmatpush2.msra.mxu0 0.0
    %2254 = vmatprep.subr.mxu0 0.0
    %2255 = vmatpush2.msra.mxu0 0.0
    %2256 = vmatprep.subr.mxu0 0.0
    %2257 = vmatpush2.msra.mxu0 0.0
    %2258 = vmatprep.mubr.f32.mxu0 0.0
    %2259 = vmatmul.mubr.f32.gmra.mxu0 %v2192
    %v2260 = vpop.f32.mrf.mxu0
    %v2261 = vadd.f32 0.0, %v2260
    %v2262 = vpop.f32.mrf.mxu0
    %2263 = vdwg.mxu0
    %v2264 = vmul.f32 %v2188, %v1539
    %v2265 = vmul.f32 %v2264, %v2261
    %v2267 = vsel %vm1728, %v2265, 0
    %2269 = vmatprep.subr.mxu0 0.0
    %2270 = vmatpush1.msra.mxu0 0.0
    %2271 = vmatprep.subr.mxu0 0.0
    %2272 = vmatpush1.msra.mxu0 0.0
    %2273 = vmatprep.subr.mxu0 0.0
    %2274 = vmatpush1.msra.mxu0 0.0
    %2275 = vmatprep.subr.mxu0 0.0
    %2276 = vmatpush1.msra.mxu0 0.0
    %2277 = vmatprep.subr.mxu0 0.0
    %2278 = vmatpush1.msra.mxu0 0.0
    %2279 = vmatprep.subr.mxu0 0.0
    %2280 = vmatpush1.msra.mxu0 0.0
    %2281 = vmatprep.subr.mxu0 0.0
    %2282 = vmatpush1.msra.mxu0 0.0
    %2283 = vmatprep.subr.mxu0 0.0
    %2284 = vmatpush1.msra.mxu0 0.0
    %2285 = vmatprep.subr.mxu0 0.0
    %2286 = vmatpush1.msra.mxu0 0.0
    %2287 = vmatprep.subr.mxu0 0.0
    %2288 = vmatpush1.msra.mxu0 0.0
    %2289 = vmatprep.subr.mxu0 0.0
    %2290 = vmatpush1.msra.mxu0 0.0
    %2291 = vmatprep.subr.mxu0 0.0
    %2292 = vmatpush1.msra.mxu0 0.0
    %2293 = vmatprep.subr.mxu0 0.0
    %2294 = vmatpush1.msra.mxu0 0.0
    %2295 = vmatprep.subr.mxu0 0.0
    %2296 = vmatpush1.msra.mxu0 %v67
    %2297 = vmatprep.subr.mxu0 0.0
    %2298 = vmatpush1.msra.mxu0 %v66
    %2299 = vmatprep.subr.mxu0 0.0
    %2300 = vmatpush1.msra.mxu0 %v65
    %2301 = vmatprep.subr.mxu0 0.0
    %2302 = vmatpush2.msra.mxu0 0.0
    %2303 = vmatprep.subr.mxu0 0.0
    %2304 = vmatpush2.msra.mxu0 0.0
    %2305 = vmatprep.subr.mxu0 0.0
    %2306 = vmatpush2.msra.mxu0 0.0
    %2307 = vmatprep.subr.mxu0 0.0
    %2308 = vmatpush2.msra.mxu0 0.0
    %2309 = vmatprep.subr.mxu0 0.0
    %2310 = vmatpush2.msra.mxu0 0.0
    %2311 = vmatprep.subr.mxu0 0.0
    %2312 = vmatpush2.msra.mxu0 0.0
    %2313 = vmatprep.subr.mxu0 0.0
    %2314 = vmatpush2.msra.mxu0 0.0
    %2315 = vmatprep.subr.mxu0 0.0
    %2316 = vmatpush2.msra.mxu0 0.0
    %2317 = vmatprep.subr.mxu0 0.0
    %2318 = vmatpush2.msra.mxu0 0.0
    %2319 = vmatprep.subr.mxu0 0.0
    %2320 = vmatpush2.msra.mxu0 0.0
    %2321 = vmatprep.subr.mxu0 0.0
    %2322 = vmatpush2.msra.mxu0 0.0
    %2323 = vmatprep.subr.mxu0 0.0
    %2324 = vmatpush2.msra.mxu0 0.0
    %2325 = vmatprep.subr.mxu0 0.0
    %2326 = vmatpush2.msra.mxu0 0.0
    %2327 = vmatprep.subr.mxu0 0.0
    %2328 = vmatpush2.msra.mxu0 0.0
    %2329 = vmatprep.subr.mxu0 0.0
    %2330 = vmatpush2.msra.mxu0 0.0
    %2331 = vmatprep.subr.mxu0 0.0
    %2332 = vmatpush2.msra.mxu0 0.0
    %2333 = vmatprep.mubr.f32.mxu0 0.0
    %2334 = vmatmul.mubr.f32.gmra.mxu0 %v2267
    %v2335 = vpop.f32.mrf.mxu0
    %v2336 = vadd.f32 0.0, %v2335
    %v2337 = vpop.f32.mrf.mxu0
    %2338 = vdwg.mxu0
    %vm2339 = vcmp.gt.f32.partialorder %v2336, 1.0
    %v2340 = vsel %vm2339, 1, 0
    %v2341 = vcvt.s32.f32 %v2340
    %v2342 = vmul.f32 %v2341, %v2336
    %v2343 = vsub.f32 1.0, %v2341
    %v2344 = vadd.f32 %v2342, %v2343
    %v2345 = vrcp.pop %v2344
    %v2346 = vmul.f32 %v2336, %v2345
    %s2347 = scalar_lea.vmem [#allocation5], 4
    %2348 = vst.msk [vmem:[%s2347] sm:$0x3] %vm1544, %v2346
    %v2349 = vld [vmem:[%s11] sm:$0xff]
    %v2350 = vld [vmem:[%s11 + $0x8] sm:$0xff]
    %v2351 = vld [vmem:[%s11 + $0x10] sm:$0xff]
    %v2352 = vld [vmem:[%s11 + $0x18] sm:$0xff]
    %v2353 = vld [vmem:[%s12] sm:$0x1]
    %v2355 = vlaneseq
    %v2356 = vshrl.u32 %v2355, 7
    %v2357 = vsub.s32 0, %v2356
    %v2358 = vrot.slane %v2353, %v2357
    %v2361 = vsel %vm102, %v1090, 0
    %2363 = vmatprep.subr.mxu0 0.0
    %2364 = vmatpush1.msra.mxu0 0.0
    %2365 = vmatprep.subr.mxu0 0.0
    %2366 = vmatpush1.msra.mxu0 0.0
    %2367 = vmatprep.subr.mxu0 0.0
    %2368 = vmatpush1.msra.mxu0 0.0
    %2369 = vmatprep.subr.mxu0 0.0
    %2370 = vmatpush1.msra.mxu0 0.0
    %2371 = vmatprep.subr.mxu0 0.0
    %2372 = vmatpush1.msra.mxu0 0.0
    %2373 = vmatprep.subr.mxu0 0.0
    %2374 = vmatpush1.msra.mxu0 0.0
    %2375 = vmatprep.subr.mxu0 0.0
    %2376 = vmatpush1.msra.mxu0 0.0
    %2377 = vmatprep.subr.mxu0 0.0
    %2378 = vmatpush1.msra.mxu0 0.0
    %2379 = vmatprep.subr.mxu0 0.0
    %2380 = vmatpush1.msra.mxu0 0.0
    %2381 = vmatprep.subr.mxu0 0.0
    %2382 = vmatpush1.msra.mxu0 0.0
    %2383 = vmatprep.subr.mxu0 0.0
    %2384 = vmatpush1.msra.mxu0 0.0
    %2385 = vmatprep.subr.mxu0 0.0
    %2386 = vmatpush1.msra.mxu0 0.0
    %2387 = vmatprep.subr.mxu0 0.0
    %2388 = vmatpush1.msra.mxu0 %v2352
    %2389 = vmatprep.subr.mxu0 0.0
    %2390 = vmatpush1.msra.mxu0 %v2351
    %2391 = vmatprep.subr.mxu0 0.0
    %2392 = vmatpush1.msra.mxu0 %v2350
    %2393 = vmatprep.subr.mxu0 0.0
    %2394 = vmatpush1.msra.mxu0 %v2349
    %2395 = vmatprep.subr.mxu0 0.0
    %2396 = vmatpush2.msra.mxu0 0.0
    %2397 = vmatprep.subr.mxu0 0.0
    %2398 = vmatpush2.msra.mxu0 0.0
    %2399 = vmatprep.subr.mxu0 0.0
    %2400 = vmatpush2.msra.mxu0 0.0
    %2401 = vmatprep.subr.mxu0 0.0
    %2402 = vmatpush2.msra.mxu0 0.0
    %2403 = vmatprep.subr.mxu0 0.0
    %2404 = vmatpush2.msra.mxu0 0.0
    %2405 = vmatprep.subr.mxu0 0.0
    %2406 = vmatpush2.msra.mxu0 0.0
    %2407 = vmatprep.subr.mxu0 0.0
    %2408 = vmatpush2.msra.mxu0 0.0
    %2409 = vmatprep.subr.mxu0 0.0
    %2410 = vmatpush2.msra.mxu0 0.0
    %2411 = vmatprep.subr.mxu0 0.0
    %2412 = vmatpush2.msra.mxu0 0.0
    %2413 = vmatprep.subr.mxu0 0.0
    %2414 = vmatpush2.msra.mxu0 0.0
    %2415 = vmatprep.subr.mxu0 0.0
    %2416 = vmatpush2.msra.mxu0 0.0
    %2417 = vmatprep.subr.mxu0 0.0
    %2418 = vmatpush2.msra.mxu0 0.0
    %2419 = vmatprep.subr.mxu0 0.0
    %2420 = vmatpush2.msra.mxu0 0.0
    %2421 = vmatprep.subr.mxu0 0.0
    %2422 = vmatpush2.msra.mxu0 0.0
    %2423 = vmatprep.subr.mxu0 0.0
    %2424 = vmatpush2.msra.mxu0 0.0
    %2425 = vmatprep.subr.mxu0 0.0
    %2426 = vmatpush2.msra.mxu0 0.0
    %2427 = vmatprep.mubr.f32.mxu0 0.0
    %2428 = vmatmul.mubr.f32.gmra.mxu0 %v2361
    %v2429 = vpop.f32.mrf.mxu0
    %v2430 = vadd.f32 %v2358, %v2429
    %v2431 = vpop.f32.mrf.mxu0
    %2432 = vdwg.mxu0
    %vm2433 = vcmask 17408
    %v2434 = vsel %vm2433, %v2430, -inf
    %2435 = vmax.xlane.f32.xlu0 %v2434
    %v2436 = vpop.xlane.xlu0 %2435
    %v2437 = vsub.f32 %v2430, %v2436
    %v2438 = vmul.f32 %v2437, 1.442695
    %v2439 = vpow.pop %v2438
    %v2440 = vsel %vm2433, %v2439, 0.0
    %2441 = vadd.xlane.f32.xlu0 %v2440
    %v2442 = vpop.xlane.xlu0 %2441
    %v2443 = vrcp.pop %v2442
    %v2444 = vmul.f32 %v2439, %v2443
    %v2445 = vsel %vm90, %v2444, 0.0
    %v2446 = vsel %vm2433, %v2445, 0.0
    %2447 = vadd.xlane.f32.xlu0 %v2446
    %v2448 = vpop.xlane.xlu0 %2447
    %v2449 = vmul.f32 %v2448, %v1809
    %v2450 = vadd.f32 %v2449, 0.0
    %v2451 = vsel %vm93, %v2444, 0.0
    %v2452 = vsel %vm2433, %v2451, 0.0
    %2453 = vadd.xlane.f32.xlu0 %v2452
    %v2454 = vpop.xlane.xlu0 %2453
    %v2455 = vmul.f32 %v2454, %v2077
    %v2456 = vadd.f32 %v2450, %v2455
    %v2457 = vsel %vm96, %v2444, 0.0
    %v2458 = vsel %vm2433, %v2457, 0.0
    %2459 = vadd.xlane.f32.xlu0 %v2458
    %v2460 = vpop.xlane.xlu0 %2459
    %v2461 = vmul.f32 %v2460, %v2346
    %v2462 = vadd.f32 %v2456, %v2461
    %v2463 = vsel %vm2433, %v2444, -inf
    %2464 = vmax.xlane.f32.xlu0 %v2463
    %v2465 = vpop.xlane.xlu0 %2464
    %vm2466 = vcmp.ge.f32.partialorder %v2444, %v2465
    %v2467 = vsel %vm2466, %v89, 1073741824
    %v2468 = vsel %vm2433, %v2467, 2147483647
    %v2469 = vand.u32 %v2468, 65535
    %v2470 = vshra.s32 %v2468, 16
    %v2471 = vcvt.s32.f32 %v2469
    %v2472 = vcvt.s32.f32 %v2470
    %2473 = vmin.xlane.f32.xlu0 %v2472
    %v2474 = vpop.xlane.xlu0 %2473
    %vm2475 = vcmp.eq.f32.partialorder %v2472, %v2474
    %v2476 = vsel %vm2475, %v2471, inf
    %2477 = vmin.xlane.f32.xlu0 %v2476
    %v2478 = vpop.xlane.xlu0 %2477
    %v2479 = vcvt.f32.s32 %v2478
    %v2480 = vcvt.f32.s32 %v2474
    %v2481 = vshll.u32 %v2480, 16
    %v2482 = vadd.s32 %v2481, %v2479
    %vm2483 = vcmp.eq.s32.totalorder %v2482, 1
    %v2484 = vsel %vm2483, 1, 0
    %v2485 = vcvt.s32.f32 %v2484
    %v2486 = vmul.f32 %v2485, %v68
    %v2487 = vsub.f32 1.0, %v2486
    %v2488 = vmul.f32 %v2487, %v2462
    %v2489 = vld [vmem:[%s13] sm:$0xff]
    %v2490 = vld [vmem:[%s13 + $0x8] sm:$0xff]
    %v2491 = vld [vmem:[%s13 + $0x10] sm:$0xff]
    %v2492 = vld [vmem:[%s13 + $0x18] sm:$0xff]
    %v2493 = vld [vmem:[%s14] sm:$0x1]
    %v2495 = vlaneseq
    %v2496 = vshrl.u32 %v2495, 7
    %v2497 = vsub.s32 0, %v2496
    %v2498 = vrot.slane %v2493, %v2497
    %2500 = vmatprep.subr.mxu0 0.0
    %2501 = vmatpush1.msra.mxu0 0.0
    %2502 = vmatprep.subr.mxu0 0.0
    %2503 = vmatpush1.msra.mxu0 0.0
    %2504 = vmatprep.subr.mxu0 0.0
    %2505 = vmatpush1.msra.mxu0 0.0
    %2506 = vmatprep.subr.mxu0 0.0
    %2507 = vmatpush1.msra.mxu0 0.0
    %2508 = vmatprep.subr.mxu0 0.0
    %2509 = vmatpush1.msra.mxu0 0.0
    %2510 = vmatprep.subr.mxu0 0.0
    %2511 = vmatpush1.msra.mxu0 0.0
    %2512 = vmatprep.subr.mxu0 0.0
    %2513 = vmatpush1.msra.mxu0 0.0
    %2514 = vmatprep.subr.mxu0 0.0
    %2515 = vmatpush1.msra.mxu0 0.0
    %2516 = vmatprep.subr.mxu0 0.0
    %2517 = vmatpush1.msra.mxu0 0.0
    %2518 = vmatprep.subr.mxu0 0.0
    %2519 = vmatpush1.msra.mxu0 0.0
    %2520 = vmatprep.subr.mxu0 0.0
    %2521 = vmatpush1.msra.mxu0 0.0
    %2522 = vmatprep.subr.mxu0 0.0
    %2523 = vmatpush1.msra.mxu0 0.0
    %2524 = vmatprep.subr.mxu0 0.0
    %2525 = vmatpush1.msra.mxu0 %v2492
    %2526 = vmatprep.subr.mxu0 0.0
    %2527 = vmatpush1.msra.mxu0 %v2491
    %2528 = vmatprep.subr.mxu0 0.0
    %2529 = vmatpush1.msra.mxu0 %v2490
    %2530 = vmatprep.subr.mxu0 0.0
    %2531 = vmatpush1.msra.mxu0 %v2489
    %2532 = vmatprep.subr.mxu0 0.0
    %2533 = vmatpush2.msra.mxu0 0.0
    %2534 = vmatprep.subr.mxu0 0.0
    %2535 = vmatpush2.msra.mxu0 0.0
    %2536 = vmatprep.subr.mxu0 0.0
    %2537 = vmatpush2.msra.mxu0 0.0
    %2538 = vmatprep.subr.mxu0 0.0
    %2539 = vmatpush2.msra.mxu0 0.0
    %2540 = vmatprep.subr.mxu0 0.0
    %2541 = vmatpush2.msra.mxu0 0.0
    %2542 = vmatprep.subr.mxu0 0.0
    %2543 = vmatpush2.msra.mxu0 0.0
    %2544 = vmatprep.subr.mxu0 0.0
    %2545 = vmatpush2.msra.mxu0 0.0
    %2546 = vmatprep.subr.mxu0 0.0
    %2547 = vmatpush2.msra.mxu0 0.0
    %2548 = vmatprep.subr.mxu0 0.0
    %2549 = vmatpush2.msra.mxu0 0.0
    %2550 = vmatprep.subr.mxu0 0.0
    %2551 = vmatpush2.msra.mxu0 0.0
    %2552 = vmatprep.subr.mxu0 0.0
    %2553 = vmatpush2.msra.mxu0 0.0
    %2554 = vmatprep.subr.mxu0 0.0
    %2555 = vmatpush2.msra.mxu0 0.0
    %2556 = vmatprep.subr.mxu0 0.0
    %2557 = vmatpush2.msra.mxu0 0.0
    %2558 = vmatprep.subr.mxu0 0.0
    %2559 = vmatpush2.msra.mxu0 0.0
    %2560 = vmatprep.subr.mxu0 0.0
    %2561 = vmatpush2.msra.mxu0 0.0
    %2562 = vmatprep.subr.mxu0 0.0
    %2563 = vmatpush2.msra.mxu0 0.0
    %2564 = vmatprep.mubr.f32.mxu0 0.0
    %2565 = vmatmul.mubr.f32.gmra.mxu0 %v2361
    %v2566 = vpop.f32.mrf.mxu0
    %v2567 = vadd.f32 %v2498, %v2566
    %v2568 = vpop.f32.mrf.mxu0
    %2569 = vdwg.mxu0
    %v2570 = vxor.u32 %v2567, 2147483648
    %v2571 = vmul.f32 %v2570, 1.442695
    %v2572 = vpow.pop %v2571
    %v2573 = vadd.f32 %v2572, 1.0
    %v2574 = vrcp.pop %v2573
    %v2575 = vmul.f32 1.0, %v2574
    %v2576 = vmul.f32 %v2488, %v2575
    %2577 = vst.msk [vmem:[#allocation3] sm:$0x3] %vm1544, %v2576
    // Predicated region
    $region62: #{tpu_custom_call.1} parent=1 // pred_check
      _
    $region63: #{tpu_custom_call.1} parent=1 // pred_check_branch
      %2579 = sbr.rel (0) target = $region65
    $region64: #{tpu_custom_call.1} parent=1 // pred_region
      %s2581 = ssub.s32 32, 32
      %2582 = vsyncadd [#allocation4], %s2581
      %s2584 = sshll.u32 [#allocation3], 4
      %s2585 = int_to_ptr.vmem [resolvable:$true] %s2584
      %2587 = dma.vmem_to_hbm [thread:$0]  %s2585, 32, %s15, [#allocation4]
    $region65: #{tpu_custom_call.1} parent=1 // pred_fallthru
      _
    // Predicated region
    $region66: #{tpu_custom_call.1} parent=1 // pred_check
      _
    $region67: #{tpu_custom_call.1} parent=1 // pred_check_branch
      %2589 = sbr.rel (0) target = $region69
    $region68: #{tpu_custom_call.1} parent=1 // pred_region
      _
    $region69: #{tpu_custom_call.1} parent=1 // pred_fallthru
      _
    // Predicated region
    $region70: #{tpu_custom_call.1} parent=1 // pred_check
      _
    $region71: #{tpu_custom_call.1} parent=1 // pred_check_branch
      %2591 = sbr.rel (0) target = $region73
    $region72: #{tpu_custom_call.1} parent=1 // pred_region
      %s2593 = ssub.s32 96, 96
      %2594 = vsyncadd [#allocation6], %s2593
      %s2595 = sshll.u32 [#allocation5], 4
      %s2596 = int_to_ptr.vmem [resolvable:$true] %s2595
      %2601 = dma.vmem_to_hbm [thread:$0]  %s2596, 96, %s17, [#allocation6], 32, 32, 2
    $region73: #{tpu_custom_call.1} parent=1 // pred_fallthru
      _
    // Predicated region
    $region74: #{tpu_custom_call.1} parent=1 // pred_check
      _
    $region75: #{tpu_custom_call.1} parent=1 // pred_check_branch
      %2603 = sbr.rel (0) target = $region77
    $region76: #{tpu_custom_call.1} parent=1 // pred_region
      %2604 = dma.done [#allocation4], 32
    $region77: #{tpu_custom_call.1} parent=1 // pred_fallthru
      _
    // Predicated region
    $region78: #{tpu_custom_call.1} parent=1 // pred_check
      _
    $region79: #{tpu_custom_call.1} parent=1 // pred_check_branch
      %2606 = sbr.rel (0) target = $region81
    $region80: #{tpu_custom_call.1} parent=1 // pred_region
      _
    $region81: #{tpu_custom_call.1} parent=1 // pred_fallthru
      _
    // Predicated region
    $region82: #{tpu_custom_call.1} parent=1 // pred_check
      _
    $region83: #{tpu_custom_call.1} parent=1 // pred_check_branch
      %2608 = sbr.rel (0) target = $region85
    $region84: #{tpu_custom_call.1} parent=1 // pred_region
      %2609 = dma.done [#allocation6], 96
    $region85: #{tpu_custom_call.1} parent=1 // pred_fallthru
      _
    %2610 = vsyncpa [#allocation4], 1
    %2611 = vsyncpa [#allocation6], 1

</llo_original>
